<compile_context>
chip_gen: v7x
topology: tpu7x:2x2x1
jax: 0.10.0
libtpu: 0.0.40
codegen_flags: <defaults>
</compile_context>

<pallas_src>
import numpy as np

import jax
import jax.numpy as jnp
from jax import lax
from jax.experimental import pallas as pl
from jax.experimental.pallas import tpu as pltpu


# ------------------------------ Pallas kernel -------------------------------------- #

def _lenet_kernel(x_ref, t1_ref, b1_ref, t2_ref, b2_ref,
                  wfc1_ref, bfc1_ref, wfc2_ref, bfc2_ref, wfc3_ref, bfc3_ref,
                  out_ref):
    """Whole LeNet forward for `blk` samples (the grid runs over batch tiles).

    x_ref   : (4, 9*blk, 128)  input rows split mod 4: row (rem, j*blk + b, lane)
                               holds sample b, image row h = 4*j + rem, lane = w*3 + c
                               (lanes 96..127 zero; image rows >= 32 zero).
    t1_ref  : (640, 256)  conv1 block-Toeplitz weights; K = ki*128 + w*3 + c,
                          N = pw*128 + wp*6 + co   (pw = pool-width parity).
    t2_ref  : (640, 256)  conv2 weights; K = ki*128 + w*6 + c, N = pw*128 + wp*16 + co.
    b1/b2   : (1, 128)    conv biases tiled over width lanes (zero padded).
    wfc1    : (640, 128)  fc1 weights permuted to rows h*128 + w*16 + c (zero padded).
    wfc2/3  : (128, 128)  zero padded; bfc* : (1, 128).
    out_ref : (blk, 128)  logits in lanes 0..9 (rest exactly zero).
    """
    f32 = jnp.float32
    b = out_ref.shape[0]            # samples per grid step (multiple of 8)
    m = 8 * b                       # rows per conv row-group (batch-minor packing)

    # ---- conv1 (5x5, 3->6) + bias + relu + 2x2 max-pool: ONE MXU matmul ------------
    def slab1(o):                   # input rows 4*j + o, j = 0..7, batch-minor -> (m,128)
        return x_ref[o % 4, (o // 4) * b:(o // 4) * b + m, :]

    def grp1(o):                    # 5-tap row window stacked along K -> (m, 640)
        return jnp.concatenate([slab1(o + ki) for ki in range(5)], axis=-1)

    # row groups o_g = 2*q1 + ph: conv1 output row h1 = 4*j + 2*q1 + ph
    lhs1 = jnp.concatenate([grp1(0), grp1(1), grp1(2), grp1(3)], axis=0)    # (4m, 640)
    z1 = jnp.dot(lhs1, t1_ref[...], preferred_element_type=f32)             # (4m, 256)

    zq0 = jnp.maximum(z1[0:m], z1[m:2 * m])          # pool over ph: pooled row hp = 2j
    zq1 = jnp.maximum(z1[2 * m:3 * m], z1[3 * m:])   #                pooled row hp = 2j+1
    # pool over pw (the two 128-lane halves), then bias + relu
    p1_0 = jnp.maximum(jnp.maximum(zq0[:, :128], zq0[:, 128:]) + b1_ref[...], 0.0)
    p1_1 = jnp.maximum(jnp.maximum(zq1[:, :128], zq1[:, 128:]) + b1_ref[...], 0.0)
    zpad = jnp.zeros((m, 128), f32)                  # row padding for conv2's window
    p1_0 = jnp.concatenate([p1_0, zpad], axis=0)     # (2m,128): pool1 rows hp = 2j
    p1_1 = jnp.concatenate([p1_1, zpad], axis=0)     # (2m,128): pool1 rows hp = 2j+1

    # ---- conv2 (5x5, 6->16) + bias + relu + 2x2 max-pool: ONE MXU matmul -----------
    def slab2(o):                   # pool1 rows 2*j + o, j = 0..7 -> (m, 128)
        src = p1_0 if o % 2 == 0 else p1_1
        return src[(o // 2) * b:(o // 2) * b + m, :]

    def grp2(o):                    # (m, 640)
        return jnp.concatenate([slab2(o + ki) for ki in range(5)], axis=-1)

    lhs2 = jnp.concatenate([grp2(0), grp2(1)], axis=0)                      # (2m, 640)
    z2 = jnp.dot(lhs2, t2_ref[...], preferred_element_type=f32)             # (2m, 256)
    zq2 = jnp.maximum(z2[0:m], z2[m:])                                      # pool over ph2
    p2 = jnp.maximum(jnp.maximum(zq2[:, :128], zq2[:, 128:]) + b2_ref[...], 0.0)  # (m,128)
    # p2 row = hp2*b + sample, lane = w*16 + c (valid hp2 < 5, lane < 80; pads are 0)

    # ---- fc1 + relu (single matmul over the padded (h, w, c) flatten) --------------
    flat = jnp.concatenate([p2[h * b:(h + 1) * b, :] for h in range(5)], axis=-1)  # (b,640)
    f1 = jnp.maximum(jnp.dot(flat, wfc1_ref[...], preferred_element_type=f32)
                     + bfc1_ref[...], 0.0)

    # ---- fc2 + relu, fc3 ------------------------------------------------------------
    f2 = jnp.maximum(jnp.dot(f1, wfc2_ref[...], preferred_element_type=f32)
                     + bfc2_ref[...], 0.0)
    logits = jnp.dot(f2, wfc3_ref[...], preferred_element_type=f32) + bfc3_ref[...]
    out_ref[...] = logits.astype(out_ref.dtype)


# ------------------------------ Weight preprocessing ------------------------------- #

def _conv_matmul_weights(w_oihw, wi_n, wp_n, in_pad=128, out_pad=128):
    """Block-Toeplitz conv weights, (5*in_pad, 2*out_pad):

       M[ki*in_pad + wi*Cin + ci, pw*out_pad + wp*Cout + co]
         = W[co, ci, ki, wi - (2*wp + pw)]   (zero outside the 5-tap support / pads)

    so a row slab packed as lane = wi*Cin + ci, matmul'd with M, yields the conv output
    for width w = 2*wp + pw at column pw*out_pad + wp*Cout + co.
    """
    cout, cin, kh, kw = w_oihw.shape
    wi = np.arange(wi_n)[:, None, None]
    pw = np.arange(2)[None, :, None]
    wp = np.arange(wp_n)[None, None, :]
    kj = wi - 2 * wp - pw                               # (wi_n, 2, wp_n)
    valid = (kj >= 0) & (kj < kw)
    kjc = np.clip(kj, 0, kw - 1)
    w_t = jnp.transpose(w_oihw, (2, 3, 1, 0))           # (KH, KW, Cin, Cout)
    g = w_t[:, kjc]                                     # (KH, wi_n, 2, wp_n, Cin, Cout)
    g = g * jnp.asarray(valid, g.dtype)[None, :, :, :, None, None]
    g = jnp.transpose(g, (0, 1, 4, 2, 3, 5))            # (KH, wi_n, Cin, 2, wp_n, Cout)
    g = g.reshape(kh, wi_n * cin, 2, wp_n * cout)
    g = jnp.pad(g, ((0, 0), (0, in_pad - wi_n * cin), (0, 0), (0, out_pad - wp_n * cout)))
    return g.reshape(kh * in_pad, 2 * out_pad).astype(jnp.float32)


def _choose_tiling(n):
    """Samples per grid step (multiple of 8 for dense stores / aligned slices, capped
    so conv M stays ~256-512) and grid length (>= 2 so v7x's two cores both work)."""
    blk = max(1, min(16, -(-n // 2)))
    blk = ((blk + 7) // 8) * 8
    steps = max(2, -(-n // blk))
    return blk, steps


# ------------------------------ Forward pass ---------------------------------------- #

def net_forward(params, x_nchw):
    """x_nchw: (N, 3, 32, 32) float32 -> (N, 10) logits (PyTorch `Net` semantics)."""
    n = x_nchw.shape[0]
    assert x_nchw.shape[1:] == (3, 32, 32)
    blk, steps = _choose_tiling(n)
    n_pad = blk * steps

    # Input: NCHW -> row-packed (H, W*C), pad lanes 96->128 and rows 32->36, then split
    # rows mod 4 with batch-minor packing (j*blk + b) so every in-kernel slab is a
    # contiguous, sublane-aligned 2D slice.  (Single fused XLA repack of a small input.)
    xr = jnp.transpose(x_nchw, (0, 2, 3, 1)).reshape(n, 32, 96)
    xr = jnp.pad(xr, ((0, n_pad - n), (0, 4), (0, 32)))            # (n_pad, 36, 128)
    x_dev = xr.reshape(steps, blk, 9, 4, 128)
    x_dev = jnp.transpose(x_dev, (0, 3, 2, 1, 4)).reshape(steps, 4, 9 * blk, 128)

    # Conv weights -> pw-merged (N=256), ki-stacked (K=640) block-Toeplitz matrices.
    t1 = _conv_matmul_weights(params["conv1_w"], 32, 14)           # (640, 256)
    t2 = _conv_matmul_weights(params["conv2_w"], 14, 5)            # (640, 256)
    b1 = jnp.pad(jnp.tile(params["conv1_b"], 14), (0, 44)).reshape(1, 128)
    b2 = jnp.pad(jnp.tile(params["conv2_b"], 5), (0, 48)).reshape(1, 128)

    # fc1 weights: PyTorch NCHW-flatten rows (c*25 + h*5 + w) -> kernel layout rows
    # h*128 + w*16 + c (zero rows for the lane padding); fc2/fc3 zero-padded to 128.
    wfc1 = jnp.transpose(params["fc1_w"].reshape(16, 5, 5, 120), (1, 2, 0, 3))
    wfc1 = jnp.pad(wfc1.reshape(5, 80, 120), ((0, 0), (0, 48), (0, 8))).reshape(640, 128)
    bfc1 = jnp.pad(params["fc1_b"], (0, 8)).reshape(1, 128)
    wfc2 = jnp.pad(params["fc2_w"], ((0, 8), (0, 44)))              # (128, 128)
    bfc2 = jnp.pad(params["fc2_b"], (0, 44)).reshape(1, 128)
    wfc3 = jnp.pad(params["fc3_w"], ((0, 44), (0, 118)))            # (128, 128)
    bfc3 = jnp.pad(params["fc3_b"], (0, 118)).reshape(1, 128)

    def whole(a):  # grid-invariant whole-array block (stays VMEM-resident)
        nd = a.ndim
        return pl.BlockSpec(a.shape, lambda i, _nd=nd: (0,) * _nd)

    out = pl.pallas_call(
        _lenet_kernel,
        out_shape=jax.ShapeDtypeStruct((n_pad, 128), jnp.float32),
        grid=(steps,),
        in_specs=[pl.BlockSpec((None, 4, 9 * blk, 128), lambda i: (i, 0, 0, 0)),
                  whole(t1), whole(b1), whole(t2), whole(b2),
                  whole(wfc1), whole(bfc1), whole(wfc2), whole(bfc2),
                  whole(wfc3), whole(bfc3)],
        out_specs=pl.BlockSpec((blk, 128), lambda i: (i, 0)),
        compiler_params=pltpu.CompilerParams(
            dimension_semantics=("parallel",)),
    )(x_dev, t1, b1, t2, b2, wfc1, bfc1, wfc2, bfc2, wfc3, bfc3)
    return out[:n, :10]


# ------------------------------ Reference & params ---------------------------------- #

def reference_forward(params, x_nchw):
    """Pure-JAX (XLA) reference with the exact PyTorch `Net` semantics."""
    dnums = ("NCHW", "OIHW", "NCHW")
    hi = lax.Precision.HIGHEST
    y = lax.conv_general_dilated(x_nchw, params["conv1_w"], (1, 1), "VALID",
                                 dimension_numbers=dnums, precision=hi)
    y = jax.nn.relu(y + params["conv1_b"][None, :, None, None])
    y = lax.reduce_window(y, -jnp.inf, lax.max, (1, 1, 2, 2), (1, 1, 2, 2), "VALID")
    y = lax.conv_general_dilated(y, params["conv2_w"], (1, 1), "VALID",
                                 dimension_numbers=dnums, precision=hi)
    y = jax.nn.relu(y + params["conv2_b"][None, :, None, None])
    y = lax.reduce_window(y, -jnp.inf, lax.max, (1, 1, 2, 2), (1, 1, 2, 2), "VALID")
    y = y.reshape(y.shape[0], 16 * 5 * 5)                   # NCHW flatten == torch .view
    y = jax.nn.relu(jnp.dot(y, params["fc1_w"], precision=hi) + params["fc1_b"])
    y = jax.nn.relu(jnp.dot(y, params["fc2_w"], precision=hi) + params["fc2_b"])
    return jnp.dot(y, params["fc3_w"], precision=hi) + params["fc3_b"]


def init_params(key):
    ks = jax.random.split(key, 10)

    def u(k, shape, fan_in):
        bound = 2.5 / jnp.sqrt(fan_in)
        return jax.random.uniform(k, shape, jnp.float32, -bound, bound)

    return {
        "conv1_w": u(ks[0], (6, 3, 5, 5), 3 * 5 * 5),
        "conv1_b": u(ks[1], (6,), 3 * 5 * 5),
        "conv2_w": u(ks[2], (16, 6, 5, 5), 6 * 5 * 5),
        "conv2_b": u(ks[3], (16,), 6 * 5 * 5),
        "fc1_w": u(ks[4], (400, 120), 400),   # stored (in, out)
        "fc1_b": u(ks[5], (120,), 400),
        "fc2_w": u(ks[6], (120, 84), 120),
        "fc2_b": u(ks[7], (84,), 120),
        "fc3_w": u(ks[8], (84, 10), 84),
        "fc3_b": u(ks[9], (10,), 84),
    }


if __name__ == "__main__":
    key = jax.random.PRNGKey(0)
    pkey, xkey = jax.random.split(key)
    params = init_params(pkey)
    # The forward pass requires 32x32 spatial input (16*5*5 flatten); batch = 2.
    x = jax.random.normal(xkey, (2, 3, 32, 32), dtype=jnp.float32)

    logits = jax.jit(net_forward)(params, x)
    jax.block_until_ready(logits)
    assert logits.shape == (2, 10) and logits.dtype == jnp.float32

    ref = jax.jit(reference_forward)(params, x)
    jax.block_until_ready(ref)
    assert bool(jnp.allclose(logits, ref, rtol=1e-4, atol=1e-4)), (
        f"max abs diff {jnp.max(jnp.abs(logits - ref))}")

    print("KERNEL_OK")
</pallas_src>

<mosaic_0001>
module attributes {stable_mosaic.version = 11 : i64} {
  func.func @_lenet_kernel(%arg0: i32, %arg1: memref<1x4x72x128xf32, #tpu.memory_space<vmem>>, %arg2: memref<640x256xf32, #tpu.memory_space<vmem>>, %arg3: memref<1x128xf32, #tpu.memory_space<vmem>>, %arg4: memref<640x256xf32, #tpu.memory_space<vmem>>, %arg5: memref<1x128xf32, #tpu.memory_space<vmem>>, %arg6: memref<640x128xf32, #tpu.memory_space<vmem>>, %arg7: memref<1x128xf32, #tpu.memory_space<vmem>>, %arg8: memref<128x128xf32, #tpu.memory_space<vmem>>, %arg9: memref<1x128xf32, #tpu.memory_space<vmem>>, %arg10: memref<128x128xf32, #tpu.memory_space<vmem>>, %arg11: memref<1x128xf32, #tpu.memory_space<vmem>>, %arg12: memref<8x128xf32, #tpu.memory_space<vmem>>) attributes {dimension_semantics = [#tpu.dimension_semantics<parallel>], iteration_bounds = array<i64: 2>, scalar_prefetch = 0 : i64, scratch_operands = 0 : i64, tpu.core_type = #tpu.core_type<tc>, window_params = [{transform_indices = @transform_0, window_bounds = array<i64: 1, 4, 72, 128>}, {pipeline_mode = #tpu.pipeline_mode<synchronous>, transform_indices = @transform_1, window_bounds = array<i64: 640, 256>}, {pipeline_mode = #tpu.pipeline_mode<synchronous>, transform_indices = @transform_2, window_bounds = array<i64: 1, 128>}, {pipeline_mode = #tpu.pipeline_mode<synchronous>, transform_indices = @transform_3, window_bounds = array<i64: 640, 256>}, {pipeline_mode = #tpu.pipeline_mode<synchronous>, transform_indices = @transform_4, window_bounds = array<i64: 1, 128>}, {pipeline_mode = #tpu.pipeline_mode<synchronous>, transform_indices = @transform_5, window_bounds = array<i64: 640, 128>}, {pipeline_mode = #tpu.pipeline_mode<synchronous>, transform_indices = @transform_6, window_bounds = array<i64: 1, 128>}, {pipeline_mode = #tpu.pipeline_mode<synchronous>, transform_indices = @transform_7, window_bounds = array<i64: 128, 128>}, {pipeline_mode = #tpu.pipeline_mode<synchronous>, transform_indices = @transform_8, window_bounds = array<i64: 1, 128>}, {pipeline_mode = #tpu.pipeline_mode<synchronous>, transform_indices = @transform_9, window_bounds = array<i64: 128, 128>}, {pipeline_mode = #tpu.pipeline_mode<synchronous>, transform_indices = @transform_10, window_bounds = array<i64: 1, 128>}, {transform_indices = @transform_11, window_bounds = array<i64: 8, 128>}]} {
    %c0 = arith.constant 0 : index
    %c0_0 = arith.constant 0 : index
    %c0_1 = arith.constant 0 : index
    %c0_2 = arith.constant 0 : index
    %0 = vector.load %arg1[%c0, %c0_0, %c0_1, %c0_2] : memref<1x4x72x128xf32, #tpu.memory_space<vmem>>, vector<1x1x64x128xf32>
    %1 = vector.shape_cast %0 : vector<1x1x64x128xf32> to vector<64x128xf32>
    %c0_3 = arith.constant 0 : index
    %c1 = arith.constant 1 : index
    %c0_4 = arith.constant 0 : index
    %c0_5 = arith.constant 0 : index
    %2 = vector.load %arg1[%c0_3, %c1, %c0_4, %c0_5] : memref<1x4x72x128xf32, #tpu.memory_space<vmem>>, vector<1x1x64x128xf32>
    %3 = vector.shape_cast %2 : vector<1x1x64x128xf32> to vector<64x128xf32>
    %c0_6 = arith.constant 0 : index
    %c2 = arith.constant 2 : index
    %c0_7 = arith.constant 0 : index
    %c0_8 = arith.constant 0 : index
    %4 = vector.load %arg1[%c0_6, %c2, %c0_7, %c0_8] : memref<1x4x72x128xf32, #tpu.memory_space<vmem>>, vector<1x1x64x128xf32>
    %5 = vector.shape_cast %4 : vector<1x1x64x128xf32> to vector<64x128xf32>
    %c0_9 = arith.constant 0 : index
    %c3 = arith.constant 3 : index
    %c0_10 = arith.constant 0 : index
    %c0_11 = arith.constant 0 : index
    %6 = vector.load %arg1[%c0_9, %c3, %c0_10, %c0_11] : memref<1x4x72x128xf32, #tpu.memory_space<vmem>>, vector<1x1x64x128xf32>
    %7 = vector.shape_cast %6 : vector<1x1x64x128xf32> to vector<64x128xf32>
    %c0_12 = arith.constant 0 : index
    %c0_13 = arith.constant 0 : index
    %c8 = arith.constant 8 : index
    %c0_14 = arith.constant 0 : index
    %8 = vector.load %arg1[%c0_12, %c0_13, %c8, %c0_14] : memref<1x4x72x128xf32, #tpu.memory_space<vmem>>, vector<1x1x64x128xf32>
    %9 = vector.shape_cast %8 : vector<1x1x64x128xf32> to vector<64x128xf32>
    %10 = tpu.concatenate %1, %3, %5, %7, %9 in 1 : vector<64x128xf32>, vector<64x128xf32>, vector<64x128xf32>, vector<64x128xf32>, vector<64x128xf32> -> vector<64x640xf32>
    %c0_15 = arith.constant 0 : index
    %c1_16 = arith.constant 1 : index
    %c0_17 = arith.constant 0 : index
    %c0_18 = arith.constant 0 : index
    %11 = vector.load %arg1[%c0_15, %c1_16, %c0_17, %c0_18] : memref<1x4x72x128xf32, #tpu.memory_space<vmem>>, vector<1x1x64x128xf32>
    %12 = vector.shape_cast %11 : vector<1x1x64x128xf32> to vector<64x128xf32>
    %c0_19 = arith.constant 0 : index
    %c2_20 = arith.constant 2 : index
    %c0_21 = arith.constant 0 : index
    %c0_22 = arith.constant 0 : index
    %13 = vector.load %arg1[%c0_19, %c2_20, %c0_21, %c0_22] : memref<1x4x72x128xf32, #tpu.memory_space<vmem>>, vector<1x1x64x128xf32>
    %14 = vector.shape_cast %13 : vector<1x1x64x128xf32> to vector<64x128xf32>
    %c0_23 = arith.constant 0 : index
    %c3_24 = arith.constant 3 : index
    %c0_25 = arith.constant 0 : index
    %c0_26 = arith.constant 0 : index
    %15 = vector.load %arg1[%c0_23, %c3_24, %c0_25, %c0_26] : memref<1x4x72x128xf32, #tpu.memory_space<vmem>>, vector<1x1x64x128xf32>
    %16 = vector.shape_cast %15 : vector<1x1x64x128xf32> to vector<64x128xf32>
    %c0_27 = arith.constant 0 : index
    %c0_28 = arith.constant 0 : index
    %c8_29 = arith.constant 8 : index
    %c0_30 = arith.constant 0 : index
    %17 = vector.load %arg1[%c0_27, %c0_28, %c8_29, %c0_30] : memref<1x4x72x128xf32, #tpu.memory_space<vmem>>, vector<1x1x64x128xf32>
    %18 = vector.shape_cast %17 : vector<1x1x64x128xf32> to vector<64x128xf32>
    %c0_31 = arith.constant 0 : index
    %c1_32 = arith.constant 1 : index
    %c8_33 = arith.constant 8 : index
    %c0_34 = arith.constant 0 : index
    %19 = vector.load %arg1[%c0_31, %c1_32, %c8_33, %c0_34] : memref<1x4x72x128xf32, #tpu.memory_space<vmem>>, vector<1x1x64x128xf32>
    %20 = vector.shape_cast %19 : vector<1x1x64x128xf32> to vector<64x128xf32>
    %21 = tpu.concatenate %12, %14, %16, %18, %20 in 1 : vector<64x128xf32>, vector<64x128xf32>, vector<64x128xf32>, vector<64x128xf32>, vector<64x128xf32> -> vector<64x640xf32>
    %c0_35 = arith.constant 0 : index
    %c2_36 = arith.constant 2 : index
    %c0_37 = arith.constant 0 : index
    %c0_38 = arith.constant 0 : index
    %22 = vector.load %arg1[%c0_35, %c2_36, %c0_37, %c0_38] : memref<1x4x72x128xf32, #tpu.memory_space<vmem>>, vector<1x1x64x128xf32>
    %23 = vector.shape_cast %22 : vector<1x1x64x128xf32> to vector<64x128xf32>
    %c0_39 = arith.constant 0 : index
    %c3_40 = arith.constant 3 : index
    %c0_41 = arith.constant 0 : index
    %c0_42 = arith.constant 0 : index
    %24 = vector.load %arg1[%c0_39, %c3_40, %c0_41, %c0_42] : memref<1x4x72x128xf32, #tpu.memory_space<vmem>>, vector<1x1x64x128xf32>
    %25 = vector.shape_cast %24 : vector<1x1x64x128xf32> to vector<64x128xf32>
    %c0_43 = arith.constant 0 : index
    %c0_44 = arith.constant 0 : index
    %c8_45 = arith.constant 8 : index
    %c0_46 = arith.constant 0 : index
    %26 = vector.load %arg1[%c0_43, %c0_44, %c8_45, %c0_46] : memref<1x4x72x128xf32, #tpu.memory_space<vmem>>, vector<1x1x64x128xf32>
    %27 = vector.shape_cast %26 : vector<1x1x64x128xf32> to vector<64x128xf32>
    %c0_47 = arith.constant 0 : index
    %c1_48 = arith.constant 1 : index
    %c8_49 = arith.constant 8 : index
    %c0_50 = arith.constant 0 : index
    %28 = vector.load %arg1[%c0_47, %c1_48, %c8_49, %c0_50] : memref<1x4x72x128xf32, #tpu.memory_space<vmem>>, vector<1x1x64x128xf32>
    %29 = vector.shape_cast %28 : vector<1x1x64x128xf32> to vector<64x128xf32>
    %c0_51 = arith.constant 0 : index
    %c2_52 = arith.constant 2 : index
    %c8_53 = arith.constant 8 : index
    %c0_54 = arith.constant 0 : index
    %30 = vector.load %arg1[%c0_51, %c2_52, %c8_53, %c0_54] : memref<1x4x72x128xf32, #tpu.memory_space<vmem>>, vector<1x1x64x128xf32>
    %31 = vector.shape_cast %30 : vector<1x1x64x128xf32> to vector<64x128xf32>
    %32 = tpu.concatenate %23, %25, %27, %29, %31 in 1 : vector<64x128xf32>, vector<64x128xf32>, vector<64x128xf32>, vector<64x128xf32>, vector<64x128xf32> -> vector<64x640xf32>
    %c0_55 = arith.constant 0 : index
    %c3_56 = arith.constant 3 : index
    %c0_57 = arith.constant 0 : index
    %c0_58 = arith.constant 0 : index
    %33 = vector.load %arg1[%c0_55, %c3_56, %c0_57, %c0_58] : memref<1x4x72x128xf32, #tpu.memory_space<vmem>>, vector<1x1x64x128xf32>
    %34 = vector.shape_cast %33 : vector<1x1x64x128xf32> to vector<64x128xf32>
    %c0_59 = arith.constant 0 : index
    %c0_60 = arith.constant 0 : index
    %c8_61 = arith.constant 8 : index
    %c0_62 = arith.constant 0 : index
    %35 = vector.load %arg1[%c0_59, %c0_60, %c8_61, %c0_62] : memref<1x4x72x128xf32, #tpu.memory_space<vmem>>, vector<1x1x64x128xf32>
    %36 = vector.shape_cast %35 : vector<1x1x64x128xf32> to vector<64x128xf32>
    %c0_63 = arith.constant 0 : index
    %c1_64 = arith.constant 1 : index
    %c8_65 = arith.constant 8 : index
    %c0_66 = arith.constant 0 : index
    %37 = vector.load %arg1[%c0_63, %c1_64, %c8_65, %c0_66] : memref<1x4x72x128xf32, #tpu.memory_space<vmem>>, vector<1x1x64x128xf32>
    %38 = vector.shape_cast %37 : vector<1x1x64x128xf32> to vector<64x128xf32>
    %c0_67 = arith.constant 0 : index
    %c2_68 = arith.constant 2 : index
    %c8_69 = arith.constant 8 : index
    %c0_70 = arith.constant 0 : index
    %39 = vector.load %arg1[%c0_67, %c2_68, %c8_69, %c0_70] : memref<1x4x72x128xf32, #tpu.memory_space<vmem>>, vector<1x1x64x128xf32>
    %40 = vector.shape_cast %39 : vector<1x1x64x128xf32> to vector<64x128xf32>
    %c0_71 = arith.constant 0 : index
    %c3_72 = arith.constant 3 : index
    %c8_73 = arith.constant 8 : index
    %c0_74 = arith.constant 0 : index
    %41 = vector.load %arg1[%c0_71, %c3_72, %c8_73, %c0_74] : memref<1x4x72x128xf32, #tpu.memory_space<vmem>>, vector<1x1x64x128xf32>
    %42 = vector.shape_cast %41 : vector<1x1x64x128xf32> to vector<64x128xf32>
    %43 = tpu.concatenate %34, %36, %38, %40, %42 in 1 : vector<64x128xf32>, vector<64x128xf32>, vector<64x128xf32>, vector<64x128xf32>, vector<64x128xf32> -> vector<64x640xf32>
    %44 = tpu.concatenate %10, %21, %32, %43 in 0 : vector<64x640xf32>, vector<64x640xf32>, vector<64x640xf32>, vector<64x640xf32> -> vector<256x640xf32>
    %c0_75 = arith.constant 0 : index
    %c0_76 = arith.constant 0 : index
    %45 = vector.load %arg2[%c0_75, %c0_76] : memref<640x256xf32, #tpu.memory_space<vmem>>, vector<640x256xf32>
    %cst = arith.constant dense<0.000000e+00> : vector<256x256xf32>
    %46 = tpu.matmul %44, %45, %cst {dimension_numbers = #tpu.dot_dimension_numbers<[1], [0], [0], [1], [0, 0, 1, 1], [], []>} : vector<256x640xf32>, vector<640x256xf32>, vector<256x256xf32> -> vector<256x256xf32>
    %47 = vector.extract_strided_slice %46 {offsets = [0, 0], sizes = [64, 256], strides = [1, 1]} : vector<256x256xf32> to vector<64x256xf32>
    %48 = vector.extract_strided_slice %46 {offsets = [64, 0], sizes = [64, 256], strides = [1, 1]} : vector<256x256xf32> to vector<64x256xf32>
    %49 = arith.maximumf %47, %48 : vector<64x256xf32>
    %50 = vector.extract_strided_slice %46 {offsets = [128, 0], sizes = [64, 256], strides = [1, 1]} : vector<256x256xf32> to vector<64x256xf32>
    %51 = vector.extract_strided_slice %46 {offsets = [192, 0], sizes = [64, 256], strides = [1, 1]} : vector<256x256xf32> to vector<64x256xf32>
    %52 = arith.maximumf %50, %51 : vector<64x256xf32>
    %53 = vector.extract_strided_slice %49 {offsets = [0, 0], sizes = [64, 128], strides = [1, 1]} : vector<64x256xf32> to vector<64x128xf32>
    %54 = vector.extract_strided_slice %49 {offsets = [0, 128], sizes = [64, 128], strides = [1, 1]} : vector<64x256xf32> to vector<64x128xf32>
    %55 = arith.maximumf %53, %54 : vector<64x128xf32>
    %c0_77 = arith.constant 0 : index
    %c0_78 = arith.constant 0 : index
    %56 = vector.load %arg3[%c0_77, %c0_78] : memref<1x128xf32, #tpu.memory_space<vmem>>, vector<1x128xf32>
    %57 = vector.broadcast %56 : vector<1x128xf32> to vector<64x128xf32>
    %58 = arith.addf %55, %57 : vector<64x128xf32>
    %cst_79 = arith.constant 0.000000e+00 : f32
    %59 = vector.broadcast %cst_79 : f32 to vector<64x128xf32>
    %60 = arith.maximumf %58, %59 : vector<64x128xf32>
    %61 = vector.extract_strided_slice %52 {offsets = [0, 0], sizes = [64, 128], strides = [1, 1]} : vector<64x256xf32> to vector<64x128xf32>
    %62 = vector.extract_strided_slice %52 {offsets = [0, 128], sizes = [64, 128], strides = [1, 1]} : vector<64x256xf32> to vector<64x128xf32>
    %63 = arith.maximumf %61, %62 : vector<64x128xf32>
    %c0_80 = arith.constant 0 : index
    %c0_81 = arith.constant 0 : index
    %64 = vector.load %arg3[%c0_80, %c0_81] : memref<1x128xf32, #tpu.memory_space<vmem>>, vector<1x128xf32>
    %65 = vector.broadcast %64 : vector<1x128xf32> to vector<64x128xf32>
    %66 = arith.addf %63, %65 : vector<64x128xf32>
    %cst_82 = arith.constant 0.000000e+00 : f32
    %67 = vector.broadcast %cst_82 : f32 to vector<64x128xf32>
    %68 = arith.maximumf %66, %67 : vector<64x128xf32>
    %cst_83 = arith.constant 0.000000e+00 : f32
    %69 = vector.broadcast %cst_83 : f32 to vector<64x128xf32>
    %70 = tpu.concatenate %60, %69 in 0 : vector<64x128xf32>, vector<64x128xf32> -> vector<128x128xf32>
    %71 = tpu.concatenate %68, %69 in 0 : vector<64x128xf32>, vector<64x128xf32> -> vector<128x128xf32>
    %72 = vector.extract_strided_slice %70 {offsets = [0, 0], sizes = [64, 128], strides = [1, 1]} : vector<128x128xf32> to vector<64x128xf32>
    %73 = vector.extract_strided_slice %71 {offsets = [0, 0], sizes = [64, 128], strides = [1, 1]} : vector<128x128xf32> to vector<64x128xf32>
    %74 = vector.extract_strided_slice %70 {offsets = [8, 0], sizes = [64, 128], strides = [1, 1]} : vector<128x128xf32> to vector<64x128xf32>
    %75 = vector.extract_strided_slice %71 {offsets = [8, 0], sizes = [64, 128], strides = [1, 1]} : vector<128x128xf32> to vector<64x128xf32>
    %76 = vector.extract_strided_slice %70 {offsets = [16, 0], sizes = [64, 128], strides = [1, 1]} : vector<128x128xf32> to vector<64x128xf32>
    %77 = tpu.concatenate %72, %73, %74, %75, %76 in 1 : vector<64x128xf32>, vector<64x128xf32>, vector<64x128xf32>, vector<64x128xf32>, vector<64x128xf32> -> vector<64x640xf32>
    %78 = vector.extract_strided_slice %71 {offsets = [0, 0], sizes = [64, 128], strides = [1, 1]} : vector<128x128xf32> to vector<64x128xf32>
    %79 = vector.extract_strided_slice %70 {offsets = [8, 0], sizes = [64, 128], strides = [1, 1]} : vector<128x128xf32> to vector<64x128xf32>
    %80 = vector.extract_strided_slice %71 {offsets = [8, 0], sizes = [64, 128], strides = [1, 1]} : vector<128x128xf32> to vector<64x128xf32>
    %81 = vector.extract_strided_slice %70 {offsets = [16, 0], sizes = [64, 128], strides = [1, 1]} : vector<128x128xf32> to vector<64x128xf32>
    %82 = vector.extract_strided_slice %71 {offsets = [16, 0], sizes = [64, 128], strides = [1, 1]} : vector<128x128xf32> to vector<64x128xf32>
    %83 = tpu.concatenate %78, %79, %80, %81, %82 in 1 : vector<64x128xf32>, vector<64x128xf32>, vector<64x128xf32>, vector<64x128xf32>, vector<64x128xf32> -> vector<64x640xf32>
    %84 = tpu.concatenate %77, %83 in 0 : vector<64x640xf32>, vector<64x640xf32> -> vector<128x640xf32>
    %c0_84 = arith.constant 0 : index
    %c0_85 = arith.constant 0 : index
    %85 = vector.load %arg4[%c0_84, %c0_85] : memref<640x256xf32, #tpu.memory_space<vmem>>, vector<640x256xf32>
    %cst_86 = arith.constant dense<0.000000e+00> : vector<128x256xf32>
    %86 = tpu.matmul %84, %85, %cst_86 {dimension_numbers = #tpu.dot_dimension_numbers<[1], [0], [0], [1], [0, 0, 1, 1], [], []>} : vector<128x640xf32>, vector<640x256xf32>, vector<128x256xf32> -> vector<128x256xf32>
    %87 = vector.extract_strided_slice %86 {offsets = [0, 0], sizes = [64, 256], strides = [1, 1]} : vector<128x256xf32> to vector<64x256xf32>
    %88 = vector.extract_strided_slice %86 {offsets = [64, 0], sizes = [64, 256], strides = [1, 1]} : vector<128x256xf32> to vector<64x256xf32>
    %89 = arith.maximumf %87, %88 : vector<64x256xf32>
    %90 = vector.extract_strided_slice %89 {offsets = [0, 0], sizes = [64, 128], strides = [1, 1]} : vector<64x256xf32> to vector<64x128xf32>
    %91 = vector.extract_strided_slice %89 {offsets = [0, 128], sizes = [64, 128], strides = [1, 1]} : vector<64x256xf32> to vector<64x128xf32>
    %92 = arith.maximumf %90, %91 : vector<64x128xf32>
    %c0_87 = arith.constant 0 : index
    %c0_88 = arith.constant 0 : index
    %93 = vector.load %arg5[%c0_87, %c0_88] : memref<1x128xf32, #tpu.memory_space<vmem>>, vector<1x128xf32>
    %94 = vector.broadcast %93 : vector<1x128xf32> to vector<64x128xf32>
    %95 = arith.addf %92, %94 : vector<64x128xf32>
    %cst_89 = arith.constant 0.000000e+00 : f32
    %96 = vector.broadcast %cst_89 : f32 to vector<64x128xf32>
    %97 = arith.maximumf %95, %96 : vector<64x128xf32>
    %98 = vector.extract_strided_slice %97 {offsets = [0, 0], sizes = [8, 128], strides = [1, 1]} : vector<64x128xf32> to vector<8x128xf32>
    %99 = vector.extract_strided_slice %97 {offsets = [8, 0], sizes = [8, 128], strides = [1, 1]} : vector<64x128xf32> to vector<8x128xf32>
    %100 = vector.extract_strided_slice %97 {offsets = [16, 0], sizes = [8, 128], strides = [1, 1]} : vector<64x128xf32> to vector<8x128xf32>
    %101 = vector.extract_strided_slice %97 {offsets = [24, 0], sizes = [8, 128], strides = [1, 1]} : vector<64x128xf32> to vector<8x128xf32>
    %102 = vector.extract_strided_slice %97 {offsets = [32, 0], sizes = [8, 128], strides = [1, 1]} : vector<64x128xf32> to vector<8x128xf32>
    %103 = tpu.concatenate %98, %99, %100, %101, %102 in 1 : vector<8x128xf32>, vector<8x128xf32>, vector<8x128xf32>, vector<8x128xf32>, vector<8x128xf32> -> vector<8x640xf32>
    %c0_90 = arith.constant 0 : index
    %c0_91 = arith.constant 0 : index
    %104 = vector.load %arg6[%c0_90, %c0_91] : memref<640x128xf32, #tpu.memory_space<vmem>>, vector<640x128xf32>
    %cst_92 = arith.constant dense<0.000000e+00> : vector<8x128xf32>
    %105 = tpu.matmul %103, %104, %cst_92 {dimension_numbers = #tpu.dot_dimension_numbers<[1], [0], [0], [1], [0, 0, 1, 1], [], []>} : vector<8x640xf32>, vector<640x128xf32>, vector<8x128xf32> -> vector<8x128xf32>
    %c0_93 = arith.constant 0 : index
    %c0_94 = arith.constant 0 : index
    %106 = vector.load %arg7[%c0_93, %c0_94] : memref<1x128xf32, #tpu.memory_space<vmem>>, vector<1x128xf32>
    %107 = vector.broadcast %106 : vector<1x128xf32> to vector<8x128xf32>
    %108 = arith.addf %105, %107 : vector<8x128xf32>
    %cst_95 = arith.constant 0.000000e+00 : f32
    %109 = vector.broadcast %cst_95 : f32 to vector<8x128xf32>
    %110 = arith.maximumf %108, %109 : vector<8x128xf32>
    %c0_96 = arith.constant 0 : index
    %c0_97 = arith.constant 0 : index
    %111 = vector.load %arg8[%c0_96, %c0_97] : memref<128x128xf32, #tpu.memory_space<vmem>>, vector<128x128xf32>
    %cst_98 = arith.constant dense<0.000000e+00> : vector<8x128xf32>
    %112 = tpu.matmul %110, %111, %cst_98 {dimension_numbers = #tpu.dot_dimension_numbers<[1], [0], [0], [1], [0, 0, 1, 1], [], []>} : vector<8x128xf32>, vector<128x128xf32>, vector<8x128xf32> -> vector<8x128xf32>
    %c0_99 = arith.constant 0 : index
    %c0_100 = arith.constant 0 : index
    %113 = vector.load %arg9[%c0_99, %c0_100] : memref<1x128xf32, #tpu.memory_space<vmem>>, vector<1x128xf32>
    %114 = vector.broadcast %113 : vector<1x128xf32> to vector<8x128xf32>
    %115 = arith.addf %112, %114 : vector<8x128xf32>
    %cst_101 = arith.constant 0.000000e+00 : f32
    %116 = vector.broadcast %cst_101 : f32 to vector<8x128xf32>
    %117 = arith.maximumf %115, %116 : vector<8x128xf32>
    %c0_102 = arith.constant 0 : index
    %c0_103 = arith.constant 0 : index
    %118 = vector.load %arg10[%c0_102, %c0_103] : memref<128x128xf32, #tpu.memory_space<vmem>>, vector<128x128xf32>
    %cst_104 = arith.constant dense<0.000000e+00> : vector<8x128xf32>
    %119 = tpu.matmul %117, %118, %cst_104 {dimension_numbers = #tpu.dot_dimension_numbers<[1], [0], [0], [1], [0, 0, 1, 1], [], []>} : vector<8x128xf32>, vector<128x128xf32>, vector<8x128xf32> -> vector<8x128xf32>
    %c0_105 = arith.constant 0 : index
    %c0_106 = arith.constant 0 : index
    %120 = vector.load %arg11[%c0_105, %c0_106] : memref<1x128xf32, #tpu.memory_space<vmem>>, vector<1x128xf32>
    %121 = vector.broadcast %120 : vector<1x128xf32> to vector<8x128xf32>
    %122 = arith.addf %119, %121 : vector<8x128xf32>
    %c0_107 = arith.constant 0 : index
    %c0_108 = arith.constant 0 : index
    %123 = vector.load %arg12[%c0_107, %c0_108] : memref<8x128xf32, #tpu.memory_space<vmem>>, vector<8x128xf32>
    tpu.vector_store %arg12[%c0_107, %c0_108], %122 {strides = array<i32>} : memref<8x128xf32, #tpu.memory_space<vmem>>, vector<8x128xf32>,
    return
  }
  func.func @transform_0(%arg0: i32) -> (i32, i32, i32, i32) {
    %c0_i32 = arith.constant 0 : i32
    %c0_i32_0 = arith.constant 0 : i32
    %c0_i32_1 = arith.constant 0 : i32
    %c0_i32_2 = arith.constant 0 : i32
    return %arg0, %c0_i32, %c0_i32_0, %c0_i32_1 : i32, i32, i32, i32
  }
  func.func @transform_1(%arg0: i32) -> (i32, i32) {
    %c0_i32 = arith.constant 0 : i32
    %c0_i32_0 = arith.constant 0 : i32
    %c0_i32_1 = arith.constant 0 : i32
    return %c0_i32, %c0_i32_0 : i32, i32
  }
  func.func @transform_2(%arg0: i32) -> (i32, i32) {
    %c0_i32 = arith.constant 0 : i32
    %c0_i32_0 = arith.constant 0 : i32
    %c0_i32_1 = arith.constant 0 : i32
    return %c0_i32, %c0_i32_0 : i32, i32
  }
  func.func @transform_3(%arg0: i32) -> (i32, i32) {
    %c0_i32 = arith.constant 0 : i32
    %c0_i32_0 = arith.constant 0 : i32
    %c0_i32_1 = arith.constant 0 : i32
    return %c0_i32, %c0_i32_0 : i32, i32
  }
  func.func @transform_4(%arg0: i32) -> (i32, i32) {
    %c0_i32 = arith.constant 0 : i32
    %c0_i32_0 = arith.constant 0 : i32
    %c0_i32_1 = arith.constant 0 : i32
    return %c0_i32, %c0_i32_0 : i32, i32
  }
  func.func @transform_5(%arg0: i32) -> (i32, i32) {
    %c0_i32 = arith.constant 0 : i32
    %c0_i32_0 = arith.constant 0 : i32
    %c0_i32_1 = arith.constant 0 : i32
    return %c0_i32, %c0_i32_0 : i32, i32
  }
  func.func @transform_6(%arg0: i32) -> (i32, i32) {
    %c0_i32 = arith.constant 0 : i32
    %c0_i32_0 = arith.constant 0 : i32
    %c0_i32_1 = arith.constant 0 : i32
    return %c0_i32, %c0_i32_0 : i32, i32
  }
  func.func @transform_7(%arg0: i32) -> (i32, i32) {
    %c0_i32 = arith.constant 0 : i32
    %c0_i32_0 = arith.constant 0 : i32
    %c0_i32_1 = arith.constant 0 : i32
    return %c0_i32, %c0_i32_0 : i32, i32
  }
  func.func @transform_8(%arg0: i32) -> (i32, i32) {
    %c0_i32 = arith.constant 0 : i32
    %c0_i32_0 = arith.constant 0 : i32
    %c0_i32_1 = arith.constant 0 : i32
    return %c0_i32, %c0_i32_0 : i32, i32
  }
  func.func @transform_9(%arg0: i32) -> (i32, i32) {
    %c0_i32 = arith.constant 0 : i32
    %c0_i32_0 = arith.constant 0 : i32
    %c0_i32_1 = arith.constant 0 : i32
    return %c0_i32, %c0_i32_0 : i32, i32
  }
  func.func @transform_10(%arg0: i32) -> (i32, i32) {
    %c0_i32 = arith.constant 0 : i32
    %c0_i32_0 = arith.constant 0 : i32
    %c0_i32_1 = arith.constant 0 : i32
    return %c0_i32, %c0_i32_0 : i32, i32
  }
  func.func @transform_11(%arg0: i32) -> (i32, i32) {
    %c0_i32 = arith.constant 0 : i32
    %c0_i32_0 = arith.constant 0 : i32
    return %arg0, %c0_i32 : i32, i32
  }
}

</mosaic_0001>

<llo_original>
// kernel: tile.18
$region0: #{tile.18}
  #allocation0 [shape = 's32[1]{0}', space=sflag, size = 0x4, scoped, tag = 'scoped memory for tile.18']
  %s0 = inlined_call_operand.vmem [shape: f32[16], index: 0, kind: input, shape index: {}]
  %s1 = inlined_call_operand.vmem [shape: f32[5,16], index: 1, kind: output, shape index: {}]
  // Predicated region
  $region2: #{tile.18} parent=0 // pred_check
    _
  $region3: #{tile.18} parent=0 // pred_check_branch
    %3 = sbr.rel (0) target = $region5
  $region4: #{tile.18} parent=0 // pred_region
    _
  $region5: #{tile.18} parent=0 // pred_fallthru
    _
  %v4 = vld [vmem:[%s0] ss:$0 sm:$0xff]
  %5 = vst [vmem:[%s1] sm:$0xff] %v4

// kernel: tile.19
$region0: #{tile.19}
  %s0 = inlined_call_operand.vmem [shape: f32[5,16], index: 0, kind: input, shape index: {}]
  %s1 = inlined_call_operand.vmem [shape: f32[80], index: 1, kind: output, shape index: {}]
  $region1: #{tile.19} parent=0
    #allocation0 [shape = 'u8[4096]{0}', space=vmem, size = 0x1000, scoped, tag = 'scoped mem for output reshape']
    %v2 = vld [vmem:[%s0] sm:$0x1]
    %vm3 = vcmask 130048
    %4 = vst.msk [vmem:[#allocation0] sm:$0x1] %vm3, %v2
    %s5 = scalar_lea.vmem %s0, 4
    %v6 = vld [vmem:[%s5] sm:$0x1]
    %7 = vrot.lane.b32.xlu0 %v6, 64
    %v8 = vpop.permute.xlu0 %7
    %vm9 = vcmask 654848
    %10 = vst.msk [vmem:[#allocation0] sm:$0x1] %vm9, %v8
    %s11 = scalar_lea.vmem %s0, 3
    %v12 = vld [vmem:[%s11] sm:$0x1]
    %13 = vrot.lane.b32.xlu0 %v12, 48
    %v14 = vpop.permute.xlu0 %13
    %vm15 = vcmask 523648
    %16 = vst.msk [vmem:[#allocation0] sm:$0x1] %vm15, %v14
    %s17 = scalar_lea.vmem %s0, 2
    %v18 = vld [vmem:[%s17] sm:$0x1]
    %19 = vrot.lane.b32.xlu0 %v18, 32
    %v20 = vpop.permute.xlu0 %19
    %vm21 = vcmask 392448
    %22 = vst.msk [vmem:[#allocation0] sm:$0x1] %vm21, %v20
    %s23 = scalar_lea.vmem %s0, 1
    %v24 = vld [vmem:[%s23] sm:$0x1]
    %25 = vrot.lane.b32.xlu0 %v24, 16
    %v26 = vpop.permute.xlu0 %25
    %vm27 = vcmask 261248
    %28 = vst.msk [vmem:[#allocation0] sm:$0x1] %vm27, %v26
    %s30 = sshllo.u32 0, 1
    %v32 = vld [vmem:[#allocation0] sm:%s30]
    %s33 = sshllo.u32 0, 1
    %34 = vst [vmem:[%s1] sm:%s33] %v32

// kernel: tile.13
$region0: #{tile.13}
  #allocation0 [shape = 's32[1]{0}', space=sflag, size = 0x4, scoped, tag = 'scoped memory for tile.13']
  %s0 = inlined_call_operand.vmem [shape: f32[6], index: 0, kind: input, shape index: {}]
  %s1 = inlined_call_operand.vmem [shape: f32[14,6], index: 1, kind: output, shape index: {}]
  // Predicated region
  $region2: #{tile.13} parent=0 // pred_check
    _
  $region3: #{tile.13} parent=0 // pred_check_branch
    %3 = sbr.rel (0) target = $region5
  $region4: #{tile.13} parent=0 // pred_region
    _
  $region5: #{tile.13} parent=0 // pred_fallthru
    _
  %v4 = vld [vmem:[%s0] ss:$0 sm:$0xff]
  %5 = vst [vmem:[%s1] sm:$0xff] %v4
  %s6 = scalar_lea.vmem %s1, 8
  %7 = vst [vmem:[%s6] sm:$0xff] %v4

// kernel: tile.14
$region0: #{tile.14}
  %s0 = inlined_call_operand.vmem [shape: f32[14,6], index: 0, kind: input, shape index: {}]
  %s1 = inlined_call_operand.vmem [shape: f32[84], index: 1, kind: output, shape index: {}]
  $region1: #{tile.14} parent=0
    #allocation0 [shape = 'u8[4096]{0}', space=vmem, size = 0x1000, scoped, tag = 'scoped mem for output reshape']
    %v2 = vld [vmem:[%s0] sm:$0x1]
    %vm3 = vcmask 48128
    %4 = vst.msk [vmem:[#allocation0] sm:$0x1] %vm3, %v2
    %s5 = scalar_lea.vmem %s0, 13
    %v6 = vld [vmem:[%s5] sm:$0x1]
    %7 = vrot.lane.b32.xlu0 %v6, 78
    %v8 = vpop.permute.xlu0 %7
    %vm9 = vcmask 687728
    %10 = vst.msk [vmem:[#allocation0] sm:$0x1] %vm9, %v8
    %s11 = scalar_lea.vmem %s0, 12
    %v12 = vld [vmem:[%s11] sm:$0x1]
    %13 = vrot.lane.b32.xlu0 %v12, 72
    %v14 = vpop.permute.xlu0 %13
    %vm15 = vcmask 638528
    %16 = vst.msk [vmem:[#allocation0] sm:$0x1] %vm15, %v14
    %s17 = scalar_lea.vmem %s0, 11
    %v18 = vld [vmem:[%s17] sm:$0x1]
    %19 = vrot.lane.b32.xlu0 %v18, 66
    %v20 = vpop.permute.xlu0 %19
    %vm21 = vcmask 589328
    %22 = vst.msk [vmem:[#allocation0] sm:$0x1] %vm21, %v20
    %s23 = scalar_lea.vmem %s0, 10
    %v24 = vld [vmem:[%s23] sm:$0x1]
    %25 = vrot.lane.b32.xlu0 %v24, 60
    %v26 = vpop.permute.xlu0 %25
    %vm27 = vcmask 540128
    %28 = vst.msk [vmem:[#allocation0] sm:$0x1] %vm27, %v26
    %s29 = scalar_lea.vmem %s0, 9
    %v30 = vld [vmem:[%s29] sm:$0x1]
    %31 = vrot.lane.b32.xlu0 %v30, 54
    %v32 = vpop.permute.xlu0 %31
    %vm33 = vcmask 490928
    %34 = vst.msk [vmem:[#allocation0] sm:$0x1] %vm33, %v32
    %s35 = scalar_lea.vmem %s0, 8
    %v36 = vld [vmem:[%s35] sm:$0x1]
    %37 = vrot.lane.b32.xlu0 %v36, 48
    %v38 = vpop.permute.xlu0 %37
    %vm39 = vcmask 441728
    %40 = vst.msk [vmem:[#allocation0] sm:$0x1] %vm39, %v38
    %s41 = scalar_lea.vmem %s0, 7
    %v42 = vld [vmem:[%s41] sm:$0x1]
    %43 = vrot.lane.b32.xlu0 %v42, 42
    %v44 = vpop.permute.xlu0 %43
    %vm45 = vcmask 392528
    %46 = vst.msk [vmem:[#allocation0] sm:$0x1] %vm45, %v44
    %s47 = scalar_lea.vmem %s0, 6
    %v48 = vld [vmem:[%s47] sm:$0x1]
    %49 = vrot.lane.b32.xlu0 %v48, 36
    %v50 = vpop.permute.xlu0 %49
    %vm51 = vcmask 343328
    %52 = vst.msk [vmem:[#allocation0] sm:$0x1] %vm51, %v50
    %s53 = scalar_lea.vmem %s0, 5
    %v54 = vld [vmem:[%s53] sm:$0x1]
    %55 = vrot.lane.b32.xlu0 %v54, 30
    %v56 = vpop.permute.xlu0 %55
    %vm57 = vcmask 294128
    %58 = vst.msk [vmem:[#allocation0] sm:$0x1] %vm57, %v56
    %s59 = scalar_lea.vmem %s0, 4
    %v60 = vld [vmem:[%s59] sm:$0x1]
    %61 = vrot.lane.b32.xlu0 %v60, 24
    %v62 = vpop.permute.xlu0 %61
    %vm63 = vcmask 244928
    %64 = vst.msk [vmem:[#allocation0] sm:$0x1] %vm63, %v62
    %s65 = scalar_lea.vmem %s0, 3
    %v66 = vld [vmem:[%s65] sm:$0x1]
    %67 = vrot.lane.b32.xlu0 %v66, 18
    %v68 = vpop.permute.xlu0 %67
    %vm69 = vcmask 195728
    %70 = vst.msk [vmem:[#allocation0] sm:$0x1] %vm69, %v68
    %s71 = scalar_lea.vmem %s0, 2
    %v72 = vld [vmem:[%s71] sm:$0x1]
    %73 = vrot.lane.b32.xlu0 %v72, 12
    %v74 = vpop.permute.xlu0 %73
    %vm75 = vcmask 146528
    %76 = vst.msk [vmem:[#allocation0] sm:$0x1] %vm75, %v74
    %s77 = scalar_lea.vmem %s0, 1
    %v78 = vld [vmem:[%s77] sm:$0x1]
    %79 = vrot.lane.b32.xlu0 %v78, 6
    %v80 = vpop.permute.xlu0 %79
    %vm81 = vcmask 97328
    %82 = vst.msk [vmem:[#allocation0] sm:$0x1] %vm81, %v80
    %s84 = sshllo.u32 0, 1
    %v86 = vld [vmem:[#allocation0] sm:%s84]
    %s87 = sshllo.u32 0, 1
    %88 = vst [vmem:[%s1] sm:%s87] %v86

// kernel: net_forward.1
$region0: #{net_forward.1}
  #allocation0 [shape = 'u32[]', space=smem, size = 0x4, offset = 0x4, fixed_abs, tag = 'smem constant byte address 0x4 - core index']
  #allocation1 [shape = 'u32[144,128]{1,0:T(1,128)}', space=vmem, size = 0x12000, scoped, tag = 'internal scratch']
  %s0 = inlined_call_operand.vmem [shape: f32[2,4,72,128], index: 0, kind: input, shape index: {}]
  %s1 = inlined_call_operand.vmem [shape: f32[640,256], index: 1, kind: input, shape index: {}]
  %s2 = inlined_call_operand.vmem [shape: f32[1,128], index: 2, kind: input, shape index: {}]
  %s3 = inlined_call_operand.vmem [shape: f32[640,256], index: 3, kind: input, shape index: {}]
  %s4 = inlined_call_operand.vmem [shape: f32[1,128], index: 4, kind: input, shape index: {}]
  %s5 = inlined_call_operand.vmem [shape: f32[640,128], index: 5, kind: input, shape index: {}]
  %s6 = inlined_call_operand.vmem [shape: f32[1,128], index: 6, kind: input, shape index: {}]
  %s7 = inlined_call_operand.vmem [shape: f32[128,128], index: 7, kind: input, shape index: {}]
  %s8 = inlined_call_operand.vmem [shape: f32[1,128], index: 8, kind: input, shape index: {}]
  %s9 = inlined_call_operand.vmem [shape: f32[128,128], index: 9, kind: input, shape index: {}]
  %s10 = inlined_call_operand.vmem [shape: f32[1,128], index: 10, kind: input, shape index: {}]
  %s11 = inlined_call_operand.vmem [shape: f32[16,128], index: 11, kind: output, shape index: {}]
  %s12 = sld [smem:[#allocation0]]
  $region77: #{net_forward.1} parent=0
    _
  %s14 = ssub.s32 1, %s12
  %s15 = scalar_select 0, %s14, %s12
  loop: start=0, step=1, limit=4
  $region2: #{net_forward.1} parent=0 // loop_pre_header
    _
  $region3: #{net_forward.1} parent=0 // loop_header
    %s17 = sphi 0, %s21
    %p18 = scmp.ge.s32.totalorder %s17, 4
    %s27 = sphi 0, %s29
    %s30 = sphi 0, %s27
    %s31 = sphi 0, %s30
    %s47 = sphi 0, %s31
    %s51 = sphi 0, %s51
    %s53 = sphi 0, %s51
    %s54 = sphi 0, %s53
    %s68 = sphi 0, %s54
    %s72 = sphi 0, %s72
    %s74 = sphi 0, %s72
    %s75 = sphi 0, %s74
    %s89 = sphi 0, %s75
    %s93 = sphi 0, %s93
    %s95 = sphi 0, %s93
    %s96 = sphi 0, %s95
    %s110 = sphi 0, %s96
    %s114 = sphi 0, %s114
    %s116 = sphi 0, %s114
    %s117 = sphi 0, %s116
    %s131 = sphi 0, %s117
    %s135 = sphi 0, %s135
    %s137 = sphi 0, %s135
    %s138 = sphi 0, %s137
    %s152 = sphi 0, %s138
    %s156 = sphi 0, %s156
    %s158 = sphi 0, %s156
    %s159 = sphi 0, %s158
    %s173 = sphi 0, %s159
    %s177 = sphi 0, %s177
    %s179 = sphi 0, %s177
    %s180 = sphi 0, %s179
    %s194 = sphi 0, %s180
    %s198 = sphi 0, %s198
    %s200 = sphi 0, %s198
    %s201 = sphi 0, %s200
    %s215 = sphi 0, %s201
    %s219 = sphi 0, %s219
    %s221 = sphi 0, %s219
    %s222 = sphi 0, %s221
    %s236 = sphi 0, %s222
    %s240 = sphi 0, %s240
    %s242 = sphi 0, %s240
    %s243 = sphi 0, %s242
    %s257 = sphi 0, %s243
    %s263 = sphi 0, %s265
    %s266 = sphi 0, %s263
    %s267 = sphi 0, %s266
    %s283 = sphi 0, %s267
  $region4: #{net_forward.1} parent=0 // loop_header_branch
    %20 = sbr.rel (%p18) target = $region8
  $region5: #{net_forward.1} parent=0 // loop_body
    %s22 = ssub.s32 %s17, 1
    %s23 = ssub.s32 %s17, 2
    %s24 = sadd.s32 %s17, 1
    %s25 = ssub.s32 %s17, %s24
    %p26 = scmp.eq.s32.totalorder %s25, 0
    %s28 = sadd.s32 %s27, 1
    %s29 = scalar_select %p26, %s27, %s28
    %p32 = pneg %p26
    %p33 = scmp.eq.s32.totalorder %s17, 1
    %p34 = por %p32, %p33
    %p35 = scmp.ne.s32.totalorder %s27, %s30
    %p36 = scmp.eq.s32.totalorder %s17, 0
    %p37 = por %p35, %p36
    %p38 = scmp.ne.s32.totalorder %s27, %s30
    %p39 = scmp.eq.s32.totalorder %s22, 1
    %p40 = por %p38, %p39
    %p41 = scmp.ne.s32.totalorder %s30, %s31
    %p42 = scmp.eq.s32.totalorder %s22, 0
    %p43 = por %p41, %p42
    %p44 = scmp.ne.s32.totalorder %s30, %s31
    %p45 = scmp.eq.s32.totalorder %s23, 1
    %p46 = por %p44, %p45
    %p48 = scmp.ne.s32.totalorder %s31, %s47
    %p49 = scmp.eq.s32.totalorder %s23, 0
    %p50 = por %p48, %p49
    %s52 = sadd.s32 %s51, 1
    %p55 = scmp.eq.s32.totalorder %s17, 1
    %p56 = scmp.ne.s32.totalorder %s51, %s53
    %p57 = scmp.eq.s32.totalorder %s17, 0
    %p58 = por %p56, %p57
    %p59 = scmp.ne.s32.totalorder %s51, %s53
    %p60 = scmp.eq.s32.totalorder %s22, 1
    %p61 = por %p59, %p60
    %p62 = scmp.ne.s32.totalorder %s53, %s54
    %p63 = scmp.eq.s32.totalorder %s22, 0
    %p64 = por %p62, %p63
    %p65 = scmp.ne.s32.totalorder %s53, %s54
    %p66 = scmp.eq.s32.totalorder %s23, 1
    %p67 = por %p65, %p66
    %p69 = scmp.ne.s32.totalorder %s54, %s68
    %p70 = scmp.eq.s32.totalorder %s23, 0
    %p71 = por %p69, %p70
    %s73 = sadd.s32 %s72, 1
    %p76 = scmp.eq.s32.totalorder %s17, 1
    %p77 = scmp.ne.s32.totalorder %s72, %s74
    %p78 = scmp.eq.s32.totalorder %s17, 0
    %p79 = por %p77, %p78
    %p80 = scmp.ne.s32.totalorder %s72, %s74
    %p81 = scmp.eq.s32.totalorder %s22, 1
    %p82 = por %p80, %p81
    %p83 = scmp.ne.s32.totalorder %s74, %s75
    %p84 = scmp.eq.s32.totalorder %s22, 0
    %p85 = por %p83, %p84
    %p86 = scmp.ne.s32.totalorder %s74, %s75
    %p87 = scmp.eq.s32.totalorder %s23, 1
    %p88 = por %p86, %p87
    %p90 = scmp.ne.s32.totalorder %s75, %s89
    %p91 = scmp.eq.s32.totalorder %s23, 0
    %p92 = por %p90, %p91
    %s94 = sadd.s32 %s93, 1
    %p97 = scmp.eq.s32.totalorder %s17, 1
    %p98 = scmp.ne.s32.totalorder %s93, %s95
    %p99 = scmp.eq.s32.totalorder %s17, 0
    %p100 = por %p98, %p99
    %p101 = scmp.ne.s32.totalorder %s93, %s95
    %p102 = scmp.eq.s32.totalorder %s22, 1
    %p103 = por %p101, %p102
    %p104 = scmp.ne.s32.totalorder %s95, %s96
    %p105 = scmp.eq.s32.totalorder %s22, 0
    %p106 = por %p104, %p105
    %p107 = scmp.ne.s32.totalorder %s95, %s96
    %p108 = scmp.eq.s32.totalorder %s23, 1
    %p109 = por %p107, %p108
    %p111 = scmp.ne.s32.totalorder %s96, %s110
    %p112 = scmp.eq.s32.totalorder %s23, 0
    %p113 = por %p111, %p112
    %s115 = sadd.s32 %s114, 1
    %p118 = scmp.eq.s32.totalorder %s17, 1
    %p119 = scmp.ne.s32.totalorder %s114, %s116
    %p120 = scmp.eq.s32.totalorder %s17, 0
    %p121 = por %p119, %p120
    %p122 = scmp.ne.s32.totalorder %s114, %s116
    %p123 = scmp.eq.s32.totalorder %s22, 1
    %p124 = por %p122, %p123
    %p125 = scmp.ne.s32.totalorder %s116, %s117
    %p126 = scmp.eq.s32.totalorder %s22, 0
    %p127 = por %p125, %p126
    %p128 = scmp.ne.s32.totalorder %s116, %s117
    %p129 = scmp.eq.s32.totalorder %s23, 1
    %p130 = por %p128, %p129
    %p132 = scmp.ne.s32.totalorder %s117, %s131
    %p133 = scmp.eq.s32.totalorder %s23, 0
    %p134 = por %p132, %p133
    %s136 = sadd.s32 %s135, 1
    %p139 = scmp.eq.s32.totalorder %s17, 1
    %p140 = scmp.ne.s32.totalorder %s135, %s137
    %p141 = scmp.eq.s32.totalorder %s17, 0
    %p142 = por %p140, %p141
    %p143 = scmp.ne.s32.totalorder %s135, %s137
    %p144 = scmp.eq.s32.totalorder %s22, 1
    %p145 = por %p143, %p144
    %p146 = scmp.ne.s32.totalorder %s137, %s138
    %p147 = scmp.eq.s32.totalorder %s22, 0
    %p148 = por %p146, %p147
    %p149 = scmp.ne.s32.totalorder %s137, %s138
    %p150 = scmp.eq.s32.totalorder %s23, 1
    %p151 = por %p149, %p150
    %p153 = scmp.ne.s32.totalorder %s138, %s152
    %p154 = scmp.eq.s32.totalorder %s23, 0
    %p155 = por %p153, %p154
    %s157 = sadd.s32 %s156, 1
    %p160 = scmp.eq.s32.totalorder %s17, 1
    %p161 = scmp.ne.s32.totalorder %s156, %s158
    %p162 = scmp.eq.s32.totalorder %s17, 0
    %p163 = por %p161, %p162
    %p164 = scmp.ne.s32.totalorder %s156, %s158
    %p165 = scmp.eq.s32.totalorder %s22, 1
    %p166 = por %p164, %p165
    %p167 = scmp.ne.s32.totalorder %s158, %s159
    %p168 = scmp.eq.s32.totalorder %s22, 0
    %p169 = por %p167, %p168
    %p170 = scmp.ne.s32.totalorder %s158, %s159
    %p171 = scmp.eq.s32.totalorder %s23, 1
    %p172 = por %p170, %p171
    %p174 = scmp.ne.s32.totalorder %s159, %s173
    %p175 = scmp.eq.s32.totalorder %s23, 0
    %p176 = por %p174, %p175
    %s178 = sadd.s32 %s177, 1
    %p181 = scmp.eq.s32.totalorder %s17, 1
    %p182 = scmp.ne.s32.totalorder %s177, %s179
    %p183 = scmp.eq.s32.totalorder %s17, 0
    %p184 = por %p182, %p183
    %p185 = scmp.ne.s32.totalorder %s177, %s179
    %p186 = scmp.eq.s32.totalorder %s22, 1
    %p187 = por %p185, %p186
    %p188 = scmp.ne.s32.totalorder %s179, %s180
    %p189 = scmp.eq.s32.totalorder %s22, 0
    %p190 = por %p188, %p189
    %p191 = scmp.ne.s32.totalorder %s179, %s180
    %p192 = scmp.eq.s32.totalorder %s23, 1
    %p193 = por %p191, %p192
    %p195 = scmp.ne.s32.totalorder %s180, %s194
    %p196 = scmp.eq.s32.totalorder %s23, 0
    %p197 = por %p195, %p196
    %s199 = sadd.s32 %s198, 1
    %p202 = scmp.eq.s32.totalorder %s17, 1
    %p203 = scmp.ne.s32.totalorder %s198, %s200
    %p204 = scmp.eq.s32.totalorder %s17, 0
    %p205 = por %p203, %p204
    %p206 = scmp.ne.s32.totalorder %s198, %s200
    %p207 = scmp.eq.s32.totalorder %s22, 1
    %p208 = por %p206, %p207
    %p209 = scmp.ne.s32.totalorder %s200, %s201
    %p210 = scmp.eq.s32.totalorder %s22, 0
    %p211 = por %p209, %p210
    %p212 = scmp.ne.s32.totalorder %s200, %s201
    %p213 = scmp.eq.s32.totalorder %s23, 1
    %p214 = por %p212, %p213
    %p216 = scmp.ne.s32.totalorder %s201, %s215
    %p217 = scmp.eq.s32.totalorder %s23, 0
    %p218 = por %p216, %p217
    %s220 = sadd.s32 %s219, 1
    %p223 = scmp.eq.s32.totalorder %s17, 1
    %p224 = scmp.ne.s32.totalorder %s219, %s221
    %p225 = scmp.eq.s32.totalorder %s17, 0
    %p226 = por %p224, %p225
    %p227 = scmp.ne.s32.totalorder %s219, %s221
    %p228 = scmp.eq.s32.totalorder %s22, 1
    %p229 = por %p227, %p228
    %p230 = scmp.ne.s32.totalorder %s221, %s222
    %p231 = scmp.eq.s32.totalorder %s22, 0
    %p232 = por %p230, %p231
    %p233 = scmp.ne.s32.totalorder %s221, %s222
    %p234 = scmp.eq.s32.totalorder %s23, 1
    %p235 = por %p233, %p234
    %p237 = scmp.ne.s32.totalorder %s222, %s236
    %p238 = scmp.eq.s32.totalorder %s23, 0
    %p239 = por %p237, %p238
    %s241 = sadd.s32 %s240, 1
    %p244 = scmp.eq.s32.totalorder %s17, 1
    %p245 = scmp.ne.s32.totalorder %s240, %s242
    %p246 = scmp.eq.s32.totalorder %s17, 0
    %p247 = por %p245, %p246
    %p248 = scmp.ne.s32.totalorder %s240, %s242
    %p249 = scmp.eq.s32.totalorder %s22, 1
    %p250 = por %p248, %p249
    %p251 = scmp.ne.s32.totalorder %s242, %s243
    %p252 = scmp.eq.s32.totalorder %s22, 0
    %p253 = por %p251, %p252
    %p254 = scmp.ne.s32.totalorder %s242, %s243
    %p255 = scmp.eq.s32.totalorder %s23, 1
    %p256 = por %p254, %p255
    %p258 = scmp.ne.s32.totalorder %s243, %s257
    %p259 = scmp.eq.s32.totalorder %s23, 0
    %p260 = por %p258, %p259
    %s261 = ssub.s32 %s17, %s24
    %p262 = scmp.eq.s32.totalorder %s261, 0
    %s264 = sadd.s32 %s263, 1
    %s265 = scalar_select %p262, %s263, %s264
    %p268 = pneg %p262
    %p269 = scmp.eq.s32.totalorder %s17, 1
    %p270 = por %p268, %p269
    %p271 = scmp.ne.s32.totalorder %s263, %s266
    %p272 = scmp.eq.s32.totalorder %s17, 0
    %p273 = por %p271, %p272
    %p274 = scmp.ne.s32.totalorder %s263, %s266
    %p275 = scmp.eq.s32.totalorder %s22, 1
    %p276 = por %p274, %p275
    %p277 = scmp.ne.s32.totalorder %s266, %s267
    %p278 = scmp.eq.s32.totalorder %s22, 0
    %p279 = por %p277, %p278
    %p280 = scmp.ne.s32.totalorder %s266, %s267
    %p281 = scmp.eq.s32.totalorder %s23, 1
    %p282 = por %p280, %p281
    %p284 = scmp.ne.s32.totalorder %s267, %s283
    %p285 = scmp.eq.s32.totalorder %s23, 0
    %p286 = por %p284, %p285
    %p287 = scmp.le.s32.totalorder 1, %s17
    %p288 = scmp.lt.s32.totalorder %s17, 3
    %p289 = pnand %p287, %p288
    %p290 = pneg %p289
    // Predicated region
    $region9: #{net_forward.1} parent=5 // pred_check
      _
    $region10: #{net_forward.1} parent=5 // pred_check_branch
      %292 = sbr.rel (%p289) target = $region12
    $region11: #{net_forward.1} parent=5 // pred_region
      %s293 = ssub.s32 %s17, 1
      // Predicated region
      $region13: #{net_forward.1} parent=11 // pred_check
        %p294 = pneg %p64
      $region14: #{net_forward.1} parent=11 // pred_check_branch
        %296 = sbr.rel (%p294) target = $region16
      $region15: #{net_forward.1} parent=11 // pred_region
        _
      $region16: #{net_forward.1} parent=11 // pred_fallthru
        _
      // Predicated region
      $region17: #{net_forward.1} parent=11 // pred_check
        %p297 = pneg %p85
      $region18: #{net_forward.1} parent=11 // pred_check_branch
        %299 = sbr.rel (%p297) target = $region20
      $region19: #{net_forward.1} parent=11 // pred_region
        _
      $region20: #{net_forward.1} parent=11 // pred_fallthru
        _
      // Predicated region
      $region21: #{net_forward.1} parent=11 // pred_check
        %p300 = pneg %p106
      $region22: #{net_forward.1} parent=11 // pred_check_branch
        %302 = sbr.rel (%p300) target = $region24
      $region23: #{net_forward.1} parent=11 // pred_region
        _
      $region24: #{net_forward.1} parent=11 // pred_fallthru
        _
      // Predicated region
      $region25: #{net_forward.1} parent=11 // pred_check
        %p303 = pneg %p127
      $region26: #{net_forward.1} parent=11 // pred_check_branch
        %305 = sbr.rel (%p303) target = $region28
      $region27: #{net_forward.1} parent=11 // pred_region
        _
      $region28: #{net_forward.1} parent=11 // pred_fallthru
        _
      // Predicated region
      $region29: #{net_forward.1} parent=11 // pred_check
        %p306 = pneg %p148
      $region30: #{net_forward.1} parent=11 // pred_check_branch
        %308 = sbr.rel (%p306) target = $region32
      $region31: #{net_forward.1} parent=11 // pred_region
        _
      $region32: #{net_forward.1} parent=11 // pred_fallthru
        _
      // Predicated region
      $region33: #{net_forward.1} parent=11 // pred_check
        %p309 = pneg %p169
      $region34: #{net_forward.1} parent=11 // pred_check_branch
        %311 = sbr.rel (%p309) target = $region36
      $region35: #{net_forward.1} parent=11 // pred_region
        _
      $region36: #{net_forward.1} parent=11 // pred_fallthru
        _
      // Predicated region
      $region37: #{net_forward.1} parent=11 // pred_check
        %p312 = pneg %p190
      $region38: #{net_forward.1} parent=11 // pred_check_branch
        %314 = sbr.rel (%p312) target = $region40
      $region39: #{net_forward.1} parent=11 // pred_region
        _
      $region40: #{net_forward.1} parent=11 // pred_fallthru
        _
      // Predicated region
      $region41: #{net_forward.1} parent=11 // pred_check
        %p315 = pneg %p211
      $region42: #{net_forward.1} parent=11 // pred_check_branch
        %317 = sbr.rel (%p315) target = $region44
      $region43: #{net_forward.1} parent=11 // pred_region
        _
      $region44: #{net_forward.1} parent=11 // pred_fallthru
        _
      // Predicated region
      $region45: #{net_forward.1} parent=11 // pred_check
        %p318 = pneg %p232
      $region46: #{net_forward.1} parent=11 // pred_check_branch
        %320 = sbr.rel (%p318) target = $region48
      $region47: #{net_forward.1} parent=11 // pred_region
        _
      $region48: #{net_forward.1} parent=11 // pred_fallthru
        _
      // Predicated region
      $region49: #{net_forward.1} parent=11 // pred_check
        %p321 = pneg %p253
      $region50: #{net_forward.1} parent=11 // pred_check_branch
        %323 = sbr.rel (%p321) target = $region52
      $region51: #{net_forward.1} parent=11 // pred_region
        _
      $region52: #{net_forward.1} parent=11 // pred_fallthru
        _
    $region12: #{net_forward.1} parent=5 // pred_fallthru
      _
    %p324 = scmp.lt.s32.totalorder %s17, 2
    // Predicated region
    $region53: #{net_forward.1} parent=5 // pred_check
      %p325 = pneg %p324
    $region54: #{net_forward.1} parent=5 // pred_check_branch
      %327 = sbr.rel (%p325) target = $region56
    $region55: #{net_forward.1} parent=5 // pred_region
      // Predicated region
      $region57: #{net_forward.1} parent=55 // pred_check
        %p328 = pneg %p37
      $region58: #{net_forward.1} parent=55 // pred_check_branch
        %330 = sbr.rel (%p328) target = $region60
      $region59: #{net_forward.1} parent=55 // pred_region
        %p331 = scmp.lt.s32.totalorder %s17, 1
        %s332 = scalar_select %p331, %s17, 1
        %s333 = smul.addr %s332, 36
        %s334 = smul.addr %s333, 8
        %s335 = scalar_lea.vmem %s0, %s334
      $region60: #{net_forward.1} parent=55 // pred_fallthru
        _
    $region56: #{net_forward.1} parent=5 // pred_fallthru
      _
    %p336 = scmp.le.s32.totalorder 1, %s17
    %p337 = scmp.lt.s32.totalorder %s17, 3
    %p338 = pnand %p336, %p337
    %p339 = pneg %p338
    // Predicated region
    $region61: #{net_forward.1} parent=5 // pred_check
      _
    $region62: #{net_forward.1} parent=5 // pred_check_branch
      %341 = sbr.rel (%p338) target = $region64
    $region63: #{net_forward.1} parent=5 // pred_region
      %s342 = ssub.s32 %s17, 1
      %p343 = scmp.lt.s32.totalorder %s22, 1
      %s344 = scalar_select %p343, %s22, 1
      %s345 = smul.addr %s344, 36
      %s346 = smul.addr %s345, 8
      %s347 = scalar_lea.vmem %s0, %s346
      %p348 = pneg %p43
      %p349 = pneg %p40
      %p350 = pneg %p64
      %p351 = pneg %p61
      %p352 = pneg %p85
      %p353 = pneg %p82
      %p354 = pneg %p106
      %p355 = pneg %p103
      %p356 = pneg %p127
      %p357 = pneg %p124
      %p358 = pneg %p148
      %p359 = pneg %p145
      %p360 = pneg %p169
      %p361 = pneg %p166
      %p362 = pneg %p190
      %p363 = pneg %p187
      %p364 = pneg %p211
      %p365 = pneg %p208
      %p366 = pneg %p232
      %p367 = pneg %p229
      %p368 = pneg %p253
      %p369 = pneg %p250
      %p370 = pneg %p279
      %p371 = pneg %p276
      %p372 = scmp.lt.s32.totalorder %s22, 1
      %s373 = scalar_select %p372, %s22, 1
      %s374 = smul.addr %s373, 8
      %s375 = scalar_lea.vmem %s11, %s374
      %p376 = scmp.lt.s32.totalorder %s22, 1
      %s377 = scalar_select %p376, %s22, 1
      %s378 = smul.addr %s377, 36
      %s379 = smul.addr %s378, 8
      %s380 = scalar_lea.vmem %s0, %s379
      %p381 = scmp.lt.s32.totalorder %s22, 1
      %s382 = scalar_select %p381, %s22, 1
      %s383 = smul.addr %s382, 8
      %s384 = scalar_lea.vmem %s11, %s383
      %v385 = vld [vmem:[%s380] sm:$0xff]
      %v386 = vld [vmem:[%s380 + $0x8] sm:$0xff]
      %v387 = vld [vmem:[%s380 + $0x10] sm:$0xff]
      %v388 = vld [vmem:[%s380 + $0x18] sm:$0xff]
      %v389 = vld [vmem:[%s380 + $0x20] sm:$0xff]
      %v390 = vld [vmem:[%s380 + $0x28] sm:$0xff]
      %v391 = vld [vmem:[%s380 + $0x30] sm:$0xff]
      %v392 = vld [vmem:[%s380 + $0x38] sm:$0xff]
      %s393 = scalar_lea.vmem %s380, 72
      %v394 = vld [vmem:[%s393] sm:$0xff]
      %v395 = vld [vmem:[%s393 + $0x8] sm:$0xff]
      %v396 = vld [vmem:[%s393 + $0x10] sm:$0xff]
      %v397 = vld [vmem:[%s393 + $0x18] sm:$0xff]
      %v398 = vld [vmem:[%s393 + $0x20] sm:$0xff]
      %v399 = vld [vmem:[%s393 + $0x28] sm:$0xff]
      %v400 = vld [vmem:[%s393 + $0x30] sm:$0xff]
      %v401 = vld [vmem:[%s393 + $0x38] sm:$0xff]
      %s402 = scalar_lea.vmem %s380, 144
      %v403 = vld [vmem:[%s402] sm:$0xff]
      %v404 = vld [vmem:[%s402 + $0x8] sm:$0xff]
      %v405 = vld [vmem:[%s402 + $0x10] sm:$0xff]
      %v406 = vld [vmem:[%s402 + $0x18] sm:$0xff]
      %v407 = vld [vmem:[%s402 + $0x20] sm:$0xff]
      %v408 = vld [vmem:[%s402 + $0x28] sm:$0xff]
      %v409 = vld [vmem:[%s402 + $0x30] sm:$0xff]
      %v410 = vld [vmem:[%s402 + $0x38] sm:$0xff]
      %s411 = scalar_lea.vmem %s380, 216
      %v412 = vld [vmem:[%s411] sm:$0xff]
      %v413 = vld [vmem:[%s411 + $0x8] sm:$0xff]
      %v414 = vld [vmem:[%s411 + $0x10] sm:$0xff]
      %v415 = vld [vmem:[%s411 + $0x18] sm:$0xff]
      %v416 = vld [vmem:[%s411 + $0x20] sm:$0xff]
      %v417 = vld [vmem:[%s411 + $0x28] sm:$0xff]
      %v418 = vld [vmem:[%s411 + $0x30] sm:$0xff]
      %v419 = vld [vmem:[%s411 + $0x38] sm:$0xff]
      %v420 = vld [vmem:[%s380 + $0x40] sm:$0xff]
      %v421 = vld [vmem:[%s393 + $0x40] sm:$0xff]
      %v422 = vld [vmem:[%s402 + $0x40] sm:$0xff]
      %v423 = vld [vmem:[%s411 + $0x40] sm:$0xff]
      %v424 = vld [vmem:[%s1] sm:$0xff]
      %v425 = vld [vmem:[%s1 + $0x8] sm:$0xff]
      %v426 = vld [vmem:[%s1 + $0x10] sm:$0xff]
      %v427 = vld [vmem:[%s1 + $0x18] sm:$0xff]
      %v428 = vld [vmem:[%s1 + $0x20] sm:$0xff]
      %v429 = vld [vmem:[%s1 + $0x28] sm:$0xff]
      %v430 = vld [vmem:[%s1 + $0x30] sm:$0xff]
      %v431 = vld [vmem:[%s1 + $0x38] sm:$0xff]
      %v432 = vld [vmem:[%s1 + $0x40] sm:$0xff]
      %v433 = vld [vmem:[%s1 + $0x48] sm:$0xff]
      %v434 = vld [vmem:[%s1 + $0x50] sm:$0xff]
      %v435 = vld [vmem:[%s1 + $0x58] sm:$0xff]
      %v436 = vld [vmem:[%s1 + $0x60] sm:$0xff]
      %v437 = vld [vmem:[%s1 + $0x68] sm:$0xff]
      %v438 = vld [vmem:[%s1 + $0x70] sm:$0xff]
      %v439 = vld [vmem:[%s1 + $0x78] sm:$0xff]
      %v440 = vld [vmem:[%s1 + $0x80] sm:$0xff]
      %v441 = vld [vmem:[%s1 + $0x88] sm:$0xff]
      %v442 = vld [vmem:[%s1 + $0x90] sm:$0xff]
      %v443 = vld [vmem:[%s1 + $0x98] sm:$0xff]
      %v444 = vld [vmem:[%s1 + $0xa0] sm:$0xff]
      %v445 = vld [vmem:[%s1 + $0xa8] sm:$0xff]
      %v446 = vld [vmem:[%s1 + $0xb0] sm:$0xff]
      %v447 = vld [vmem:[%s1 + $0xb8] sm:$0xff]
      %v448 = vld [vmem:[%s1 + $0xc0] sm:$0xff]
      %v449 = vld [vmem:[%s1 + $0xc8] sm:$0xff]
      %v450 = vld [vmem:[%s1 + $0xd0] sm:$0xff]
      %v451 = vld [vmem:[%s1 + $0xd8] sm:$0xff]
      %v452 = vld [vmem:[%s1 + $0xe0] sm:$0xff]
      %v453 = vld [vmem:[%s1 + $0xe8] sm:$0xff]
      %v454 = vld [vmem:[%s1 + $0xf0] sm:$0xff]
      %v455 = vld [vmem:[%s1 + $0xf8] sm:$0xff]
      %v456 = vld [vmem:[%s1 + $0x100] sm:$0xff]
      %v457 = vld [vmem:[%s1 + $0x108] sm:$0xff]
      %v458 = vld [vmem:[%s1 + $0x110] sm:$0xff]
      %v459 = vld [vmem:[%s1 + $0x118] sm:$0xff]
      %v460 = vld [vmem:[%s1 + $0x120] sm:$0xff]
      %v461 = vld [vmem:[%s1 + $0x128] sm:$0xff]
      %v462 = vld [vmem:[%s1 + $0x130] sm:$0xff]
      %v463 = vld [vmem:[%s1 + $0x138] sm:$0xff]
      %v464 = vld [vmem:[%s1 + $0x140] sm:$0xff]
      %v465 = vld [vmem:[%s1 + $0x148] sm:$0xff]
      %v466 = vld [vmem:[%s1 + $0x150] sm:$0xff]
      %v467 = vld [vmem:[%s1 + $0x158] sm:$0xff]
      %v468 = vld [vmem:[%s1 + $0x160] sm:$0xff]
      %v469 = vld [vmem:[%s1 + $0x168] sm:$0xff]
      %v470 = vld [vmem:[%s1 + $0x170] sm:$0xff]
      %v471 = vld [vmem:[%s1 + $0x178] sm:$0xff]
      %v472 = vld [vmem:[%s1 + $0x180] sm:$0xff]
      %v473 = vld [vmem:[%s1 + $0x188] sm:$0xff]
      %v474 = vld [vmem:[%s1 + $0x190] sm:$0xff]
      %v475 = vld [vmem:[%s1 + $0x198] sm:$0xff]
      %v476 = vld [vmem:[%s1 + $0x1a0] sm:$0xff]
      %v477 = vld [vmem:[%s1 + $0x1a8] sm:$0xff]
      %v478 = vld [vmem:[%s1 + $0x1b0] sm:$0xff]
      %v479 = vld [vmem:[%s1 + $0x1b8] sm:$0xff]
      %v480 = vld [vmem:[%s1 + $0x1c0] sm:$0xff]
      %v481 = vld [vmem:[%s1 + $0x1c8] sm:$0xff]
      %v482 = vld [vmem:[%s1 + $0x1d0] sm:$0xff]
      %v483 = vld [vmem:[%s1 + $0x1d8] sm:$0xff]
      %v484 = vld [vmem:[%s1 + $0x1e0] sm:$0xff]
      %v485 = vld [vmem:[%s1 + $0x1e8] sm:$0xff]
      %v486 = vld [vmem:[%s1 + $0x1f0] sm:$0xff]
      %v487 = vld [vmem:[%s1 + $0x1f8] sm:$0xff]
      %v488 = vld [vmem:[%s1 + $0x200] sm:$0xff]
      %v489 = vld [vmem:[%s1 + $0x208] sm:$0xff]
      %v490 = vld [vmem:[%s1 + $0x210] sm:$0xff]
      %v491 = vld [vmem:[%s1 + $0x218] sm:$0xff]
      %v492 = vld [vmem:[%s1 + $0x220] sm:$0xff]
      %v493 = vld [vmem:[%s1 + $0x228] sm:$0xff]
      %v494 = vld [vmem:[%s1 + $0x230] sm:$0xff]
      %v495 = vld [vmem:[%s1 + $0x238] sm:$0xff]
      %v496 = vld [vmem:[%s1 + $0x240] sm:$0xff]
      %v497 = vld [vmem:[%s1 + $0x248] sm:$0xff]
      %v498 = vld [vmem:[%s1 + $0x250] sm:$0xff]
      %v499 = vld [vmem:[%s1 + $0x258] sm:$0xff]
      %v500 = vld [vmem:[%s1 + $0x260] sm:$0xff]
      %v501 = vld [vmem:[%s1 + $0x268] sm:$0xff]
      %v502 = vld [vmem:[%s1 + $0x270] sm:$0xff]
      %v503 = vld [vmem:[%s1 + $0x278] sm:$0xff]
      %v504 = vld [vmem:[%s1 + $0x280] sm:$0xff]
      %v505 = vld [vmem:[%s1 + $0x288] sm:$0xff]
      %v506 = vld [vmem:[%s1 + $0x290] sm:$0xff]
      %v507 = vld [vmem:[%s1 + $0x298] sm:$0xff]
      %v508 = vld [vmem:[%s1 + $0x2a0] sm:$0xff]
      %v509 = vld [vmem:[%s1 + $0x2a8] sm:$0xff]
      %v510 = vld [vmem:[%s1 + $0x2b0] sm:$0xff]
      %v511 = vld [vmem:[%s1 + $0x2b8] sm:$0xff]
      %v512 = vld [vmem:[%s1 + $0x2c0] sm:$0xff]
      %v513 = vld [vmem:[%s1 + $0x2c8] sm:$0xff]
      %v514 = vld [vmem:[%s1 + $0x2d0] sm:$0xff]
      %v515 = vld [vmem:[%s1 + $0x2d8] sm:$0xff]
      %v516 = vld [vmem:[%s1 + $0x2e0] sm:$0xff]
      %v517 = vld [vmem:[%s1 + $0x2e8] sm:$0xff]
      %v518 = vld [vmem:[%s1 + $0x2f0] sm:$0xff]
      %v519 = vld [vmem:[%s1 + $0x2f8] sm:$0xff]
      %v520 = vld [vmem:[%s1 + $0x300] sm:$0xff]
      %v521 = vld [vmem:[%s1 + $0x308] sm:$0xff]
      %v522 = vld [vmem:[%s1 + $0x310] sm:$0xff]
      %v523 = vld [vmem:[%s1 + $0x318] sm:$0xff]
      %v524 = vld [vmem:[%s1 + $0x320] sm:$0xff]
      %v525 = vld [vmem:[%s1 + $0x328] sm:$0xff]
      %v526 = vld [vmem:[%s1 + $0x330] sm:$0xff]
      %v527 = vld [vmem:[%s1 + $0x338] sm:$0xff]
      %v528 = vld [vmem:[%s1 + $0x340] sm:$0xff]
      %v529 = vld [vmem:[%s1 + $0x348] sm:$0xff]
      %v530 = vld [vmem:[%s1 + $0x350] sm:$0xff]
      %v531 = vld [vmem:[%s1 + $0x358] sm:$0xff]
      %v532 = vld [vmem:[%s1 + $0x360] sm:$0xff]
      %v533 = vld [vmem:[%s1 + $0x368] sm:$0xff]
      %v534 = vld [vmem:[%s1 + $0x370] sm:$0xff]
      %v535 = vld [vmem:[%s1 + $0x378] sm:$0xff]
      %v536 = vld [vmem:[%s1 + $0x380] sm:$0xff]
      %v537 = vld [vmem:[%s1 + $0x388] sm:$0xff]
      %v538 = vld [vmem:[%s1 + $0x390] sm:$0xff]
      %v539 = vld [vmem:[%s1 + $0x398] sm:$0xff]
      %v540 = vld [vmem:[%s1 + $0x3a0] sm:$0xff]
      %v541 = vld [vmem:[%s1 + $0x3a8] sm:$0xff]
      %v542 = vld [vmem:[%s1 + $0x3b0] sm:$0xff]
      %v543 = vld [vmem:[%s1 + $0x3b8] sm:$0xff]
      %v544 = vld [vmem:[%s1 + $0x3c0] sm:$0xff]
      %v545 = vld [vmem:[%s1 + $0x3c8] sm:$0xff]
      %v546 = vld [vmem:[%s1 + $0x3d0] sm:$0xff]
      %v547 = vld [vmem:[%s1 + $0x3d8] sm:$0xff]
      %v548 = vld [vmem:[%s1 + $0x3e0] sm:$0xff]
      %v549 = vld [vmem:[%s1 + $0x3e8] sm:$0xff]
      %v550 = vld [vmem:[%s1 + $0x3f0] sm:$0xff]
      %v551 = vld [vmem:[%s1 + $0x3f8] sm:$0xff]
      %v552 = vld [vmem:[%s1 + $0x400] sm:$0xff]
      %v553 = vld [vmem:[%s1 + $0x408] sm:$0xff]
      %v554 = vld [vmem:[%s1 + $0x410] sm:$0xff]
      %v555 = vld [vmem:[%s1 + $0x418] sm:$0xff]
      %v556 = vld [vmem:[%s1 + $0x420] sm:$0xff]
      %v557 = vld [vmem:[%s1 + $0x428] sm:$0xff]
      %v558 = vld [vmem:[%s1 + $0x430] sm:$0xff]
      %v559 = vld [vmem:[%s1 + $0x438] sm:$0xff]
      %v560 = vld [vmem:[%s1 + $0x440] sm:$0xff]
      %v561 = vld [vmem:[%s1 + $0x448] sm:$0xff]
      %v562 = vld [vmem:[%s1 + $0x450] sm:$0xff]
      %v563 = vld [vmem:[%s1 + $0x458] sm:$0xff]
      %v564 = vld [vmem:[%s1 + $0x460] sm:$0xff]
      %v565 = vld [vmem:[%s1 + $0x468] sm:$0xff]
      %v566 = vld [vmem:[%s1 + $0x470] sm:$0xff]
      %v567 = vld [vmem:[%s1 + $0x478] sm:$0xff]
      %v568 = vld [vmem:[%s1 + $0x480] sm:$0xff]
      %v569 = vld [vmem:[%s1 + $0x488] sm:$0xff]
      %v570 = vld [vmem:[%s1 + $0x490] sm:$0xff]
      %v571 = vld [vmem:[%s1 + $0x498] sm:$0xff]
      %v572 = vld [vmem:[%s1 + $0x4a0] sm:$0xff]
      %v573 = vld [vmem:[%s1 + $0x4a8] sm:$0xff]
      %v574 = vld [vmem:[%s1 + $0x4b0] sm:$0xff]
      %v575 = vld [vmem:[%s1 + $0x4b8] sm:$0xff]
      %v576 = vld [vmem:[%s1 + $0x4c0] sm:$0xff]
      %v577 = vld [vmem:[%s1 + $0x4c8] sm:$0xff]
      %v578 = vld [vmem:[%s1 + $0x4d0] sm:$0xff]
      %v579 = vld [vmem:[%s1 + $0x4d8] sm:$0xff]
      %v580 = vld [vmem:[%s1 + $0x4e0] sm:$0xff]
      %v581 = vld [vmem:[%s1 + $0x4e8] sm:$0xff]
      %v582 = vld [vmem:[%s1 + $0x4f0] sm:$0xff]
      %v583 = vld [vmem:[%s1 + $0x4f8] sm:$0xff]
      %584 = vmatprep.subr.mxu0 %v425
      %585 = vmatpush1.msra.mxu0 %v424
      %586 = vmatprep.subr.mxu0 %v427
      %587 = vmatpush1.msra.mxu0 %v426
      %588 = vmatprep.subr.mxu0 %v429
      %589 = vmatpush1.msra.mxu0 %v428
      %590 = vmatprep.subr.mxu0 %v431
      %591 = vmatpush1.msra.mxu0 %v430
      %592 = vmatprep.subr.mxu0 %v433
      %593 = vmatpush1.msra.mxu0 %v432
      %594 = vmatprep.subr.mxu0 %v435
      %595 = vmatpush1.msra.mxu0 %v434
      %596 = vmatprep.subr.mxu0 %v437
      %597 = vmatpush1.msra.mxu0 %v436
      %598 = vmatprep.subr.mxu0 %v439
      %599 = vmatpush1.msra.mxu0 %v438
      %600 = vmatprep.subr.mxu0 %v441
      %601 = vmatpush1.msra.mxu0 %v440
      %602 = vmatprep.subr.mxu0 %v443
      %603 = vmatpush1.msra.mxu0 %v442
      %604 = vmatprep.subr.mxu0 %v445
      %605 = vmatpush1.msra.mxu0 %v444
      %606 = vmatprep.subr.mxu0 %v447
      %607 = vmatpush1.msra.mxu0 %v446
      %608 = vmatprep.subr.mxu0 %v449
      %609 = vmatpush1.msra.mxu0 %v448
      %610 = vmatprep.subr.mxu0 %v451
      %611 = vmatpush1.msra.mxu0 %v450
      %612 = vmatprep.subr.mxu0 %v453
      %613 = vmatpush1.msra.mxu0 %v452
      %614 = vmatprep.subr.mxu0 %v455
      %615 = vmatpush1.msra.mxu0 %v454
      %616 = vmatprep.subr.mxu0 %v457
      %617 = vmatpush1.msra.mxu0 %v456
      %618 = vmatprep.subr.mxu0 %v459
      %619 = vmatpush1.msra.mxu0 %v458
      %620 = vmatprep.subr.mxu0 %v461
      %621 = vmatpush1.msra.mxu0 %v460
      %622 = vmatprep.subr.mxu0 %v463
      %623 = vmatpush1.msra.mxu0 %v462
      %624 = vmatprep.subr.mxu0 %v465
      %625 = vmatpush1.msra.mxu0 %v464
      %626 = vmatprep.subr.mxu0 %v467
      %627 = vmatpush1.msra.mxu0 %v466
      %628 = vmatprep.subr.mxu0 %v469
      %629 = vmatpush1.msra.mxu0 %v468
      %630 = vmatprep.subr.mxu0 %v471
      %631 = vmatpush1.msra.mxu0 %v470
      %632 = vmatprep.subr.mxu0 %v473
      %633 = vmatpush1.msra.mxu0 %v472
      %634 = vmatprep.subr.mxu0 %v475
      %635 = vmatpush1.msra.mxu0 %v474
      %636 = vmatprep.subr.mxu0 %v477
      %637 = vmatpush1.msra.mxu0 %v476
      %638 = vmatprep.subr.mxu0 %v479
      %639 = vmatpush1.msra.mxu0 %v478
      %640 = vmatprep.subr.mxu0 %v481
      %641 = vmatpush1.msra.mxu0 %v480
      %642 = vmatprep.subr.mxu0 %v483
      %643 = vmatpush1.msra.mxu0 %v482
      %644 = vmatprep.subr.mxu0 %v485
      %645 = vmatpush1.msra.mxu0 %v484
      %646 = vmatprep.subr.mxu0 %v487
      %647 = vmatpush1.msra.mxu0 %v486
      %648 = vmatprep.mubr.f32.mxu0 %v394
      %649 = vmatmul.mubr.f32.gmra.mrb[0].mxu0 %v385
      %v650 = vpop.f32.mrb[0].mxu0
      %v651 = vadd.f32 0.0, %v650
      %v652 = vpop.f32.mrb[0].mxu0
      %v653 = vadd.f32 0.0, %v652
      %654 = vmatprep.mubr.f32.mxu0 %v395
      %655 = vmatmul.mubr.f32.gmra.mrb[0].mxu0 %v386
      %v656 = vpop.f32.mrb[0].mxu0
      %v657 = vadd.f32 0.0, %v656
      %v658 = vpop.f32.mrb[0].mxu0
      %v659 = vadd.f32 0.0, %v658
      %660 = vmatprep.mubr.f32.mxu0 %v396
      %661 = vmatmul.mubr.f32.gmra.mrb[0].mxu0 %v387
      %v662 = vpop.f32.mrb[0].mxu0
      %v663 = vadd.f32 0.0, %v662
      %v664 = vpop.f32.mrb[0].mxu0
      %v665 = vadd.f32 0.0, %v664
      %666 = vmatprep.mubr.f32.mxu0 %v397
      %667 = vmatmul.mubr.f32.gmra.mrb[0].mxu0 %v388
      %v668 = vpop.f32.mrb[0].mxu0
      %v669 = vadd.f32 0.0, %v668
      %v670 = vpop.f32.mrb[0].mxu0
      %v671 = vadd.f32 0.0, %v670
      %672 = vmatprep.mubr.f32.mxu0 %v398
      %673 = vmatmul.mubr.f32.gmra.mrb[0].mxu0 %v389
      %v674 = vpop.f32.mrb[0].mxu0
      %v675 = vadd.f32 0.0, %v674
      %v676 = vpop.f32.mrb[0].mxu0
      %v677 = vadd.f32 0.0, %v676
      %678 = vmatprep.mubr.f32.mxu0 %v399
      %679 = vmatmul.mubr.f32.gmra.mrb[0].mxu0 %v390
      %v680 = vpop.f32.mrb[0].mxu0
      %v681 = vadd.f32 0.0, %v680
      %v682 = vpop.f32.mrb[0].mxu0
      %v683 = vadd.f32 0.0, %v682
      %684 = vmatprep.mubr.f32.mxu0 %v400
      %685 = vmatmul.mubr.f32.gmra.mrb[0].mxu0 %v391
      %v686 = vpop.f32.mrb[0].mxu0
      %v687 = vadd.f32 0.0, %v686
      %v688 = vpop.f32.mrb[0].mxu0
      %v689 = vadd.f32 0.0, %v688
      %690 = vmatprep.mubr.f32.mxu0 %v401
      %691 = vmatmul.mubr.f32.gmra.mrb[0].mxu0 %v392
      %v692 = vpop.f32.mrb[0].mxu0
      %v693 = vadd.f32 0.0, %v692
      %v694 = vpop.f32.mrb[0].mxu0
      %v695 = vadd.f32 0.0, %v694
      %696 = vmatprep.mubr.f32.mxu0 %v403
      %697 = vmatmul.mubr.f32.gmra.mrb[0].mxu0 %v394
      %v698 = vpop.f32.mrb[0].mxu0
      %v699 = vadd.f32 0.0, %v698
      %v700 = vpop.f32.mrb[0].mxu0
      %v701 = vadd.f32 0.0, %v700
      %702 = vmatprep.mubr.f32.mxu0 %v404
      %703 = vmatmul.mubr.f32.gmra.mrb[0].mxu0 %v395
      %v704 = vpop.f32.mrb[0].mxu0
      %v705 = vadd.f32 0.0, %v704
      %v706 = vpop.f32.mrb[0].mxu0
      %v707 = vadd.f32 0.0, %v706
      %708 = vmatprep.mubr.f32.mxu0 %v405
      %709 = vmatmul.mubr.f32.gmra.mrb[0].mxu0 %v396
      %v710 = vpop.f32.mrb[0].mxu0
      %v711 = vadd.f32 0.0, %v710
      %v712 = vpop.f32.mrb[0].mxu0
      %v713 = vadd.f32 0.0, %v712
      %714 = vmatprep.mubr.f32.mxu0 %v406
      %715 = vmatmul.mubr.f32.gmra.mrb[0].mxu0 %v397
      %v716 = vpop.f32.mrb[0].mxu0
      %v717 = vadd.f32 0.0, %v716
      %v718 = vpop.f32.mrb[0].mxu0
      %v719 = vadd.f32 0.0, %v718
      %720 = vmatprep.mubr.f32.mxu0 %v407
      %721 = vmatmul.mubr.f32.gmra.mrb[0].mxu0 %v398
      %v722 = vpop.f32.mrb[0].mxu0
      %v723 = vadd.f32 0.0, %v722
      %v724 = vpop.f32.mrb[0].mxu0
      %v725 = vadd.f32 0.0, %v724
      %726 = vmatprep.mubr.f32.mxu0 %v408
      %727 = vmatmul.mubr.f32.gmra.mrb[0].mxu0 %v399
      %v728 = vpop.f32.mrb[0].mxu0
      %v729 = vadd.f32 0.0, %v728
      %v730 = vpop.f32.mrb[0].mxu0
      %v731 = vadd.f32 0.0, %v730
      %732 = vmatprep.mubr.f32.mxu0 %v409
      %733 = vmatmul.mubr.f32.gmra.mrb[0].mxu0 %v400
      %v734 = vpop.f32.mrb[0].mxu0
      %v735 = vadd.f32 0.0, %v734
      %v736 = vpop.f32.mrb[0].mxu0
      %v737 = vadd.f32 0.0, %v736
      %738 = vmatprep.mubr.f32.mxu0 %v410
      %739 = vmatmul.mubr.f32.gmra.mrb[0].mxu0 %v401
      %v740 = vpop.f32.mrb[0].mxu0
      %v741 = vadd.f32 0.0, %v740
      %v742 = vpop.f32.mrb[0].mxu0
      %v743 = vadd.f32 0.0, %v742
      %744 = vmatprep.mubr.f32.mxu0 %v412
      %745 = vmatmul.mubr.f32.gmra.mrb[0].mxu0 %v403
      %v746 = vpop.f32.mrb[0].mxu0
      %v747 = vadd.f32 0.0, %v746
      %v748 = vpop.f32.mrb[0].mxu0
      %v749 = vadd.f32 0.0, %v748
      %750 = vmatprep.mubr.f32.mxu0 %v413
      %751 = vmatmul.mubr.f32.gmra.mrb[0].mxu0 %v404
      %v752 = vpop.f32.mrb[0].mxu0
      %v753 = vadd.f32 0.0, %v752
      %v754 = vpop.f32.mrb[0].mxu0
      %v755 = vadd.f32 0.0, %v754
      %756 = vmatprep.mubr.f32.mxu0 %v414
      %757 = vmatmul.mubr.f32.gmra.mrb[0].mxu0 %v405
      %v758 = vpop.f32.mrb[0].mxu0
      %v759 = vadd.f32 0.0, %v758
      %v760 = vpop.f32.mrb[0].mxu0
      %v761 = vadd.f32 0.0, %v760
      %762 = vmatprep.mubr.f32.mxu0 %v415
      %763 = vmatmul.mubr.f32.gmra.mrb[0].mxu0 %v406
      %v764 = vpop.f32.mrb[0].mxu0
      %v765 = vadd.f32 0.0, %v764
      %v766 = vpop.f32.mrb[0].mxu0
      %v767 = vadd.f32 0.0, %v766
      %768 = vmatprep.mubr.f32.mxu0 %v416
      %769 = vmatmul.mubr.f32.gmra.mrb[0].mxu0 %v407
      %v770 = vpop.f32.mrb[0].mxu0
      %v771 = vadd.f32 0.0, %v770
      %v772 = vpop.f32.mrb[0].mxu0
      %v773 = vadd.f32 0.0, %v772
      %774 = vmatprep.mubr.f32.mxu0 %v417
      %775 = vmatmul.mubr.f32.gmra.mrb[0].mxu0 %v408
      %v776 = vpop.f32.mrb[0].mxu0
      %v777 = vadd.f32 0.0, %v776
      %v778 = vpop.f32.mrb[0].mxu0
      %v779 = vadd.f32 0.0, %v778
      %780 = vmatprep.mubr.f32.mxu0 %v418
      %781 = vmatmul.mubr.f32.gmra.mrb[0].mxu0 %v409
      %v782 = vpop.f32.mrb[0].mxu0
      %v783 = vadd.f32 0.0, %v782
      %v784 = vpop.f32.mrb[0].mxu0
      %v785 = vadd.f32 0.0, %v784
      %786 = vmatprep.mubr.f32.mxu0 %v419
      %787 = vmatmul.mubr.f32.gmra.mrb[0].mxu0 %v410
      %v788 = vpop.f32.mrb[0].mxu0
      %v789 = vadd.f32 0.0, %v788
      %v790 = vpop.f32.mrb[0].mxu0
      %v791 = vadd.f32 0.0, %v790
      %792 = vmatprep.mubr.f32.mxu0 %v386
      %793 = vmatmul.mubr.f32.gmra.mrb[0].mxu0 %v412
      %v794 = vpop.f32.mrb[0].mxu0
      %v795 = vadd.f32 0.0, %v794
      %v796 = vpop.f32.mrb[0].mxu0
      %v797 = vadd.f32 0.0, %v796
      %798 = vmatprep.mubr.f32.mxu0 %v387
      %799 = vmatmul.mubr.f32.gmra.mrb[0].mxu0 %v413
      %v800 = vpop.f32.mrb[0].mxu0
      %v801 = vadd.f32 0.0, %v800
      %v802 = vpop.f32.mrb[0].mxu0
      %v803 = vadd.f32 0.0, %v802
      %804 = vmatprep.mubr.f32.mxu0 %v388
      %805 = vmatmul.mubr.f32.gmra.mrb[0].mxu0 %v414
      %v806 = vpop.f32.mrb[0].mxu0
      %v807 = vadd.f32 0.0, %v806
      %v808 = vpop.f32.mrb[0].mxu0
      %v809 = vadd.f32 0.0, %v808
      %810 = vmatprep.mubr.f32.mxu0 %v389
      %811 = vmatmul.mubr.f32.gmra.mrb[0].mxu0 %v415
      %v812 = vpop.f32.mrb[0].mxu0
      %v813 = vadd.f32 0.0, %v812
      %v814 = vpop.f32.mrb[0].mxu0
      %v815 = vadd.f32 0.0, %v814
      %816 = vmatprep.mubr.f32.mxu0 %v390
      %817 = vmatmul.mubr.f32.gmra.mrb[0].mxu0 %v416
      %v818 = vpop.f32.mrb[0].mxu0
      %v819 = vadd.f32 0.0, %v818
      %v820 = vpop.f32.mrb[0].mxu0
      %v821 = vadd.f32 0.0, %v820
      %822 = vmatprep.mubr.f32.mxu0 %v391
      %823 = vmatmul.mubr.f32.gmra.mrb[0].mxu0 %v417
      %v824 = vpop.f32.mrb[0].mxu0
      %v825 = vadd.f32 0.0, %v824
      %v826 = vpop.f32.mrb[0].mxu0
      %v827 = vadd.f32 0.0, %v826
      %828 = vmatprep.mubr.f32.mxu0 %v392
      %829 = vmatmul.mubr.f32.gmra.mrb[0].mxu0 %v418
      %v830 = vpop.f32.mrb[0].mxu0
      %v831 = vadd.f32 0.0, %v830
      %v832 = vpop.f32.mrb[0].mxu0
      %v833 = vadd.f32 0.0, %v832
      %834 = vmatprep.mubr.f32.mxu0 %v420
      %835 = vmatmul.mubr.f32.gmra.mrb[0].mxu0 %v419
      %v836 = vpop.f32.mrb[0].mxu0
      %v837 = vadd.f32 0.0, %v836
      %v838 = vpop.f32.mrb[0].mxu0
      %v839 = vadd.f32 0.0, %v838
      %840 = vdwg.mxu0
      %841 = vmatprep.subr.mxu0 %v489
      %842 = vmatpush1.msra.mxu0 %v488
      %843 = vmatprep.subr.mxu0 %v491
      %844 = vmatpush1.msra.mxu0 %v490
      %845 = vmatprep.subr.mxu0 %v493
      %846 = vmatpush1.msra.mxu0 %v492
      %847 = vmatprep.subr.mxu0 %v495
      %848 = vmatpush1.msra.mxu0 %v494
      %849 = vmatprep.subr.mxu0 %v497
      %850 = vmatpush1.msra.mxu0 %v496
      %851 = vmatprep.subr.mxu0 %v499
      %852 = vmatpush1.msra.mxu0 %v498
      %853 = vmatprep.subr.mxu0 %v501
      %854 = vmatpush1.msra.mxu0 %v500
      %855 = vmatprep.subr.mxu0 %v503
      %856 = vmatpush1.msra.mxu0 %v502
      %857 = vmatprep.subr.mxu0 %v505
      %858 = vmatpush1.msra.mxu0 %v504
      %859 = vmatprep.subr.mxu0 %v507
      %860 = vmatpush1.msra.mxu0 %v506
      %861 = vmatprep.subr.mxu0 %v509
      %862 = vmatpush1.msra.mxu0 %v508
      %863 = vmatprep.subr.mxu0 %v511
      %864 = vmatpush1.msra.mxu0 %v510
      %865 = vmatprep.subr.mxu0 %v513
      %866 = vmatpush1.msra.mxu0 %v512
      %867 = vmatprep.subr.mxu0 %v515
      %868 = vmatpush1.msra.mxu0 %v514
      %869 = vmatprep.subr.mxu0 %v517
      %870 = vmatpush1.msra.mxu0 %v516
      %871 = vmatprep.subr.mxu0 %v519
      %872 = vmatpush1.msra.mxu0 %v518
      %873 = vmatprep.subr.mxu0 %v521
      %874 = vmatpush1.msra.mxu0 %v520
      %875 = vmatprep.subr.mxu0 %v523
      %876 = vmatpush1.msra.mxu0 %v522
      %877 = vmatprep.subr.mxu0 %v525
      %878 = vmatpush1.msra.mxu0 %v524
      %879 = vmatprep.subr.mxu0 %v527
      %880 = vmatpush1.msra.mxu0 %v526
      %881 = vmatprep.subr.mxu0 %v529
      %882 = vmatpush1.msra.mxu0 %v528
      %883 = vmatprep.subr.mxu0 %v531
      %884 = vmatpush1.msra.mxu0 %v530
      %885 = vmatprep.subr.mxu0 %v533
      %886 = vmatpush1.msra.mxu0 %v532
      %887 = vmatprep.subr.mxu0 %v535
      %888 = vmatpush1.msra.mxu0 %v534
      %889 = vmatprep.subr.mxu0 %v537
      %890 = vmatpush1.msra.mxu0 %v536
      %891 = vmatprep.subr.mxu0 %v539
      %892 = vmatpush1.msra.mxu0 %v538
      %893 = vmatprep.subr.mxu0 %v541
      %894 = vmatpush1.msra.mxu0 %v540
      %895 = vmatprep.subr.mxu0 %v543
      %896 = vmatpush1.msra.mxu0 %v542
      %897 = vmatprep.subr.mxu0 %v545
      %898 = vmatpush1.msra.mxu0 %v544
      %899 = vmatprep.subr.mxu0 %v547
      %900 = vmatpush1.msra.mxu0 %v546
      %901 = vmatprep.subr.mxu0 %v549
      %902 = vmatpush1.msra.mxu0 %v548
      %903 = vmatprep.subr.mxu0 %v551
      %904 = vmatpush1.msra.mxu0 %v550
      %905 = vmatprep.mubr.f32.mxu0 %v412
      %906 = vmatmul.mubr.f32.gmra.mrb[0].mxu0 %v403
      %v907 = vpop.f32.mrb[0].mxu0
      %v908 = vadd.f32 %v651, %v907
      %v909 = vpop.f32.mrb[0].mxu0
      %v910 = vadd.f32 %v653, %v909
      %911 = vmatprep.mubr.f32.mxu0 %v413
      %912 = vmatmul.mubr.f32.gmra.mrb[0].mxu0 %v404
      %v913 = vpop.f32.mrb[0].mxu0
      %v914 = vadd.f32 %v657, %v913
      %v915 = vpop.f32.mrb[0].mxu0
      %v916 = vadd.f32 %v659, %v915
      %917 = vmatprep.mubr.f32.mxu0 %v414
      %918 = vmatmul.mubr.f32.gmra.mrb[0].mxu0 %v405
      %v919 = vpop.f32.mrb[0].mxu0
      %v920 = vadd.f32 %v663, %v919
      %v921 = vpop.f32.mrb[0].mxu0
      %v922 = vadd.f32 %v665, %v921
      %923 = vmatprep.mubr.f32.mxu0 %v415
      %924 = vmatmul.mubr.f32.gmra.mrb[0].mxu0 %v406
      %v925 = vpop.f32.mrb[0].mxu0
      %v926 = vadd.f32 %v669, %v925
      %v927 = vpop.f32.mrb[0].mxu0
      %v928 = vadd.f32 %v671, %v927
      %929 = vmatprep.mubr.f32.mxu0 %v416
      %930 = vmatmul.mubr.f32.gmra.mrb[0].mxu0 %v407
      %v931 = vpop.f32.mrb[0].mxu0
      %v932 = vadd.f32 %v675, %v931
      %v933 = vpop.f32.mrb[0].mxu0
      %v934 = vadd.f32 %v677, %v933
      %935 = vmatprep.mubr.f32.mxu0 %v417
      %936 = vmatmul.mubr.f32.gmra.mrb[0].mxu0 %v408
      %v937 = vpop.f32.mrb[0].mxu0
      %v938 = vadd.f32 %v681, %v937
      %v939 = vpop.f32.mrb[0].mxu0
      %v940 = vadd.f32 %v683, %v939
      %941 = vmatprep.mubr.f32.mxu0 %v418
      %942 = vmatmul.mubr.f32.gmra.mrb[0].mxu0 %v409
      %v943 = vpop.f32.mrb[0].mxu0
      %v944 = vadd.f32 %v687, %v943
      %v945 = vpop.f32.mrb[0].mxu0
      %v946 = vadd.f32 %v689, %v945
      %947 = vmatprep.mubr.f32.mxu0 %v419
      %948 = vmatmul.mubr.f32.gmra.mrb[0].mxu0 %v410
      %v949 = vpop.f32.mrb[0].mxu0
      %v950 = vadd.f32 %v693, %v949
      %v951 = vpop.f32.mrb[0].mxu0
      %v952 = vadd.f32 %v695, %v951
      %953 = vmatprep.mubr.f32.mxu0 %v386
      %954 = vmatmul.mubr.f32.gmra.mrb[0].mxu0 %v412
      %v955 = vpop.f32.mrb[0].mxu0
      %v956 = vadd.f32 %v699, %v955
      %v957 = vpop.f32.mrb[0].mxu0
      %v958 = vadd.f32 %v701, %v957
      %959 = vmatprep.mubr.f32.mxu0 %v387
      %960 = vmatmul.mubr.f32.gmra.mrb[0].mxu0 %v413
      %v961 = vpop.f32.mrb[0].mxu0
      %v962 = vadd.f32 %v705, %v961
      %v963 = vpop.f32.mrb[0].mxu0
      %v964 = vadd.f32 %v707, %v963
      %965 = vmatprep.mubr.f32.mxu0 %v388
      %966 = vmatmul.mubr.f32.gmra.mrb[0].mxu0 %v414
      %v967 = vpop.f32.mrb[0].mxu0
      %v968 = vadd.f32 %v711, %v967
      %v969 = vpop.f32.mrb[0].mxu0
      %v970 = vadd.f32 %v713, %v969
      %971 = vmatprep.mubr.f32.mxu0 %v389
      %972 = vmatmul.mubr.f32.gmra.mrb[0].mxu0 %v415
      %v973 = vpop.f32.mrb[0].mxu0
      %v974 = vadd.f32 %v717, %v973
      %v975 = vpop.f32.mrb[0].mxu0
      %v976 = vadd.f32 %v719, %v975
      %977 = vmatprep.mubr.f32.mxu0 %v390
      %978 = vmatmul.mubr.f32.gmra.mrb[0].mxu0 %v416
      %v979 = vpop.f32.mrb[0].mxu0
      %v980 = vadd.f32 %v723, %v979
      %v981 = vpop.f32.mrb[0].mxu0
      %v982 = vadd.f32 %v725, %v981
      %983 = vmatprep.mubr.f32.mxu0 %v391
      %984 = vmatmul.mubr.f32.gmra.mrb[0].mxu0 %v417
      %v985 = vpop.f32.mrb[0].mxu0
      %v986 = vadd.f32 %v729, %v985
      %v987 = vpop.f32.mrb[0].mxu0
      %v988 = vadd.f32 %v731, %v987
      %989 = vmatprep.mubr.f32.mxu0 %v392
      %990 = vmatmul.mubr.f32.gmra.mrb[0].mxu0 %v418
      %v991 = vpop.f32.mrb[0].mxu0
      %v992 = vadd.f32 %v735, %v991
      %v993 = vpop.f32.mrb[0].mxu0
      %v994 = vadd.f32 %v737, %v993
      %995 = vmatprep.mubr.f32.mxu0 %v420
      %996 = vmatmul.mubr.f32.gmra.mrb[0].mxu0 %v419
      %v997 = vpop.f32.mrb[0].mxu0
      %v998 = vadd.f32 %v741, %v997
      %v999 = vpop.f32.mrb[0].mxu0
      %v1000 = vadd.f32 %v743, %v999
      %1001 = vmatprep.mubr.f32.mxu0 %v395
      %1002 = vmatmul.mubr.f32.gmra.mrb[0].mxu0 %v386
      %v1003 = vpop.f32.mrb[0].mxu0
      %v1004 = vadd.f32 %v747, %v1003
      %v1005 = vpop.f32.mrb[0].mxu0
      %v1006 = vadd.f32 %v749, %v1005
      %1007 = vmatprep.mubr.f32.mxu0 %v396
      %1008 = vmatmul.mubr.f32.gmra.mrb[0].mxu0 %v387
      %v1009 = vpop.f32.mrb[0].mxu0
      %v1010 = vadd.f32 %v753, %v1009
      %v1011 = vpop.f32.mrb[0].mxu0
      %v1012 = vadd.f32 %v755, %v1011
      %1013 = vmatprep.mubr.f32.mxu0 %v397
      %1014 = vmatmul.mubr.f32.gmra.mrb[0].mxu0 %v388
      %v1015 = vpop.f32.mrb[0].mxu0
      %v1016 = vadd.f32 %v759, %v1015
      %v1017 = vpop.f32.mrb[0].mxu0
      %v1018 = vadd.f32 %v761, %v1017
      %1019 = vmatprep.mubr.f32.mxu0 %v398
      %1020 = vmatmul.mubr.f32.gmra.mrb[0].mxu0 %v389
      %v1021 = vpop.f32.mrb[0].mxu0
      %v1022 = vadd.f32 %v765, %v1021
      %v1023 = vpop.f32.mrb[0].mxu0
      %v1024 = vadd.f32 %v767, %v1023
      %1025 = vmatprep.mubr.f32.mxu0 %v399
      %1026 = vmatmul.mubr.f32.gmra.mrb[0].mxu0 %v390
      %v1027 = vpop.f32.mrb[0].mxu0
      %v1028 = vadd.f32 %v771, %v1027
      %v1029 = vpop.f32.mrb[0].mxu0
      %v1030 = vadd.f32 %v773, %v1029
      %1031 = vmatprep.mubr.f32.mxu0 %v400
      %1032 = vmatmul.mubr.f32.gmra.mrb[0].mxu0 %v391
      %v1033 = vpop.f32.mrb[0].mxu0
      %v1034 = vadd.f32 %v777, %v1033
      %v1035 = vpop.f32.mrb[0].mxu0
      %v1036 = vadd.f32 %v779, %v1035
      %1037 = vmatprep.mubr.f32.mxu0 %v401
      %1038 = vmatmul.mubr.f32.gmra.mrb[0].mxu0 %v392
      %v1039 = vpop.f32.mrb[0].mxu0
      %v1040 = vadd.f32 %v783, %v1039
      %v1041 = vpop.f32.mrb[0].mxu0
      %v1042 = vadd.f32 %v785, %v1041
      %1043 = vmatprep.mubr.f32.mxu0 %v421
      %1044 = vmatmul.mubr.f32.gmra.mrb[0].mxu0 %v420
      %v1045 = vpop.f32.mrb[0].mxu0
      %v1046 = vadd.f32 %v789, %v1045
      %v1047 = vpop.f32.mrb[0].mxu0
      %v1048 = vadd.f32 %v791, %v1047
      %1049 = vmatprep.mubr.f32.mxu0 %v404
      %1050 = vmatmul.mubr.f32.gmra.mrb[0].mxu0 %v395
      %v1051 = vpop.f32.mrb[0].mxu0
      %v1052 = vadd.f32 %v795, %v1051
      %v1053 = vpop.f32.mrb[0].mxu0
      %v1054 = vadd.f32 %v797, %v1053
      %1055 = vmatprep.mubr.f32.mxu0 %v405
      %1056 = vmatmul.mubr.f32.gmra.mrb[0].mxu0 %v396
      %v1057 = vpop.f32.mrb[0].mxu0
      %v1058 = vadd.f32 %v801, %v1057
      %v1059 = vpop.f32.mrb[0].mxu0
      %v1060 = vadd.f32 %v803, %v1059
      %1061 = vmatprep.mubr.f32.mxu0 %v406
      %1062 = vmatmul.mubr.f32.gmra.mrb[0].mxu0 %v397
      %v1063 = vpop.f32.mrb[0].mxu0
      %v1064 = vadd.f32 %v807, %v1063
      %v1065 = vpop.f32.mrb[0].mxu0
      %v1066 = vadd.f32 %v809, %v1065
      %1067 = vmatprep.mubr.f32.mxu0 %v407
      %1068 = vmatmul.mubr.f32.gmra.mrb[0].mxu0 %v398
      %v1069 = vpop.f32.mrb[0].mxu0
      %v1070 = vadd.f32 %v813, %v1069
      %v1071 = vpop.f32.mrb[0].mxu0
      %v1072 = vadd.f32 %v815, %v1071
      %1073 = vmatprep.mubr.f32.mxu0 %v408
      %1074 = vmatmul.mubr.f32.gmra.mrb[0].mxu0 %v399
      %v1075 = vpop.f32.mrb[0].mxu0
      %v1076 = vadd.f32 %v819, %v1075
      %v1077 = vpop.f32.mrb[0].mxu0
      %v1078 = vadd.f32 %v821, %v1077
      %1079 = vmatprep.mubr.f32.mxu0 %v409
      %1080 = vmatmul.mubr.f32.gmra.mrb[0].mxu0 %v400
      %v1081 = vpop.f32.mrb[0].mxu0
      %v1082 = vadd.f32 %v825, %v1081
      %v1083 = vpop.f32.mrb[0].mxu0
      %v1084 = vadd.f32 %v827, %v1083
      %1085 = vmatprep.mubr.f32.mxu0 %v410
      %1086 = vmatmul.mubr.f32.gmra.mrb[0].mxu0 %v401
      %v1087 = vpop.f32.mrb[0].mxu0
      %v1088 = vadd.f32 %v831, %v1087
      %v1089 = vpop.f32.mrb[0].mxu0
      %v1090 = vadd.f32 %v833, %v1089
      %1091 = vmatprep.mubr.f32.mxu0 %v422
      %1092 = vmatmul.mubr.f32.gmra.mrb[0].mxu0 %v421
      %v1093 = vpop.f32.mrb[0].mxu0
      %v1094 = vadd.f32 %v837, %v1093
      %v1095 = vpop.f32.mrb[0].mxu0
      %v1096 = vadd.f32 %v839, %v1095
      %1097 = vdwg.mxu0
      %1098 = vmatprep.subr.mxu0 %v553
      %1099 = vmatpush1.msra.mxu0 %v552
      %1100 = vmatprep.subr.mxu0 %v555
      %1101 = vmatpush1.msra.mxu0 %v554
      %1102 = vmatprep.subr.mxu0 %v557
      %1103 = vmatpush1.msra.mxu0 %v556
      %1104 = vmatprep.subr.mxu0 %v559
      %1105 = vmatpush1.msra.mxu0 %v558
      %1106 = vmatprep.subr.mxu0 %v561
      %1107 = vmatpush1.msra.mxu0 %v560
      %1108 = vmatprep.subr.mxu0 %v563
      %1109 = vmatpush1.msra.mxu0 %v562
      %1110 = vmatprep.subr.mxu0 %v565
      %1111 = vmatpush1.msra.mxu0 %v564
      %1112 = vmatprep.subr.mxu0 %v567
      %1113 = vmatpush1.msra.mxu0 %v566
      %1114 = vmatprep.subr.mxu0 %v569
      %1115 = vmatpush1.msra.mxu0 %v568
      %1116 = vmatprep.subr.mxu0 %v571
      %1117 = vmatpush1.msra.mxu0 %v570
      %1118 = vmatprep.subr.mxu0 %v573
      %1119 = vmatpush1.msra.mxu0 %v572
      %1120 = vmatprep.subr.mxu0 %v575
      %1121 = vmatpush1.msra.mxu0 %v574
      %1122 = vmatprep.subr.mxu0 %v577
      %1123 = vmatpush1.msra.mxu0 %v576
      %1124 = vmatprep.subr.mxu0 %v579
      %1125 = vmatpush1.msra.mxu0 %v578
      %1126 = vmatprep.subr.mxu0 %v581
      %1127 = vmatpush1.msra.mxu0 %v580
      %1128 = vmatprep.subr.mxu0 %v583
      %1129 = vmatpush1.msra.mxu0 %v582
      %1130 = vmatprep.subr.mxu0 0.0
      %1131 = vmatpush1.msra.mxu0 0.0
      %1132 = vmatprep.subr.mxu0 0.0
      %1133 = vmatpush1.msra.mxu0 0.0
      %1134 = vmatprep.subr.mxu0 0.0
      %1135 = vmatpush1.msra.mxu0 0.0
      %1136 = vmatprep.subr.mxu0 0.0
      %1137 = vmatpush1.msra.mxu0 0.0
      %1138 = vmatprep.subr.mxu0 0.0
      %1139 = vmatpush1.msra.mxu0 0.0
      %1140 = vmatprep.subr.mxu0 0.0
      %1141 = vmatpush1.msra.mxu0 0.0
      %1142 = vmatprep.subr.mxu0 0.0
      %1143 = vmatpush1.msra.mxu0 0.0
      %1144 = vmatprep.subr.mxu0 0.0
      %1145 = vmatpush1.msra.mxu0 0.0
      %1146 = vmatprep.subr.mxu0 0.0
      %1147 = vmatpush1.msra.mxu0 0.0
      %1148 = vmatprep.subr.mxu0 0.0
      %1149 = vmatpush1.msra.mxu0 0.0
      %1150 = vmatprep.subr.mxu0 0.0
      %1151 = vmatpush1.msra.mxu0 0.0
      %1152 = vmatprep.subr.mxu0 0.0
      %1153 = vmatpush1.msra.mxu0 0.0
      %1154 = vmatprep.subr.mxu0 0.0
      %1155 = vmatpush1.msra.mxu0 0.0
      %1156 = vmatprep.subr.mxu0 0.0
      %1157 = vmatpush1.msra.mxu0 0.0
      %1158 = vmatprep.subr.mxu0 0.0
      %1159 = vmatpush1.msra.mxu0 0.0
      %1160 = vmatprep.subr.mxu0 0.0
      %1161 = vmatpush1.msra.mxu0 0.0
      %1162 = vmatprep.mubr.f32.mxu0 0.0
      %1163 = vmatmul.mubr.f32.gmra.mrb[0].mxu0 %v386
      %v1164 = vpop.f32.mrb[0].mxu0
      %v1165 = vadd.f32 %v908, %v1164
      %v1166 = vpop.f32.mrb[0].mxu0
      %v1167 = vadd.f32 %v910, %v1166
      %1168 = vmatprep.mubr.f32.mxu0 0.0
      %1169 = vmatmul.mubr.f32.gmra.mrb[0].mxu0 %v387
      %v1170 = vpop.f32.mrb[0].mxu0
      %v1171 = vadd.f32 %v914, %v1170
      %v1172 = vpop.f32.mrb[0].mxu0
      %v1173 = vadd.f32 %v916, %v1172
      %1174 = vmatprep.mubr.f32.mxu0 0.0
      %1175 = vmatmul.mubr.f32.gmra.mrb[0].mxu0 %v388
      %v1176 = vpop.f32.mrb[0].mxu0
      %v1177 = vadd.f32 %v920, %v1176
      %v1178 = vpop.f32.mrb[0].mxu0
      %v1179 = vadd.f32 %v922, %v1178
      %1180 = vmatprep.mubr.f32.mxu0 0.0
      %1181 = vmatmul.mubr.f32.gmra.mrb[0].mxu0 %v389
      %v1182 = vpop.f32.mrb[0].mxu0
      %v1183 = vadd.f32 %v926, %v1182
      %v1184 = vpop.f32.mrb[0].mxu0
      %v1185 = vadd.f32 %v928, %v1184
      %1186 = vmatprep.mubr.f32.mxu0 0.0
      %1187 = vmatmul.mubr.f32.gmra.mrb[0].mxu0 %v390
      %v1188 = vpop.f32.mrb[0].mxu0
      %v1189 = vadd.f32 %v932, %v1188
      %v1190 = vpop.f32.mrb[0].mxu0
      %v1191 = vadd.f32 %v934, %v1190
      %1192 = vmatprep.mubr.f32.mxu0 0.0
      %1193 = vmatmul.mubr.f32.gmra.mrb[0].mxu0 %v391
      %v1194 = vpop.f32.mrb[0].mxu0
      %v1195 = vadd.f32 %v938, %v1194
      %v1196 = vpop.f32.mrb[0].mxu0
      %v1197 = vadd.f32 %v940, %v1196
      %1198 = vmatprep.mubr.f32.mxu0 0.0
      %1199 = vmatmul.mubr.f32.gmra.mrb[0].mxu0 %v392
      %v1200 = vpop.f32.mrb[0].mxu0
      %v1201 = vadd.f32 %v944, %v1200
      %v1202 = vpop.f32.mrb[0].mxu0
      %v1203 = vadd.f32 %v946, %v1202
      %1204 = vmatprep.mubr.f32.mxu0 0.0
      %1205 = vmatmul.mubr.f32.gmra.mrb[0].mxu0 %v420
      %v1206 = vpop.f32.mrb[0].mxu0
      %v1207 = vadd.f32 %v950, %v1206
      %v1208 = vpop.f32.mrb[0].mxu0
      %v1209 = vadd.f32 %v952, %v1208
      %1210 = vmatprep.mubr.f32.mxu0 0.0
      %1211 = vmatmul.mubr.f32.gmra.mrb[0].mxu0 %v395
      %v1212 = vpop.f32.mrb[0].mxu0
      %v1213 = vadd.f32 %v956, %v1212
      %v1214 = vpop.f32.mrb[0].mxu0
      %v1215 = vadd.f32 %v958, %v1214
      %1216 = vmatprep.mubr.f32.mxu0 0.0
      %1217 = vmatmul.mubr.f32.gmra.mrb[0].mxu0 %v396
      %v1218 = vpop.f32.mrb[0].mxu0
      %v1219 = vadd.f32 %v962, %v1218
      %v1220 = vpop.f32.mrb[0].mxu0
      %v1221 = vadd.f32 %v964, %v1220
      %1222 = vmatprep.mubr.f32.mxu0 0.0
      %1223 = vmatmul.mubr.f32.gmra.mrb[0].mxu0 %v397
      %v1224 = vpop.f32.mrb[0].mxu0
      %v1225 = vadd.f32 %v968, %v1224
      %v1226 = vpop.f32.mrb[0].mxu0
      %v1227 = vadd.f32 %v970, %v1226
      %1228 = vmatprep.mubr.f32.mxu0 0.0
      %1229 = vmatmul.mubr.f32.gmra.mrb[0].mxu0 %v398
      %v1230 = vpop.f32.mrb[0].mxu0
      %v1231 = vadd.f32 %v974, %v1230
      %v1232 = vpop.f32.mrb[0].mxu0
      %v1233 = vadd.f32 %v976, %v1232
      %1234 = vmatprep.mubr.f32.mxu0 0.0
      %1235 = vmatmul.mubr.f32.gmra.mrb[0].mxu0 %v399
      %v1236 = vpop.f32.mrb[0].mxu0
      %v1237 = vadd.f32 %v980, %v1236
      %v1238 = vpop.f32.mrb[0].mxu0
      %v1239 = vadd.f32 %v982, %v1238
      %1240 = vmatprep.mubr.f32.mxu0 0.0
      %1241 = vmatmul.mubr.f32.gmra.mrb[0].mxu0 %v400
      %v1242 = vpop.f32.mrb[0].mxu0
      %v1243 = vadd.f32 %v986, %v1242
      %v1244 = vpop.f32.mrb[0].mxu0
      %v1245 = vadd.f32 %v988, %v1244
      %1246 = vmatprep.mubr.f32.mxu0 0.0
      %1247 = vmatmul.mubr.f32.gmra.mrb[0].mxu0 %v401
      %v1248 = vpop.f32.mrb[0].mxu0
      %v1249 = vadd.f32 %v992, %v1248
      %v1250 = vpop.f32.mrb[0].mxu0
      %v1251 = vadd.f32 %v994, %v1250
      %1252 = vmatprep.mubr.f32.mxu0 0.0
      %1253 = vmatmul.mubr.f32.gmra.mrb[0].mxu0 %v421
      %v1254 = vpop.f32.mrb[0].mxu0
      %v1255 = vadd.f32 %v998, %v1254
      %v1256 = vpop.f32.mrb[0].mxu0
      %v1257 = vadd.f32 %v1000, %v1256
      %1258 = vmatprep.mubr.f32.mxu0 0.0
      %1259 = vmatmul.mubr.f32.gmra.mrb[0].mxu0 %v404
      %v1260 = vpop.f32.mrb[0].mxu0
      %v1261 = vadd.f32 %v1004, %v1260
      %v1262 = vpop.f32.mrb[0].mxu0
      %v1263 = vadd.f32 %v1006, %v1262
      %1264 = vmatprep.mubr.f32.mxu0 0.0
      %1265 = vmatmul.mubr.f32.gmra.mrb[0].mxu0 %v405
      %v1266 = vpop.f32.mrb[0].mxu0
      %v1267 = vadd.f32 %v1010, %v1266
      %v1268 = vpop.f32.mrb[0].mxu0
      %v1269 = vadd.f32 %v1012, %v1268
      %1270 = vmatprep.mubr.f32.mxu0 0.0
      %1271 = vmatmul.mubr.f32.gmra.mrb[0].mxu0 %v406
      %v1272 = vpop.f32.mrb[0].mxu0
      %v1273 = vadd.f32 %v1016, %v1272
      %v1274 = vpop.f32.mrb[0].mxu0
      %v1275 = vadd.f32 %v1018, %v1274
      %1276 = vmatprep.mubr.f32.mxu0 0.0
      %1277 = vmatmul.mubr.f32.gmra.mrb[0].mxu0 %v407
      %v1278 = vpop.f32.mrb[0].mxu0
      %v1279 = vadd.f32 %v1022, %v1278
      %v1280 = vpop.f32.mrb[0].mxu0
      %v1281 = vadd.f32 %v1024, %v1280
      %1282 = vmatprep.mubr.f32.mxu0 0.0
      %1283 = vmatmul.mubr.f32.gmra.mrb[0].mxu0 %v408
      %v1284 = vpop.f32.mrb[0].mxu0
      %v1285 = vadd.f32 %v1028, %v1284
      %v1286 = vpop.f32.mrb[0].mxu0
      %v1287 = vadd.f32 %v1030, %v1286
      %1288 = vmatprep.mubr.f32.mxu0 0.0
      %1289 = vmatmul.mubr.f32.gmra.mrb[0].mxu0 %v409
      %v1290 = vpop.f32.mrb[0].mxu0
      %v1291 = vadd.f32 %v1034, %v1290
      %v1292 = vpop.f32.mrb[0].mxu0
      %v1293 = vadd.f32 %v1036, %v1292
      %1294 = vmatprep.mubr.f32.mxu0 0.0
      %1295 = vmatmul.mubr.f32.gmra.mrb[0].mxu0 %v410
      %v1296 = vpop.f32.mrb[0].mxu0
      %v1297 = vadd.f32 %v1040, %v1296
      %v1298 = vpop.f32.mrb[0].mxu0
      %v1299 = vadd.f32 %v1042, %v1298
      %1300 = vmatprep.mubr.f32.mxu0 0.0
      %1301 = vmatmul.mubr.f32.gmra.mrb[0].mxu0 %v422
      %v1302 = vpop.f32.mrb[0].mxu0
      %v1303 = vadd.f32 %v1046, %v1302
      %v1304 = vpop.f32.mrb[0].mxu0
      %v1305 = vadd.f32 %v1048, %v1304
      %1306 = vmatprep.mubr.f32.mxu0 0.0
      %1307 = vmatmul.mubr.f32.gmra.mrb[0].mxu0 %v413
      %v1308 = vpop.f32.mrb[0].mxu0
      %v1309 = vadd.f32 %v1052, %v1308
      %v1310 = vpop.f32.mrb[0].mxu0
      %v1311 = vadd.f32 %v1054, %v1310
      %1312 = vmatprep.mubr.f32.mxu0 0.0
      %1313 = vmatmul.mubr.f32.gmra.mrb[0].mxu0 %v414
      %v1314 = vpop.f32.mrb[0].mxu0
      %v1315 = vadd.f32 %v1058, %v1314
      %v1316 = vpop.f32.mrb[0].mxu0
      %v1317 = vadd.f32 %v1060, %v1316
      %1318 = vmatprep.mubr.f32.mxu0 0.0
      %1319 = vmatmul.mubr.f32.gmra.mrb[0].mxu0 %v415
      %v1320 = vpop.f32.mrb[0].mxu0
      %v1321 = vadd.f32 %v1064, %v1320
      %v1322 = vpop.f32.mrb[0].mxu0
      %v1323 = vadd.f32 %v1066, %v1322
      %1324 = vmatprep.mubr.f32.mxu0 0.0
      %1325 = vmatmul.mubr.f32.gmra.mrb[0].mxu0 %v416
      %v1326 = vpop.f32.mrb[0].mxu0
      %v1327 = vadd.f32 %v1070, %v1326
      %v1328 = vpop.f32.mrb[0].mxu0
      %v1329 = vadd.f32 %v1072, %v1328
      %1330 = vmatprep.mubr.f32.mxu0 0.0
      %1331 = vmatmul.mubr.f32.gmra.mrb[0].mxu0 %v417
      %v1332 = vpop.f32.mrb[0].mxu0
      %v1333 = vadd.f32 %v1076, %v1332
      %v1334 = vpop.f32.mrb[0].mxu0
      %v1335 = vadd.f32 %v1078, %v1334
      %1336 = vmatprep.mubr.f32.mxu0 0.0
      %1337 = vmatmul.mubr.f32.gmra.mrb[0].mxu0 %v418
      %v1338 = vpop.f32.mrb[0].mxu0
      %v1339 = vadd.f32 %v1082, %v1338
      %v1340 = vpop.f32.mrb[0].mxu0
      %v1341 = vadd.f32 %v1084, %v1340
      %1342 = vmatprep.mubr.f32.mxu0 0.0
      %1343 = vmatmul.mubr.f32.gmra.mrb[0].mxu0 %v419
      %v1344 = vpop.f32.mrb[0].mxu0
      %v1345 = vadd.f32 %v1088, %v1344
      %v1346 = vpop.f32.mrb[0].mxu0
      %v1347 = vadd.f32 %v1090, %v1346
      %1348 = vmatprep.mubr.f32.mxu0 0.0
      %1349 = vmatmul.mubr.f32.gmra.mrb[0].mxu0 %v423
      %v1350 = vpop.f32.mrb[0].mxu0
      %v1351 = vadd.f32 %v1094, %v1350
      %v1352 = vpop.f32.mrb[0].mxu0
      %v1353 = vadd.f32 %v1096, %v1352
      %1354 = vdwg.mxu0
      %v1355 = vmax.f32 %v1165, %v1213
      %v1356 = vmax.f32 %v1167, %v1215
      %v1357 = vmax.f32 %v1171, %v1219
      %v1358 = vmax.f32 %v1173, %v1221
      %v1359 = vmax.f32 %v1177, %v1225
      %v1360 = vmax.f32 %v1179, %v1227
      %v1361 = vmax.f32 %v1183, %v1231
      %v1362 = vmax.f32 %v1185, %v1233
      %v1363 = vmax.f32 %v1189, %v1237
      %v1364 = vmax.f32 %v1191, %v1239
      %v1365 = vmax.f32 %v1195, %v1243
      %v1366 = vmax.f32 %v1197, %v1245
      %v1367 = vmax.f32 %v1201, %v1249
      %v1368 = vmax.f32 %v1203, %v1251
      %v1369 = vmax.f32 %v1207, %v1255
      %v1370 = vmax.f32 %v1209, %v1257
      %v1371 = vmax.f32 %v1261, %v1309
      %v1372 = vmax.f32 %v1263, %v1311
      %v1373 = vmax.f32 %v1267, %v1315
      %v1374 = vmax.f32 %v1269, %v1317
      %v1375 = vmax.f32 %v1273, %v1321
      %v1376 = vmax.f32 %v1275, %v1323
      %v1377 = vmax.f32 %v1279, %v1327
      %v1378 = vmax.f32 %v1281, %v1329
      %v1379 = vmax.f32 %v1285, %v1333
      %v1380 = vmax.f32 %v1287, %v1335
      %v1381 = vmax.f32 %v1291, %v1339
      %v1382 = vmax.f32 %v1293, %v1341
      %v1383 = vmax.f32 %v1297, %v1345
      %v1384 = vmax.f32 %v1299, %v1347
      %v1385 = vmax.f32 %v1303, %v1351
      %v1386 = vmax.f32 %v1305, %v1353
      %v1387 = vmax.f32 %v1355, %v1356
      %v1388 = vmax.f32 %v1357, %v1358
      %v1389 = vmax.f32 %v1359, %v1360
      %v1390 = vmax.f32 %v1361, %v1362
      %v1391 = vmax.f32 %v1363, %v1364
      %v1392 = vmax.f32 %v1365, %v1366
      %v1393 = vmax.f32 %v1367, %v1368
      %v1394 = vmax.f32 %v1369, %v1370
      %v1395 = vld [vmem:[%s2] sm:$0x1]
      %v1397 = vlaneseq
      %v1398 = vshrl.u32 %v1397, 7
      %v1399 = vsub.s32 0, %v1398
      %v1400 = vrot.slane %v1395, %v1399
      %v1402 = vadd.f32 %v1387, %v1400
      %v1403 = vadd.f32 %v1388, %v1400
      %v1404 = vadd.f32 %v1389, %v1400
      %v1405 = vadd.f32 %v1390, %v1400
      %v1406 = vadd.f32 %v1391, %v1400
      %v1407 = vadd.f32 %v1392, %v1400
      %v1408 = vadd.f32 %v1393, %v1400
      %v1409 = vadd.f32 %v1394, %v1400
      %v1410 = vmax.f32 %v1402, 0.0
      %v1411 = vmax.f32 %v1403, 0.0
      %v1412 = vmax.f32 %v1404, 0.0
      %v1413 = vmax.f32 %v1405, 0.0
      %v1414 = vmax.f32 %v1406, 0.0
      %v1415 = vmax.f32 %v1407, 0.0
      %v1416 = vmax.f32 %v1408, 0.0
      %v1417 = vmax.f32 %v1409, 0.0
      %v1418 = vmax.f32 %v1371, %v1372
      %v1419 = vmax.f32 %v1373, %v1374
      %v1420 = vmax.f32 %v1375, %v1376
      %v1421 = vmax.f32 %v1377, %v1378
      %v1422 = vmax.f32 %v1379, %v1380
      %v1423 = vmax.f32 %v1381, %v1382
      %v1424 = vmax.f32 %v1383, %v1384
      %v1425 = vmax.f32 %v1385, %v1386
      %v1426 = vadd.f32 %v1418, %v1400
      %v1427 = vadd.f32 %v1419, %v1400
      %v1428 = vadd.f32 %v1420, %v1400
      %v1429 = vadd.f32 %v1421, %v1400
      %v1430 = vadd.f32 %v1422, %v1400
      %v1431 = vadd.f32 %v1423, %v1400
      %v1432 = vadd.f32 %v1424, %v1400
      %v1433 = vadd.f32 %v1425, %v1400
      %v1434 = vmax.f32 %v1426, 0.0
      %v1435 = vmax.f32 %v1427, 0.0
      %v1436 = vmax.f32 %v1428, 0.0
      %v1437 = vmax.f32 %v1429, 0.0
      %v1438 = vmax.f32 %v1430, 0.0
      %v1439 = vmax.f32 %v1431, 0.0
      %v1440 = vmax.f32 %v1432, 0.0
      %v1441 = vmax.f32 %v1433, 0.0
      %v1442 = vld [vmem:[%s3] sm:$0xff]
      %v1443 = vld [vmem:[%s3 + $0x8] sm:$0xff]
      %v1444 = vld [vmem:[%s3 + $0x10] sm:$0xff]
      %v1445 = vld [vmem:[%s3 + $0x18] sm:$0xff]
      %v1446 = vld [vmem:[%s3 + $0x20] sm:$0xff]
      %v1447 = vld [vmem:[%s3 + $0x28] sm:$0xff]
      %v1448 = vld [vmem:[%s3 + $0x30] sm:$0xff]
      %v1449 = vld [vmem:[%s3 + $0x38] sm:$0xff]
      %v1450 = vld [vmem:[%s3 + $0x40] sm:$0xff]
      %v1451 = vld [vmem:[%s3 + $0x48] sm:$0xff]
      %v1452 = vld [vmem:[%s3 + $0x50] sm:$0xff]
      %v1453 = vld [vmem:[%s3 + $0x58] sm:$0xff]
      %v1454 = vld [vmem:[%s3 + $0x60] sm:$0xff]
      %v1455 = vld [vmem:[%s3 + $0x68] sm:$0xff]
      %v1456 = vld [vmem:[%s3 + $0x70] sm:$0xff]
      %v1457 = vld [vmem:[%s3 + $0x78] sm:$0xff]
      %v1458 = vld [vmem:[%s3 + $0x80] sm:$0xff]
      %v1459 = vld [vmem:[%s3 + $0x88] sm:$0xff]
      %v1460 = vld [vmem:[%s3 + $0x90] sm:$0xff]
      %v1461 = vld [vmem:[%s3 + $0x98] sm:$0xff]
      %v1462 = vld [vmem:[%s3 + $0xa0] sm:$0xff]
      %v1463 = vld [vmem:[%s3 + $0xa8] sm:$0xff]
      %v1464 = vld [vmem:[%s3 + $0xb0] sm:$0xff]
      %v1465 = vld [vmem:[%s3 + $0xb8] sm:$0xff]
      %v1466 = vld [vmem:[%s3 + $0xc0] sm:$0xff]
      %v1467 = vld [vmem:[%s3 + $0xc8] sm:$0xff]
      %v1468 = vld [vmem:[%s3 + $0xd0] sm:$0xff]
      %v1469 = vld [vmem:[%s3 + $0xd8] sm:$0xff]
      %v1470 = vld [vmem:[%s3 + $0xe0] sm:$0xff]
      %v1471 = vld [vmem:[%s3 + $0xe8] sm:$0xff]
      %v1472 = vld [vmem:[%s3 + $0xf0] sm:$0xff]
      %v1473 = vld [vmem:[%s3 + $0xf8] sm:$0xff]
      %v1474 = vld [vmem:[%s3 + $0x100] sm:$0xff]
      %v1475 = vld [vmem:[%s3 + $0x108] sm:$0xff]
      %v1476 = vld [vmem:[%s3 + $0x110] sm:$0xff]
      %v1477 = vld [vmem:[%s3 + $0x118] sm:$0xff]
      %v1478 = vld [vmem:[%s3 + $0x120] sm:$0xff]
      %v1479 = vld [vmem:[%s3 + $0x128] sm:$0xff]
      %v1480 = vld [vmem:[%s3 + $0x130] sm:$0xff]
      %v1481 = vld [vmem:[%s3 + $0x138] sm:$0xff]
      %v1482 = vld [vmem:[%s3 + $0x140] sm:$0xff]
      %v1483 = vld [vmem:[%s3 + $0x148] sm:$0xff]
      %v1484 = vld [vmem:[%s3 + $0x150] sm:$0xff]
      %v1485 = vld [vmem:[%s3 + $0x158] sm:$0xff]
      %v1486 = vld [vmem:[%s3 + $0x160] sm:$0xff]
      %v1487 = vld [vmem:[%s3 + $0x168] sm:$0xff]
      %v1488 = vld [vmem:[%s3 + $0x170] sm:$0xff]
      %v1489 = vld [vmem:[%s3 + $0x178] sm:$0xff]
      %v1490 = vld [vmem:[%s3 + $0x180] sm:$0xff]
      %v1491 = vld [vmem:[%s3 + $0x188] sm:$0xff]
      %v1492 = vld [vmem:[%s3 + $0x190] sm:$0xff]
      %v1493 = vld [vmem:[%s3 + $0x198] sm:$0xff]
      %v1494 = vld [vmem:[%s3 + $0x1a0] sm:$0xff]
      %v1495 = vld [vmem:[%s3 + $0x1a8] sm:$0xff]
      %v1496 = vld [vmem:[%s3 + $0x1b0] sm:$0xff]
      %v1497 = vld [vmem:[%s3 + $0x1b8] sm:$0xff]
      %v1498 = vld [vmem:[%s3 + $0x1c0] sm:$0xff]
      %v1499 = vld [vmem:[%s3 + $0x1c8] sm:$0xff]
      %v1500 = vld [vmem:[%s3 + $0x1d0] sm:$0xff]
      %v1501 = vld [vmem:[%s3 + $0x1d8] sm:$0xff]
      %v1502 = vld [vmem:[%s3 + $0x1e0] sm:$0xff]
      %v1503 = vld [vmem:[%s3 + $0x1e8] sm:$0xff]
      %v1504 = vld [vmem:[%s3 + $0x1f0] sm:$0xff]
      %v1505 = vld [vmem:[%s3 + $0x1f8] sm:$0xff]
      %v1506 = vld [vmem:[%s3 + $0x200] sm:$0xff]
      %v1507 = vld [vmem:[%s3 + $0x208] sm:$0xff]
      %v1508 = vld [vmem:[%s3 + $0x210] sm:$0xff]
      %v1509 = vld [vmem:[%s3 + $0x218] sm:$0xff]
      %v1510 = vld [vmem:[%s3 + $0x220] sm:$0xff]
      %v1511 = vld [vmem:[%s3 + $0x228] sm:$0xff]
      %v1512 = vld [vmem:[%s3 + $0x230] sm:$0xff]
      %v1513 = vld [vmem:[%s3 + $0x238] sm:$0xff]
      %v1514 = vld [vmem:[%s3 + $0x240] sm:$0xff]
      %v1515 = vld [vmem:[%s3 + $0x248] sm:$0xff]
      %v1516 = vld [vmem:[%s3 + $0x250] sm:$0xff]
      %v1517 = vld [vmem:[%s3 + $0x258] sm:$0xff]
      %v1518 = vld [vmem:[%s3 + $0x260] sm:$0xff]
      %v1519 = vld [vmem:[%s3 + $0x268] sm:$0xff]
      %v1520 = vld [vmem:[%s3 + $0x270] sm:$0xff]
      %v1521 = vld [vmem:[%s3 + $0x278] sm:$0xff]
      %v1522 = vld [vmem:[%s3 + $0x280] sm:$0xff]
      %v1523 = vld [vmem:[%s3 + $0x288] sm:$0xff]
      %v1524 = vld [vmem:[%s3 + $0x290] sm:$0xff]
      %v1525 = vld [vmem:[%s3 + $0x298] sm:$0xff]
      %v1526 = vld [vmem:[%s3 + $0x2a0] sm:$0xff]
      %v1527 = vld [vmem:[%s3 + $0x2a8] sm:$0xff]
      %v1528 = vld [vmem:[%s3 + $0x2b0] sm:$0xff]
      %v1529 = vld [vmem:[%s3 + $0x2b8] sm:$0xff]
      %v1530 = vld [vmem:[%s3 + $0x2c0] sm:$0xff]
      %v1531 = vld [vmem:[%s3 + $0x2c8] sm:$0xff]
      %v1532 = vld [vmem:[%s3 + $0x2d0] sm:$0xff]
      %v1533 = vld [vmem:[%s3 + $0x2d8] sm:$0xff]
      %v1534 = vld [vmem:[%s3 + $0x2e0] sm:$0xff]
      %v1535 = vld [vmem:[%s3 + $0x2e8] sm:$0xff]
      %v1536 = vld [vmem:[%s3 + $0x2f0] sm:$0xff]
      %v1537 = vld [vmem:[%s3 + $0x2f8] sm:$0xff]
      %v1538 = vld [vmem:[%s3 + $0x300] sm:$0xff]
      %v1539 = vld [vmem:[%s3 + $0x308] sm:$0xff]
      %v1540 = vld [vmem:[%s3 + $0x310] sm:$0xff]
      %v1541 = vld [vmem:[%s3 + $0x318] sm:$0xff]
      %v1542 = vld [vmem:[%s3 + $0x320] sm:$0xff]
      %v1543 = vld [vmem:[%s3 + $0x328] sm:$0xff]
      %v1544 = vld [vmem:[%s3 + $0x330] sm:$0xff]
      %v1545 = vld [vmem:[%s3 + $0x338] sm:$0xff]
      %v1546 = vld [vmem:[%s3 + $0x340] sm:$0xff]
      %v1547 = vld [vmem:[%s3 + $0x348] sm:$0xff]
      %v1548 = vld [vmem:[%s3 + $0x350] sm:$0xff]
      %v1549 = vld [vmem:[%s3 + $0x358] sm:$0xff]
      %v1550 = vld [vmem:[%s3 + $0x360] sm:$0xff]
      %v1551 = vld [vmem:[%s3 + $0x368] sm:$0xff]
      %v1552 = vld [vmem:[%s3 + $0x370] sm:$0xff]
      %v1553 = vld [vmem:[%s3 + $0x378] sm:$0xff]
      %v1554 = vld [vmem:[%s3 + $0x380] sm:$0xff]
      %v1555 = vld [vmem:[%s3 + $0x388] sm:$0xff]
      %v1556 = vld [vmem:[%s3 + $0x390] sm:$0xff]
      %v1557 = vld [vmem:[%s3 + $0x398] sm:$0xff]
      %v1558 = vld [vmem:[%s3 + $0x3a0] sm:$0xff]
      %v1559 = vld [vmem:[%s3 + $0x3a8] sm:$0xff]
      %v1560 = vld [vmem:[%s3 + $0x3b0] sm:$0xff]
      %v1561 = vld [vmem:[%s3 + $0x3b8] sm:$0xff]
      %v1562 = vld [vmem:[%s3 + $0x3c0] sm:$0xff]
      %v1563 = vld [vmem:[%s3 + $0x3c8] sm:$0xff]
      %v1564 = vld [vmem:[%s3 + $0x3d0] sm:$0xff]
      %v1565 = vld [vmem:[%s3 + $0x3d8] sm:$0xff]
      %v1566 = vld [vmem:[%s3 + $0x3e0] sm:$0xff]
      %v1567 = vld [vmem:[%s3 + $0x3e8] sm:$0xff]
      %v1568 = vld [vmem:[%s3 + $0x3f0] sm:$0xff]
      %v1569 = vld [vmem:[%s3 + $0x3f8] sm:$0xff]
      %v1570 = vld [vmem:[%s3 + $0x400] sm:$0xff]
      %v1571 = vld [vmem:[%s3 + $0x408] sm:$0xff]
      %v1572 = vld [vmem:[%s3 + $0x410] sm:$0xff]
      %v1573 = vld [vmem:[%s3 + $0x418] sm:$0xff]
      %v1574 = vld [vmem:[%s3 + $0x420] sm:$0xff]
      %v1575 = vld [vmem:[%s3 + $0x428] sm:$0xff]
      %v1576 = vld [vmem:[%s3 + $0x430] sm:$0xff]
      %v1577 = vld [vmem:[%s3 + $0x438] sm:$0xff]
      %v1578 = vld [vmem:[%s3 + $0x440] sm:$0xff]
      %v1579 = vld [vmem:[%s3 + $0x448] sm:$0xff]
      %v1580 = vld [vmem:[%s3 + $0x450] sm:$0xff]
      %v1581 = vld [vmem:[%s3 + $0x458] sm:$0xff]
      %v1582 = vld [vmem:[%s3 + $0x460] sm:$0xff]
      %v1583 = vld [vmem:[%s3 + $0x468] sm:$0xff]
      %v1584 = vld [vmem:[%s3 + $0x470] sm:$0xff]
      %v1585 = vld [vmem:[%s3 + $0x478] sm:$0xff]
      %v1586 = vld [vmem:[%s3 + $0x480] sm:$0xff]
      %v1587 = vld [vmem:[%s3 + $0x488] sm:$0xff]
      %v1588 = vld [vmem:[%s3 + $0x490] sm:$0xff]
      %v1589 = vld [vmem:[%s3 + $0x498] sm:$0xff]
      %v1590 = vld [vmem:[%s3 + $0x4a0] sm:$0xff]
      %v1591 = vld [vmem:[%s3 + $0x4a8] sm:$0xff]
      %v1592 = vld [vmem:[%s3 + $0x4b0] sm:$0xff]
      %v1593 = vld [vmem:[%s3 + $0x4b8] sm:$0xff]
      %v1594 = vld [vmem:[%s3 + $0x4c0] sm:$0xff]
      %v1595 = vld [vmem:[%s3 + $0x4c8] sm:$0xff]
      %v1596 = vld [vmem:[%s3 + $0x4d0] sm:$0xff]
      %v1597 = vld [vmem:[%s3 + $0x4d8] sm:$0xff]
      %v1598 = vld [vmem:[%s3 + $0x4e0] sm:$0xff]
      %v1599 = vld [vmem:[%s3 + $0x4e8] sm:$0xff]
      %v1600 = vld [vmem:[%s3 + $0x4f0] sm:$0xff]
      %v1601 = vld [vmem:[%s3 + $0x4f8] sm:$0xff]
      %1602 = vmatprep.subr.mxu0 %v1443
      %1603 = vmatpush1.msra.mxu0 %v1442
      %1604 = vmatprep.subr.mxu0 %v1445
      %1605 = vmatpush1.msra.mxu0 %v1444
      %1606 = vmatprep.subr.mxu0 %v1447
      %1607 = vmatpush1.msra.mxu0 %v1446
      %1608 = vmatprep.subr.mxu0 %v1449
      %1609 = vmatpush1.msra.mxu0 %v1448
      %1610 = vmatprep.subr.mxu0 %v1451
      %1611 = vmatpush1.msra.mxu0 %v1450
      %1612 = vmatprep.subr.mxu0 %v1453
      %1613 = vmatpush1.msra.mxu0 %v1452
      %1614 = vmatprep.subr.mxu0 %v1455
      %1615 = vmatpush1.msra.mxu0 %v1454
      %1616 = vmatprep.subr.mxu0 %v1457
      %1617 = vmatpush1.msra.mxu0 %v1456
      %1618 = vmatprep.subr.mxu0 %v1459
      %1619 = vmatpush1.msra.mxu0 %v1458
      %1620 = vmatprep.subr.mxu0 %v1461
      %1621 = vmatpush1.msra.mxu0 %v1460
      %1622 = vmatprep.subr.mxu0 %v1463
      %1623 = vmatpush1.msra.mxu0 %v1462
      %1624 = vmatprep.subr.mxu0 %v1465
      %1625 = vmatpush1.msra.mxu0 %v1464
      %1626 = vmatprep.subr.mxu0 %v1467
      %1627 = vmatpush1.msra.mxu0 %v1466
      %1628 = vmatprep.subr.mxu0 %v1469
      %1629 = vmatpush1.msra.mxu0 %v1468
      %1630 = vmatprep.subr.mxu0 %v1471
      %1631 = vmatpush1.msra.mxu0 %v1470
      %1632 = vmatprep.subr.mxu0 %v1473
      %1633 = vmatpush1.msra.mxu0 %v1472
      %1634 = vmatprep.subr.mxu0 %v1475
      %1635 = vmatpush1.msra.mxu0 %v1474
      %1636 = vmatprep.subr.mxu0 %v1477
      %1637 = vmatpush1.msra.mxu0 %v1476
      %1638 = vmatprep.subr.mxu0 %v1479
      %1639 = vmatpush1.msra.mxu0 %v1478
      %1640 = vmatprep.subr.mxu0 %v1481
      %1641 = vmatpush1.msra.mxu0 %v1480
      %1642 = vmatprep.subr.mxu0 %v1483
      %1643 = vmatpush1.msra.mxu0 %v1482
      %1644 = vmatprep.subr.mxu0 %v1485
      %1645 = vmatpush1.msra.mxu0 %v1484
      %1646 = vmatprep.subr.mxu0 %v1487
      %1647 = vmatpush1.msra.mxu0 %v1486
      %1648 = vmatprep.subr.mxu0 %v1489
      %1649 = vmatpush1.msra.mxu0 %v1488
      %1650 = vmatprep.subr.mxu0 %v1491
      %1651 = vmatpush1.msra.mxu0 %v1490
      %1652 = vmatprep.subr.mxu0 %v1493
      %1653 = vmatpush1.msra.mxu0 %v1492
      %1654 = vmatprep.subr.mxu0 %v1495
      %1655 = vmatpush1.msra.mxu0 %v1494
      %1656 = vmatprep.subr.mxu0 %v1497
      %1657 = vmatpush1.msra.mxu0 %v1496
      %1658 = vmatprep.subr.mxu0 %v1499
      %1659 = vmatpush1.msra.mxu0 %v1498
      %1660 = vmatprep.subr.mxu0 %v1501
      %1661 = vmatpush1.msra.mxu0 %v1500
      %1662 = vmatprep.subr.mxu0 %v1503
      %1663 = vmatpush1.msra.mxu0 %v1502
      %1664 = vmatprep.subr.mxu0 %v1505
      %1665 = vmatpush1.msra.mxu0 %v1504
      %1666 = vmatprep.mubr.f32.mxu0 %v1434
      %1667 = vmatmul.mubr.f32.gmra.mrb[0].mxu0 %v1410
      %v1668 = vpop.f32.mrb[0].mxu0
      %v1669 = vadd.f32 0.0, %v1668
      %v1670 = vpop.f32.mrb[0].mxu0
      %v1671 = vadd.f32 0.0, %v1670
      %1672 = vmatprep.mubr.f32.mxu0 %v1435
      %1673 = vmatmul.mubr.f32.gmra.mrb[0].mxu0 %v1411
      %v1674 = vpop.f32.mrb[0].mxu0
      %v1675 = vadd.f32 0.0, %v1674
      %v1676 = vpop.f32.mrb[0].mxu0
      %v1677 = vadd.f32 0.0, %v1676
      %1678 = vmatprep.mubr.f32.mxu0 %v1436
      %1679 = vmatmul.mubr.f32.gmra.mrb[0].mxu0 %v1412
      %v1680 = vpop.f32.mrb[0].mxu0
      %v1681 = vadd.f32 0.0, %v1680
      %v1682 = vpop.f32.mrb[0].mxu0
      %v1683 = vadd.f32 0.0, %v1682
      %1684 = vmatprep.mubr.f32.mxu0 %v1437
      %1685 = vmatmul.mubr.f32.gmra.mrb[0].mxu0 %v1413
      %v1686 = vpop.f32.mrb[0].mxu0
      %v1687 = vadd.f32 0.0, %v1686
      %v1688 = vpop.f32.mrb[0].mxu0
      %v1689 = vadd.f32 0.0, %v1688
      %1690 = vmatprep.mubr.f32.mxu0 %v1438
      %1691 = vmatmul.mubr.f32.gmra.mrb[0].mxu0 %v1414
      %v1692 = vpop.f32.mrb[0].mxu0
      %v1693 = vadd.f32 0.0, %v1692
      %v1694 = vpop.f32.mrb[0].mxu0
      %v1695 = vadd.f32 0.0, %v1694
      %1696 = vmatprep.mubr.f32.mxu0 %v1439
      %1697 = vmatmul.mubr.f32.gmra.mrb[0].mxu0 %v1415
      %v1698 = vpop.f32.mrb[0].mxu0
      %v1699 = vpop.f32.mrb[0].mxu0
      %1700 = vmatprep.mubr.f32.mxu0 %v1440
      %1701 = vmatmul.mubr.f32.gmra.mrb[0].mxu0 %v1416
      %v1702 = vpop.f32.mrb[0].mxu0
      %v1703 = vpop.f32.mrb[0].mxu0
      %1704 = vmatprep.mubr.f32.mxu0 %v1441
      %1705 = vmatmul.mubr.f32.gmra.mrb[0].mxu0 %v1417
      %v1706 = vpop.f32.mrb[0].mxu0
      %v1707 = vpop.f32.mrb[0].mxu0
      %1708 = vmatprep.mubr.f32.mxu0 %v1411
      %1709 = vmatmul.mubr.f32.gmra.mrb[0].mxu0 %v1434
      %v1710 = vpop.f32.mrb[0].mxu0
      %v1711 = vadd.f32 0.0, %v1710
      %v1712 = vpop.f32.mrb[0].mxu0
      %v1713 = vadd.f32 0.0, %v1712
      %1714 = vmatprep.mubr.f32.mxu0 %v1412
      %1715 = vmatmul.mubr.f32.gmra.mrb[0].mxu0 %v1435
      %v1716 = vpop.f32.mrb[0].mxu0
      %v1717 = vadd.f32 0.0, %v1716
      %v1718 = vpop.f32.mrb[0].mxu0
      %v1719 = vadd.f32 0.0, %v1718
      %1720 = vmatprep.mubr.f32.mxu0 %v1413
      %1721 = vmatmul.mubr.f32.gmra.mrb[0].mxu0 %v1436
      %v1722 = vpop.f32.mrb[0].mxu0
      %v1723 = vadd.f32 0.0, %v1722
      %v1724 = vpop.f32.mrb[0].mxu0
      %v1725 = vadd.f32 0.0, %v1724
      %1726 = vmatprep.mubr.f32.mxu0 %v1414
      %1727 = vmatmul.mubr.f32.gmra.mrb[0].mxu0 %v1437
      %v1728 = vpop.f32.mrb[0].mxu0
      %v1729 = vadd.f32 0.0, %v1728
      %v1730 = vpop.f32.mrb[0].mxu0
      %v1731 = vadd.f32 0.0, %v1730
      %1732 = vmatprep.mubr.f32.mxu0 %v1415
      %1733 = vmatmul.mubr.f32.gmra.mrb[0].mxu0 %v1438
      %v1734 = vpop.f32.mrb[0].mxu0
      %v1735 = vadd.f32 0.0, %v1734
      %v1736 = vpop.f32.mrb[0].mxu0
      %v1737 = vadd.f32 0.0, %v1736
      %1738 = vmatprep.mubr.f32.mxu0 %v1416
      %1739 = vmatmul.mubr.f32.gmra.mrb[0].mxu0 %v1439
      %v1740 = vpop.f32.mrb[0].mxu0
      %v1741 = vpop.f32.mrb[0].mxu0
      %1742 = vmatprep.mubr.f32.mxu0 %v1417
      %1743 = vmatmul.mubr.f32.gmra.mrb[0].mxu0 %v1440
      %v1744 = vpop.f32.mrb[0].mxu0
      %v1745 = vpop.f32.mrb[0].mxu0
      %1746 = vmatprep.mubr.f32.mxu0 0.0
      %1747 = vmatmul.mubr.f32.gmra.mrb[0].mxu0 %v1441
      %v1748 = vpop.f32.mrb[0].mxu0
      %v1749 = vpop.f32.mrb[0].mxu0
      %1750 = vdwg.mxu0
      %1751 = vmatprep.subr.mxu0 %v1507
      %1752 = vmatpush1.msra.mxu0 %v1506
      %1753 = vmatprep.subr.mxu0 %v1509
      %1754 = vmatpush1.msra.mxu0 %v1508
      %1755 = vmatprep.subr.mxu0 %v1511
      %1756 = vmatpush1.msra.mxu0 %v1510
      %1757 = vmatprep.subr.mxu0 %v1513
      %1758 = vmatpush1.msra.mxu0 %v1512
      %1759 = vmatprep.subr.mxu0 %v1515
      %1760 = vmatpush1.msra.mxu0 %v1514
      %1761 = vmatprep.subr.mxu0 %v1517
      %1762 = vmatpush1.msra.mxu0 %v1516
      %1763 = vmatprep.subr.mxu0 %v1519
      %1764 = vmatpush1.msra.mxu0 %v1518
      %1765 = vmatprep.subr.mxu0 %v1521
      %1766 = vmatpush1.msra.mxu0 %v1520
      %1767 = vmatprep.subr.mxu0 %v1523
      %1768 = vmatpush1.msra.mxu0 %v1522
      %1769 = vmatprep.subr.mxu0 %v1525
      %1770 = vmatpush1.msra.mxu0 %v1524
      %1771 = vmatprep.subr.mxu0 %v1527
      %1772 = vmatpush1.msra.mxu0 %v1526
      %1773 = vmatprep.subr.mxu0 %v1529
      %1774 = vmatpush1.msra.mxu0 %v1528
      %1775 = vmatprep.subr.mxu0 %v1531
      %1776 = vmatpush1.msra.mxu0 %v1530
      %1777 = vmatprep.subr.mxu0 %v1533
      %1778 = vmatpush1.msra.mxu0 %v1532
      %1779 = vmatprep.subr.mxu0 %v1535
      %1780 = vmatpush1.msra.mxu0 %v1534
      %1781 = vmatprep.subr.mxu0 %v1537
      %1782 = vmatpush1.msra.mxu0 %v1536
      %1783 = vmatprep.subr.mxu0 %v1539
      %1784 = vmatpush1.msra.mxu0 %v1538
      %1785 = vmatprep.subr.mxu0 %v1541
      %1786 = vmatpush1.msra.mxu0 %v1540
      %1787 = vmatprep.subr.mxu0 %v1543
      %1788 = vmatpush1.msra.mxu0 %v1542
      %1789 = vmatprep.subr.mxu0 %v1545
      %1790 = vmatpush1.msra.mxu0 %v1544
      %1791 = vmatprep.subr.mxu0 %v1547
      %1792 = vmatpush1.msra.mxu0 %v1546
      %1793 = vmatprep.subr.mxu0 %v1549
      %1794 = vmatpush1.msra.mxu0 %v1548
      %1795 = vmatprep.subr.mxu0 %v1551
      %1796 = vmatpush1.msra.mxu0 %v1550
      %1797 = vmatprep.subr.mxu0 %v1553
      %1798 = vmatpush1.msra.mxu0 %v1552
      %1799 = vmatprep.subr.mxu0 %v1555
      %1800 = vmatpush1.msra.mxu0 %v1554
      %1801 = vmatprep.subr.mxu0 %v1557
      %1802 = vmatpush1.msra.mxu0 %v1556
      %1803 = vmatprep.subr.mxu0 %v1559
      %1804 = vmatpush1.msra.mxu0 %v1558
      %1805 = vmatprep.subr.mxu0 %v1561
      %1806 = vmatpush1.msra.mxu0 %v1560
      %1807 = vmatprep.subr.mxu0 %v1563
      %1808 = vmatpush1.msra.mxu0 %v1562
      %1809 = vmatprep.subr.mxu0 %v1565
      %1810 = vmatpush1.msra.mxu0 %v1564
      %1811 = vmatprep.subr.mxu0 %v1567
      %1812 = vmatpush1.msra.mxu0 %v1566
      %1813 = vmatprep.subr.mxu0 %v1569
      %1814 = vmatpush1.msra.mxu0 %v1568
      %1815 = vmatprep.mubr.f32.mxu0 %v1435
      %1816 = vmatmul.mubr.f32.gmra.mrb[0].mxu0 %v1411
      %v1817 = vpop.f32.mrb[0].mxu0
      %v1818 = vadd.f32 %v1669, %v1817
      %v1819 = vpop.f32.mrb[0].mxu0
      %v1820 = vadd.f32 %v1671, %v1819
      %1821 = vmatprep.mubr.f32.mxu0 %v1436
      %1822 = vmatmul.mubr.f32.gmra.mrb[0].mxu0 %v1412
      %v1823 = vpop.f32.mrb[0].mxu0
      %v1824 = vadd.f32 %v1675, %v1823
      %v1825 = vpop.f32.mrb[0].mxu0
      %v1826 = vadd.f32 %v1677, %v1825
      %1827 = vmatprep.mubr.f32.mxu0 %v1437
      %1828 = vmatmul.mubr.f32.gmra.mrb[0].mxu0 %v1413
      %v1829 = vpop.f32.mrb[0].mxu0
      %v1830 = vadd.f32 %v1681, %v1829
      %v1831 = vpop.f32.mrb[0].mxu0
      %v1832 = vadd.f32 %v1683, %v1831
      %1833 = vmatprep.mubr.f32.mxu0 %v1438
      %1834 = vmatmul.mubr.f32.gmra.mrb[0].mxu0 %v1414
      %v1835 = vpop.f32.mrb[0].mxu0
      %v1836 = vadd.f32 %v1687, %v1835
      %v1837 = vpop.f32.mrb[0].mxu0
      %v1838 = vadd.f32 %v1689, %v1837
      %1839 = vmatprep.mubr.f32.mxu0 %v1439
      %1840 = vmatmul.mubr.f32.gmra.mrb[0].mxu0 %v1415
      %v1841 = vpop.f32.mrb[0].mxu0
      %v1842 = vadd.f32 %v1693, %v1841
      %v1843 = vpop.f32.mrb[0].mxu0
      %v1844 = vadd.f32 %v1695, %v1843
      %1845 = vmatprep.mubr.f32.mxu0 %v1440
      %1846 = vmatmul.mubr.f32.gmra.mrb[0].mxu0 %v1416
      %v1847 = vpop.f32.mrb[0].mxu0
      %v1848 = vpop.f32.mrb[0].mxu0
      %1849 = vmatprep.mubr.f32.mxu0 %v1441
      %1850 = vmatmul.mubr.f32.gmra.mrb[0].mxu0 %v1417
      %v1851 = vpop.f32.mrb[0].mxu0
      %v1852 = vpop.f32.mrb[0].mxu0
      %1853 = vmatprep.mubr.f32.mxu0 0.0
      %1854 = vmatmul.mubr.f32.gmra.mrb[0].mxu0 0.0
      %v1855 = vpop.f32.mrb[0].mxu0
      %v1856 = vpop.f32.mrb[0].mxu0
      %1857 = vmatprep.mubr.f32.mxu0 %v1412
      %1858 = vmatmul.mubr.f32.gmra.mrb[0].mxu0 %v1435
      %v1859 = vpop.f32.mrb[0].mxu0
      %v1860 = vadd.f32 %v1711, %v1859
      %v1861 = vpop.f32.mrb[0].mxu0
      %v1862 = vadd.f32 %v1713, %v1861
      %1863 = vmatprep.mubr.f32.mxu0 %v1413
      %1864 = vmatmul.mubr.f32.gmra.mrb[0].mxu0 %v1436
      %v1865 = vpop.f32.mrb[0].mxu0
      %v1866 = vadd.f32 %v1717, %v1865
      %v1867 = vpop.f32.mrb[0].mxu0
      %v1868 = vadd.f32 %v1719, %v1867
      %1869 = vmatprep.mubr.f32.mxu0 %v1414
      %1870 = vmatmul.mubr.f32.gmra.mrb[0].mxu0 %v1437
      %v1871 = vpop.f32.mrb[0].mxu0
      %v1872 = vadd.f32 %v1723, %v1871
      %v1873 = vpop.f32.mrb[0].mxu0
      %v1874 = vadd.f32 %v1725, %v1873
      %1875 = vmatprep.mubr.f32.mxu0 %v1415
      %1876 = vmatmul.mubr.f32.gmra.mrb[0].mxu0 %v1438
      %v1877 = vpop.f32.mrb[0].mxu0
      %v1878 = vadd.f32 %v1729, %v1877
      %v1879 = vpop.f32.mrb[0].mxu0
      %v1880 = vadd.f32 %v1731, %v1879
      %1881 = vmatprep.mubr.f32.mxu0 %v1416
      %1882 = vmatmul.mubr.f32.gmra.mrb[0].mxu0 %v1439
      %v1883 = vpop.f32.mrb[0].mxu0
      %v1884 = vadd.f32 %v1735, %v1883
      %v1885 = vpop.f32.mrb[0].mxu0
      %v1886 = vadd.f32 %v1737, %v1885
      %1887 = vmatprep.mubr.f32.mxu0 %v1417
      %1888 = vmatmul.mubr.f32.gmra.mrb[0].mxu0 %v1440
      %v1889 = vpop.f32.mrb[0].mxu0
      %v1890 = vpop.f32.mrb[0].mxu0
      %1891 = vmatprep.mubr.f32.mxu0 0.0
      %1892 = vmatmul.mubr.f32.gmra.mrb[0].mxu0 %v1441
      %v1893 = vpop.f32.mrb[0].mxu0
      %v1894 = vpop.f32.mrb[0].mxu0
      %1895 = vmatprep.mubr.f32.mxu0 0.0
      %1896 = vmatmul.mubr.f32.gmra.mrb[0].mxu0 0.0
      %v1897 = vpop.f32.mrb[0].mxu0
      %v1898 = vpop.f32.mrb[0].mxu0
      %1899 = vdwg.mxu0
      %1900 = vmatprep.subr.mxu0 %v1571
      %1901 = vmatpush1.msra.mxu0 %v1570
      %1902 = vmatprep.subr.mxu0 %v1573
      %1903 = vmatpush1.msra.mxu0 %v1572
      %1904 = vmatprep.subr.mxu0 %v1575
      %1905 = vmatpush1.msra.mxu0 %v1574
      %1906 = vmatprep.subr.mxu0 %v1577
      %1907 = vmatpush1.msra.mxu0 %v1576
      %1908 = vmatprep.subr.mxu0 %v1579
      %1909 = vmatpush1.msra.mxu0 %v1578
      %1910 = vmatprep.subr.mxu0 %v1581
      %1911 = vmatpush1.msra.mxu0 %v1580
      %1912 = vmatprep.subr.mxu0 %v1583
      %1913 = vmatpush1.msra.mxu0 %v1582
      %1914 = vmatprep.subr.mxu0 %v1585
      %1915 = vmatpush1.msra.mxu0 %v1584
      %1916 = vmatprep.subr.mxu0 %v1587
      %1917 = vmatpush1.msra.mxu0 %v1586
      %1918 = vmatprep.subr.mxu0 %v1589
      %1919 = vmatpush1.msra.mxu0 %v1588
      %1920 = vmatprep.subr.mxu0 %v1591
      %1921 = vmatpush1.msra.mxu0 %v1590
      %1922 = vmatprep.subr.mxu0 %v1593
      %1923 = vmatpush1.msra.mxu0 %v1592
      %1924 = vmatprep.subr.mxu0 %v1595
      %1925 = vmatpush1.msra.mxu0 %v1594
      %1926 = vmatprep.subr.mxu0 %v1597
      %1927 = vmatpush1.msra.mxu0 %v1596
      %1928 = vmatprep.subr.mxu0 %v1599
      %1929 = vmatpush1.msra.mxu0 %v1598
      %1930 = vmatprep.subr.mxu0 %v1601
      %1931 = vmatpush1.msra.mxu0 %v1600
      %1932 = vmatprep.subr.mxu0 0.0
      %1933 = vmatpush1.msra.mxu0 0.0
      %1934 = vmatprep.subr.mxu0 0.0
      %1935 = vmatpush1.msra.mxu0 0.0
      %1936 = vmatprep.subr.mxu0 0.0
      %1937 = vmatpush1.msra.mxu0 0.0
      %1938 = vmatprep.subr.mxu0 0.0
      %1939 = vmatpush1.msra.mxu0 0.0
      %1940 = vmatprep.subr.mxu0 0.0
      %1941 = vmatpush1.msra.mxu0 0.0
      %1942 = vmatprep.subr.mxu0 0.0
      %1943 = vmatpush1.msra.mxu0 0.0
      %1944 = vmatprep.subr.mxu0 0.0
      %1945 = vmatpush1.msra.mxu0 0.0
      %1946 = vmatprep.subr.mxu0 0.0
      %1947 = vmatpush1.msra.mxu0 0.0
      %1948 = vmatprep.subr.mxu0 0.0
      %1949 = vmatpush1.msra.mxu0 0.0
      %1950 = vmatprep.subr.mxu0 0.0
      %1951 = vmatpush1.msra.mxu0 0.0
      %1952 = vmatprep.subr.mxu0 0.0
      %1953 = vmatpush1.msra.mxu0 0.0
      %1954 = vmatprep.subr.mxu0 0.0
      %1955 = vmatpush1.msra.mxu0 0.0
      %1956 = vmatprep.subr.mxu0 0.0
      %1957 = vmatpush1.msra.mxu0 0.0
      %1958 = vmatprep.subr.mxu0 0.0
      %1959 = vmatpush1.msra.mxu0 0.0
      %1960 = vmatprep.subr.mxu0 0.0
      %1961 = vmatpush1.msra.mxu0 0.0
      %1962 = vmatprep.subr.mxu0 0.0
      %1963 = vmatpush1.msra.mxu0 0.0
      %1964 = vmatprep.mubr.f32.mxu0 0.0
      %1965 = vmatmul.mubr.f32.gmra.mrb[0].mxu0 %v1412
      %v1966 = vpop.f32.mrb[0].mxu0
      %v1967 = vadd.f32 %v1818, %v1966
      %v1968 = vpop.f32.mrb[0].mxu0
      %v1969 = vadd.f32 %v1820, %v1968
      %1970 = vmatprep.mubr.f32.mxu0 0.0
      %1971 = vmatmul.mubr.f32.gmra.mrb[0].mxu0 %v1413
      %v1972 = vpop.f32.mrb[0].mxu0
      %v1973 = vadd.f32 %v1824, %v1972
      %v1974 = vpop.f32.mrb[0].mxu0
      %v1975 = vadd.f32 %v1826, %v1974
      %1976 = vmatprep.mubr.f32.mxu0 0.0
      %1977 = vmatmul.mubr.f32.gmra.mrb[0].mxu0 %v1414
      %v1978 = vpop.f32.mrb[0].mxu0
      %v1979 = vadd.f32 %v1830, %v1978
      %v1980 = vpop.f32.mrb[0].mxu0
      %v1981 = vadd.f32 %v1832, %v1980
      %1982 = vmatprep.mubr.f32.mxu0 0.0
      %1983 = vmatmul.mubr.f32.gmra.mrb[0].mxu0 %v1415
      %v1984 = vpop.f32.mrb[0].mxu0
      %v1985 = vadd.f32 %v1836, %v1984
      %v1986 = vpop.f32.mrb[0].mxu0
      %v1987 = vadd.f32 %v1838, %v1986
      %1988 = vmatprep.mubr.f32.mxu0 0.0
      %1989 = vmatmul.mubr.f32.gmra.mrb[0].mxu0 %v1416
      %v1990 = vpop.f32.mrb[0].mxu0
      %v1991 = vadd.f32 %v1842, %v1990
      %v1992 = vpop.f32.mrb[0].mxu0
      %v1993 = vadd.f32 %v1844, %v1992
      %1994 = vmatprep.mubr.f32.mxu0 0.0
      %1995 = vmatmul.mubr.f32.gmra.mrb[0].mxu0 %v1417
      %v1996 = vpop.f32.mrb[0].mxu0
      %v1997 = vpop.f32.mrb[0].mxu0
      %1998 = vmatprep.mubr.f32.mxu0 0.0
      %1999 = vmatmul.mubr.f32.gmra.mrb[0].mxu0 0.0
      %v2000 = vpop.f32.mrb[0].mxu0
      %v2001 = vpop.f32.mrb[0].mxu0
      %2002 = vmatprep.mubr.f32.mxu0 0.0
      %2003 = vmatmul.mubr.f32.gmra.mrb[0].mxu0 0.0
      %v2004 = vpop.f32.mrb[0].mxu0
      %v2005 = vpop.f32.mrb[0].mxu0
      %2006 = vmatprep.mubr.f32.mxu0 0.0
      %2007 = vmatmul.mubr.f32.gmra.mrb[0].mxu0 %v1436
      %v2008 = vpop.f32.mrb[0].mxu0
      %v2009 = vadd.f32 %v1860, %v2008
      %v2010 = vpop.f32.mrb[0].mxu0
      %v2011 = vadd.f32 %v1862, %v2010
      %2012 = vmatprep.mubr.f32.mxu0 0.0
      %2013 = vmatmul.mubr.f32.gmra.mrb[0].mxu0 %v1437
      %v2014 = vpop.f32.mrb[0].mxu0
      %v2015 = vadd.f32 %v1866, %v2014
      %v2016 = vpop.f32.mrb[0].mxu0
      %v2017 = vadd.f32 %v1868, %v2016
      %2018 = vmatprep.mubr.f32.mxu0 0.0
      %2019 = vmatmul.mubr.f32.gmra.mrb[0].mxu0 %v1438
      %v2020 = vpop.f32.mrb[0].mxu0
      %v2021 = vadd.f32 %v1872, %v2020
      %v2022 = vpop.f32.mrb[0].mxu0
      %v2023 = vadd.f32 %v1874, %v2022
      %2024 = vmatprep.mubr.f32.mxu0 0.0
      %2025 = vmatmul.mubr.f32.gmra.mrb[0].mxu0 %v1439
      %v2026 = vpop.f32.mrb[0].mxu0
      %v2027 = vadd.f32 %v1878, %v2026
      %v2028 = vpop.f32.mrb[0].mxu0
      %v2029 = vadd.f32 %v1880, %v2028
      %2030 = vmatprep.mubr.f32.mxu0 0.0
      %2031 = vmatmul.mubr.f32.gmra.mrb[0].mxu0 %v1440
      %v2032 = vpop.f32.mrb[0].mxu0
      %v2033 = vadd.f32 %v1884, %v2032
      %v2034 = vpop.f32.mrb[0].mxu0
      %v2035 = vadd.f32 %v1886, %v2034
      %2036 = vmatprep.mubr.f32.mxu0 0.0
      %2037 = vmatmul.mubr.f32.gmra.mrb[0].mxu0 %v1441
      %v2038 = vpop.f32.mrb[0].mxu0
      %v2039 = vpop.f32.mrb[0].mxu0
      %2040 = vmatprep.mubr.f32.mxu0 0.0
      %2041 = vmatmul.mubr.f32.gmra.mrb[0].mxu0 0.0
      %v2042 = vpop.f32.mrb[0].mxu0
      %v2043 = vpop.f32.mrb[0].mxu0
      %2044 = vmatprep.mubr.f32.mxu0 0.0
      %2045 = vmatmul.mubr.f32.gmra.mrb[0].mxu0 0.0
      %v2046 = vpop.f32.mrb[0].mxu0
      %v2047 = vpop.f32.mrb[0].mxu0
      %2048 = vdwg.mxu0
      %v2049 = vmax.f32 %v1967, %v2009
      %v2050 = vmax.f32 %v1969, %v2011
      %v2051 = vmax.f32 %v1973, %v2015
      %v2052 = vmax.f32 %v1975, %v2017
      %v2053 = vmax.f32 %v1979, %v2021
      %v2054 = vmax.f32 %v1981, %v2023
      %v2055 = vmax.f32 %v1985, %v2027
      %v2056 = vmax.f32 %v1987, %v2029
      %v2057 = vmax.f32 %v1991, %v2033
      %v2058 = vmax.f32 %v1993, %v2035
      %v2059 = vmax.f32 %v2049, %v2050
      %v2060 = vmax.f32 %v2051, %v2052
      %v2061 = vmax.f32 %v2053, %v2054
      %v2062 = vmax.f32 %v2055, %v2056
      %v2063 = vmax.f32 %v2057, %v2058
      %v2064 = vld [vmem:[%s4] sm:$0x1]
      %v2066 = vlaneseq
      %v2067 = vshrl.u32 %v2066, 7
      %v2068 = vsub.s32 0, %v2067
      %v2069 = vrot.slane %v2064, %v2068
      %v2071 = vadd.f32 %v2059, %v2069
      %v2072 = vadd.f32 %v2060, %v2069
      %v2073 = vadd.f32 %v2061, %v2069
      %v2074 = vadd.f32 %v2062, %v2069
      %v2075 = vadd.f32 %v2063, %v2069
      %v2076 = vmax.f32 %v2071, 0.0
      %v2077 = vmax.f32 %v2072, 0.0
      %v2078 = vmax.f32 %v2073, 0.0
      %v2079 = vmax.f32 %v2074, 0.0
      %v2080 = vmax.f32 %v2075, 0.0
      %v2081 = vld [vmem:[%s5] sm:$0xff]
      %v2082 = vld [vmem:[%s5 + $0x8] sm:$0xff]
      %v2083 = vld [vmem:[%s5 + $0x10] sm:$0xff]
      %v2084 = vld [vmem:[%s5 + $0x18] sm:$0xff]
      %v2085 = vld [vmem:[%s5 + $0x20] sm:$0xff]
      %v2086 = vld [vmem:[%s5 + $0x28] sm:$0xff]
      %v2087 = vld [vmem:[%s5 + $0x30] sm:$0xff]
      %v2088 = vld [vmem:[%s5 + $0x38] sm:$0xff]
      %v2089 = vld [vmem:[%s5 + $0x40] sm:$0xff]
      %v2090 = vld [vmem:[%s5 + $0x48] sm:$0xff]
      %v2091 = vld [vmem:[%s5 + $0x50] sm:$0xff]
      %v2092 = vld [vmem:[%s5 + $0x58] sm:$0xff]
      %v2093 = vld [vmem:[%s5 + $0x60] sm:$0xff]
      %v2094 = vld [vmem:[%s5 + $0x68] sm:$0xff]
      %v2095 = vld [vmem:[%s5 + $0x70] sm:$0xff]
      %v2096 = vld [vmem:[%s5 + $0x78] sm:$0xff]
      %v2097 = vld [vmem:[%s5 + $0x80] sm:$0xff]
      %v2098 = vld [vmem:[%s5 + $0x88] sm:$0xff]
      %v2099 = vld [vmem:[%s5 + $0x90] sm:$0xff]
      %v2100 = vld [vmem:[%s5 + $0x98] sm:$0xff]
      %v2101 = vld [vmem:[%s5 + $0xa0] sm:$0xff]
      %v2102 = vld [vmem:[%s5 + $0xa8] sm:$0xff]
      %v2103 = vld [vmem:[%s5 + $0xb0] sm:$0xff]
      %v2104 = vld [vmem:[%s5 + $0xb8] sm:$0xff]
      %v2105 = vld [vmem:[%s5 + $0xc0] sm:$0xff]
      %v2106 = vld [vmem:[%s5 + $0xc8] sm:$0xff]
      %v2107 = vld [vmem:[%s5 + $0xd0] sm:$0xff]
      %v2108 = vld [vmem:[%s5 + $0xd8] sm:$0xff]
      %v2109 = vld [vmem:[%s5 + $0xe0] sm:$0xff]
      %v2110 = vld [vmem:[%s5 + $0xe8] sm:$0xff]
      %v2111 = vld [vmem:[%s5 + $0xf0] sm:$0xff]
      %v2112 = vld [vmem:[%s5 + $0xf8] sm:$0xff]
      %v2113 = vld [vmem:[%s5 + $0x100] sm:$0xff]
      %v2114 = vld [vmem:[%s5 + $0x108] sm:$0xff]
      %v2115 = vld [vmem:[%s5 + $0x110] sm:$0xff]
      %v2116 = vld [vmem:[%s5 + $0x118] sm:$0xff]
      %v2117 = vld [vmem:[%s5 + $0x120] sm:$0xff]
      %v2118 = vld [vmem:[%s5 + $0x128] sm:$0xff]
      %v2119 = vld [vmem:[%s5 + $0x130] sm:$0xff]
      %v2120 = vld [vmem:[%s5 + $0x138] sm:$0xff]
      %v2121 = vld [vmem:[%s5 + $0x140] sm:$0xff]
      %v2122 = vld [vmem:[%s5 + $0x148] sm:$0xff]
      %v2123 = vld [vmem:[%s5 + $0x150] sm:$0xff]
      %v2124 = vld [vmem:[%s5 + $0x158] sm:$0xff]
      %v2125 = vld [vmem:[%s5 + $0x160] sm:$0xff]
      %v2126 = vld [vmem:[%s5 + $0x168] sm:$0xff]
      %v2127 = vld [vmem:[%s5 + $0x170] sm:$0xff]
      %v2128 = vld [vmem:[%s5 + $0x178] sm:$0xff]
      %v2129 = vld [vmem:[%s5 + $0x180] sm:$0xff]
      %v2130 = vld [vmem:[%s5 + $0x188] sm:$0xff]
      %v2131 = vld [vmem:[%s5 + $0x190] sm:$0xff]
      %v2132 = vld [vmem:[%s5 + $0x198] sm:$0xff]
      %v2133 = vld [vmem:[%s5 + $0x1a0] sm:$0xff]
      %v2134 = vld [vmem:[%s5 + $0x1a8] sm:$0xff]
      %v2135 = vld [vmem:[%s5 + $0x1b0] sm:$0xff]
      %v2136 = vld [vmem:[%s5 + $0x1b8] sm:$0xff]
      %v2137 = vld [vmem:[%s5 + $0x1c0] sm:$0xff]
      %v2138 = vld [vmem:[%s5 + $0x1c8] sm:$0xff]
      %v2139 = vld [vmem:[%s5 + $0x1d0] sm:$0xff]
      %v2140 = vld [vmem:[%s5 + $0x1d8] sm:$0xff]
      %v2141 = vld [vmem:[%s5 + $0x1e0] sm:$0xff]
      %v2142 = vld [vmem:[%s5 + $0x1e8] sm:$0xff]
      %v2143 = vld [vmem:[%s5 + $0x1f0] sm:$0xff]
      %v2144 = vld [vmem:[%s5 + $0x1f8] sm:$0xff]
      %v2145 = vld [vmem:[%s5 + $0x200] sm:$0xff]
      %v2146 = vld [vmem:[%s5 + $0x208] sm:$0xff]
      %v2147 = vld [vmem:[%s5 + $0x210] sm:$0xff]
      %v2148 = vld [vmem:[%s5 + $0x218] sm:$0xff]
      %v2149 = vld [vmem:[%s5 + $0x220] sm:$0xff]
      %v2150 = vld [vmem:[%s5 + $0x228] sm:$0xff]
      %v2151 = vld [vmem:[%s5 + $0x230] sm:$0xff]
      %v2152 = vld [vmem:[%s5 + $0x238] sm:$0xff]
      %v2153 = vld [vmem:[%s5 + $0x240] sm:$0xff]
      %v2154 = vld [vmem:[%s5 + $0x248] sm:$0xff]
      %v2155 = vld [vmem:[%s5 + $0x250] sm:$0xff]
      %v2156 = vld [vmem:[%s5 + $0x258] sm:$0xff]
      %v2157 = vld [vmem:[%s5 + $0x260] sm:$0xff]
      %v2158 = vld [vmem:[%s5 + $0x268] sm:$0xff]
      %v2159 = vld [vmem:[%s5 + $0x270] sm:$0xff]
      %v2160 = vld [vmem:[%s5 + $0x278] sm:$0xff]
      %v2161 = vld [vmem:[%s6] sm:$0x1]
      %v2163 = vlaneseq
      %v2164 = vshrl.u32 %v2163, 7
      %v2165 = vsub.s32 0, %v2164
      %v2166 = vrot.slane %v2161, %v2165
      %2168 = vmatprep.subr.mxu0 0.0
      %2169 = vmatpush1.msra.mxu0 %v2081
      %2170 = vmatprep.subr.mxu0 0.0
      %2171 = vmatpush1.msra.mxu0 %v2082
      %2172 = vmatprep.subr.mxu0 0.0
      %2173 = vmatpush1.msra.mxu0 %v2083
      %2174 = vmatprep.subr.mxu0 0.0
      %2175 = vmatpush1.msra.mxu0 %v2084
      %2176 = vmatprep.subr.mxu0 0.0
      %2177 = vmatpush1.msra.mxu0 %v2085
      %2178 = vmatprep.subr.mxu0 0.0
      %2179 = vmatpush1.msra.mxu0 %v2086
      %2180 = vmatprep.subr.mxu0 0.0
      %2181 = vmatpush1.msra.mxu0 %v2087
      %2182 = vmatprep.subr.mxu0 0.0
      %2183 = vmatpush1.msra.mxu0 %v2088
      %2184 = vmatprep.subr.mxu0 0.0
      %2185 = vmatpush1.msra.mxu0 %v2089
      %2186 = vmatprep.subr.mxu0 0.0
      %2187 = vmatpush1.msra.mxu0 %v2090
      %2188 = vmatprep.subr.mxu0 0.0
      %2189 = vmatpush1.msra.mxu0 %v2091
      %2190 = vmatprep.subr.mxu0 0.0
      %2191 = vmatpush1.msra.mxu0 %v2092
      %2192 = vmatprep.subr.mxu0 0.0
      %2193 = vmatpush1.msra.mxu0 %v2093
      %2194 = vmatprep.subr.mxu0 0.0
      %2195 = vmatpush1.msra.mxu0 %v2094
      %2196 = vmatprep.subr.mxu0 0.0
      %2197 = vmatpush1.msra.mxu0 %v2095
      %2198 = vmatprep.subr.mxu0 0.0
      %2199 = vmatpush1.msra.mxu0 %v2096
      %2200 = vmatprep.subr.mxu0 0.0
      %2201 = vmatpush1.msra.mxu0 %v2097
      %2202 = vmatprep.subr.mxu0 0.0
      %2203 = vmatpush1.msra.mxu0 %v2098
      %2204 = vmatprep.subr.mxu0 0.0
      %2205 = vmatpush1.msra.mxu0 %v2099
      %2206 = vmatprep.subr.mxu0 0.0
      %2207 = vmatpush1.msra.mxu0 %v2100
      %2208 = vmatprep.subr.mxu0 0.0
      %2209 = vmatpush1.msra.mxu0 %v2101
      %2210 = vmatprep.subr.mxu0 0.0
      %2211 = vmatpush1.msra.mxu0 %v2102
      %2212 = vmatprep.subr.mxu0 0.0
      %2213 = vmatpush1.msra.mxu0 %v2103
      %2214 = vmatprep.subr.mxu0 0.0
      %2215 = vmatpush1.msra.mxu0 %v2104
      %2216 = vmatprep.subr.mxu0 0.0
      %2217 = vmatpush1.msra.mxu0 %v2105
      %2218 = vmatprep.subr.mxu0 0.0
      %2219 = vmatpush1.msra.mxu0 %v2106
      %2220 = vmatprep.subr.mxu0 0.0
      %2221 = vmatpush1.msra.mxu0 %v2107
      %2222 = vmatprep.subr.mxu0 0.0
      %2223 = vmatpush1.msra.mxu0 %v2108
      %2224 = vmatprep.subr.mxu0 0.0
      %2225 = vmatpush1.msra.mxu0 %v2109
      %2226 = vmatprep.subr.mxu0 0.0
      %2227 = vmatpush1.msra.mxu0 %v2110
      %2228 = vmatprep.subr.mxu0 0.0
      %2229 = vmatpush1.msra.mxu0 %v2111
      %2230 = vmatprep.subr.mxu0 0.0
      %2231 = vmatpush1.msra.mxu0 %v2112
      %2232 = vmatprep.mubr.f32.mxu0 %v2077
      %2233 = vmatmul.mubr.f32.gmra.mrb[0].mxu0 %v2076
      %v2234 = vpop.f32.mrb[0].mxu0
      %v2235 = vadd.f32 %v2166, %v2234
      %v2236 = vpop.f32.mrb[0].mxu0
      %2237 = vdwg.mxu0
      %2238 = vmatprep.subr.mxu0 0.0
      %2239 = vmatpush1.msra.mxu0 %v2113
      %2240 = vmatprep.subr.mxu0 0.0
      %2241 = vmatpush1.msra.mxu0 %v2114
      %2242 = vmatprep.subr.mxu0 0.0
      %2243 = vmatpush1.msra.mxu0 %v2115
      %2244 = vmatprep.subr.mxu0 0.0
      %2245 = vmatpush1.msra.mxu0 %v2116
      %2246 = vmatprep.subr.mxu0 0.0
      %2247 = vmatpush1.msra.mxu0 %v2117
      %2248 = vmatprep.subr.mxu0 0.0
      %2249 = vmatpush1.msra.mxu0 %v2118
      %2250 = vmatprep.subr.mxu0 0.0
      %2251 = vmatpush1.msra.mxu0 %v2119
      %2252 = vmatprep.subr.mxu0 0.0
      %2253 = vmatpush1.msra.mxu0 %v2120
      %2254 = vmatprep.subr.mxu0 0.0
      %2255 = vmatpush1.msra.mxu0 %v2121
      %2256 = vmatprep.subr.mxu0 0.0
      %2257 = vmatpush1.msra.mxu0 %v2122
      %2258 = vmatprep.subr.mxu0 0.0
      %2259 = vmatpush1.msra.mxu0 %v2123
      %2260 = vmatprep.subr.mxu0 0.0
      %2261 = vmatpush1.msra.mxu0 %v2124
      %2262 = vmatprep.subr.mxu0 0.0
      %2263 = vmatpush1.msra.mxu0 %v2125
      %2264 = vmatprep.subr.mxu0 0.0
      %2265 = vmatpush1.msra.mxu0 %v2126
      %2266 = vmatprep.subr.mxu0 0.0
      %2267 = vmatpush1.msra.mxu0 %v2127
      %2268 = vmatprep.subr.mxu0 0.0
      %2269 = vmatpush1.msra.mxu0 %v2128
      %2270 = vmatprep.subr.mxu0 0.0
      %2271 = vmatpush1.msra.mxu0 %v2129
      %2272 = vmatprep.subr.mxu0 0.0
      %2273 = vmatpush1.msra.mxu0 %v2130
      %2274 = vmatprep.subr.mxu0 0.0
      %2275 = vmatpush1.msra.mxu0 %v2131
      %2276 = vmatprep.subr.mxu0 0.0
      %2277 = vmatpush1.msra.mxu0 %v2132
      %2278 = vmatprep.subr.mxu0 0.0
      %2279 = vmatpush1.msra.mxu0 %v2133
      %2280 = vmatprep.subr.mxu0 0.0
      %2281 = vmatpush1.msra.mxu0 %v2134
      %2282 = vmatprep.subr.mxu0 0.0
      %2283 = vmatpush1.msra.mxu0 %v2135
      %2284 = vmatprep.subr.mxu0 0.0
      %2285 = vmatpush1.msra.mxu0 %v2136
      %2286 = vmatprep.subr.mxu0 0.0
      %2287 = vmatpush1.msra.mxu0 %v2137
      %2288 = vmatprep.subr.mxu0 0.0
      %2289 = vmatpush1.msra.mxu0 %v2138
      %2290 = vmatprep.subr.mxu0 0.0
      %2291 = vmatpush1.msra.mxu0 %v2139
      %2292 = vmatprep.subr.mxu0 0.0
      %2293 = vmatpush1.msra.mxu0 %v2140
      %2294 = vmatprep.subr.mxu0 0.0
      %2295 = vmatpush1.msra.mxu0 %v2141
      %2296 = vmatprep.subr.mxu0 0.0
      %2297 = vmatpush1.msra.mxu0 %v2142
      %2298 = vmatprep.subr.mxu0 0.0
      %2299 = vmatpush1.msra.mxu0 %v2143
      %2300 = vmatprep.subr.mxu0 0.0
      %2301 = vmatpush1.msra.mxu0 %v2144
      %2302 = vmatprep.mubr.f32.mxu0 %v2079
      %2303 = vmatmul.mubr.f32.gmra.mrb[0].mxu0 %v2078
      %v2304 = vpop.f32.mrb[0].mxu0
      %v2305 = vadd.f32 %v2235, %v2304
      %v2306 = vpop.f32.mrb[0].mxu0
      %2307 = vdwg.mxu0
      %2308 = vmatprep.subr.mxu0 0.0
      %2309 = vmatpush1.msra.mxu0 %v2145
      %2310 = vmatprep.subr.mxu0 0.0
      %2311 = vmatpush1.msra.mxu0 %v2146
      %2312 = vmatprep.subr.mxu0 0.0
      %2313 = vmatpush1.msra.mxu0 %v2147
      %2314 = vmatprep.subr.mxu0 0.0
      %2315 = vmatpush1.msra.mxu0 %v2148
      %2316 = vmatprep.subr.mxu0 0.0
      %2317 = vmatpush1.msra.mxu0 %v2149
      %2318 = vmatprep.subr.mxu0 0.0
      %2319 = vmatpush1.msra.mxu0 %v2150
      %2320 = vmatprep.subr.mxu0 0.0
      %2321 = vmatpush1.msra.mxu0 %v2151
      %2322 = vmatprep.subr.mxu0 0.0
      %2323 = vmatpush1.msra.mxu0 %v2152
      %2324 = vmatprep.subr.mxu0 0.0
      %2325 = vmatpush1.msra.mxu0 %v2153
      %2326 = vmatprep.subr.mxu0 0.0
      %2327 = vmatpush1.msra.mxu0 %v2154
      %2328 = vmatprep.subr.mxu0 0.0
      %2329 = vmatpush1.msra.mxu0 %v2155
      %2330 = vmatprep.subr.mxu0 0.0
      %2331 = vmatpush1.msra.mxu0 %v2156
      %2332 = vmatprep.subr.mxu0 0.0
      %2333 = vmatpush1.msra.mxu0 %v2157
      %2334 = vmatprep.subr.mxu0 0.0
      %2335 = vmatpush1.msra.mxu0 %v2158
      %2336 = vmatprep.subr.mxu0 0.0
      %2337 = vmatpush1.msra.mxu0 %v2159
      %2338 = vmatprep.subr.mxu0 0.0
      %2339 = vmatpush1.msra.mxu0 %v2160
      %2340 = vmatprep.subr.mxu0 0.0
      %2341 = vmatpush1.msra.mxu0 0.0
      %2342 = vmatprep.subr.mxu0 0.0
      %2343 = vmatpush1.msra.mxu0 0.0
      %2344 = vmatprep.subr.mxu0 0.0
      %2345 = vmatpush1.msra.mxu0 0.0
      %2346 = vmatprep.subr.mxu0 0.0
      %2347 = vmatpush1.msra.mxu0 0.0
      %2348 = vmatprep.subr.mxu0 0.0
      %2349 = vmatpush1.msra.mxu0 0.0
      %2350 = vmatprep.subr.mxu0 0.0
      %2351 = vmatpush1.msra.mxu0 0.0
      %2352 = vmatprep.subr.mxu0 0.0
      %2353 = vmatpush1.msra.mxu0 0.0
      %2354 = vmatprep.subr.mxu0 0.0
      %2355 = vmatpush1.msra.mxu0 0.0
      %2356 = vmatprep.subr.mxu0 0.0
      %2357 = vmatpush1.msra.mxu0 0.0
      %2358 = vmatprep.subr.mxu0 0.0
      %2359 = vmatpush1.msra.mxu0 0.0
      %2360 = vmatprep.subr.mxu0 0.0
      %2361 = vmatpush1.msra.mxu0 0.0
      %2362 = vmatprep.subr.mxu0 0.0
      %2363 = vmatpush1.msra.mxu0 0.0
      %2364 = vmatprep.subr.mxu0 0.0
      %2365 = vmatpush1.msra.mxu0 0.0
      %2366 = vmatprep.subr.mxu0 0.0
      %2367 = vmatpush1.msra.mxu0 0.0
      %2368 = vmatprep.subr.mxu0 0.0
      %2369 = vmatpush1.msra.mxu0 0.0
      %2370 = vmatprep.subr.mxu0 0.0
      %2371 = vmatpush1.msra.mxu0 0.0
      %2372 = vmatprep.mubr.f32.mxu0 0.0
      %2373 = vmatmul.mubr.f32.gmra.mrb[0].mxu0 %v2080
      %v2374 = vpop.f32.mrb[0].mxu0
      %v2375 = vadd.f32 %v2305, %v2374
      %v2376 = vpop.f32.mrb[0].mxu0
      %2377 = vdwg.mxu0
      %v2378 = vmax.f32 %v2375, 0.0
      %v2379 = vld [vmem:[%s7] sm:$0xff]
      %v2380 = vld [vmem:[%s7 + $0x8] sm:$0xff]
      %v2381 = vld [vmem:[%s7 + $0x10] sm:$0xff]
      %v2382 = vld [vmem:[%s7 + $0x18] sm:$0xff]
      %v2383 = vld [vmem:[%s7 + $0x20] sm:$0xff]
      %v2384 = vld [vmem:[%s7 + $0x28] sm:$0xff]
      %v2385 = vld [vmem:[%s7 + $0x30] sm:$0xff]
      %v2386 = vld [vmem:[%s7 + $0x38] sm:$0xff]
      %v2387 = vld [vmem:[%s7 + $0x40] sm:$0xff]
      %v2388 = vld [vmem:[%s7 + $0x48] sm:$0xff]
      %v2389 = vld [vmem:[%s7 + $0x50] sm:$0xff]
      %v2390 = vld [vmem:[%s7 + $0x58] sm:$0xff]
      %v2391 = vld [vmem:[%s7 + $0x60] sm:$0xff]
      %v2392 = vld [vmem:[%s7 + $0x68] sm:$0xff]
      %v2393 = vld [vmem:[%s7 + $0x70] sm:$0xff]
      %v2394 = vld [vmem:[%s7 + $0x78] sm:$0xff]
      %v2395 = vld [vmem:[%s8] sm:$0x1]
      %v2397 = vlaneseq
      %v2398 = vshrl.u32 %v2397, 7
      %v2399 = vsub.s32 0, %v2398
      %v2400 = vrot.slane %v2395, %v2399
      %2402 = vmatprep.subr.mxu0 0.0
      %2403 = vmatpush1.msra.mxu0 %v2379
      %2404 = vmatprep.subr.mxu0 0.0
      %2405 = vmatpush1.msra.mxu0 %v2380
      %2406 = vmatprep.subr.mxu0 0.0
      %2407 = vmatpush1.msra.mxu0 %v2381
      %2408 = vmatprep.subr.mxu0 0.0
      %2409 = vmatpush1.msra.mxu0 %v2382
      %2410 = vmatprep.subr.mxu0 0.0
      %2411 = vmatpush1.msra.mxu0 %v2383
      %2412 = vmatprep.subr.mxu0 0.0
      %2413 = vmatpush1.msra.mxu0 %v2384
      %2414 = vmatprep.subr.mxu0 0.0
      %2415 = vmatpush1.msra.mxu0 %v2385
      %2416 = vmatprep.subr.mxu0 0.0
      %2417 = vmatpush1.msra.mxu0 %v2386
      %2418 = vmatprep.subr.mxu0 0.0
      %2419 = vmatpush1.msra.mxu0 %v2387
      %2420 = vmatprep.subr.mxu0 0.0
      %2421 = vmatpush1.msra.mxu0 %v2388
      %2422 = vmatprep.subr.mxu0 0.0
      %2423 = vmatpush1.msra.mxu0 %v2389
      %2424 = vmatprep.subr.mxu0 0.0
      %2425 = vmatpush1.msra.mxu0 %v2390
      %2426 = vmatprep.subr.mxu0 0.0
      %2427 = vmatpush1.msra.mxu0 %v2391
      %2428 = vmatprep.subr.mxu0 0.0
      %2429 = vmatpush1.msra.mxu0 %v2392
      %2430 = vmatprep.subr.mxu0 0.0
      %2431 = vmatpush1.msra.mxu0 %v2393
      %2432 = vmatprep.subr.mxu0 0.0
      %2433 = vmatpush1.msra.mxu0 %v2394
      %2434 = vmatprep.subr.mxu0 0.0
      %2435 = vmatpush1.msra.mxu0 0.0
      %2436 = vmatprep.subr.mxu0 0.0
      %2437 = vmatpush1.msra.mxu0 0.0
      %2438 = vmatprep.subr.mxu0 0.0
      %2439 = vmatpush1.msra.mxu0 0.0
      %2440 = vmatprep.subr.mxu0 0.0
      %2441 = vmatpush1.msra.mxu0 0.0
      %2442 = vmatprep.subr.mxu0 0.0
      %2443 = vmatpush1.msra.mxu0 0.0
      %2444 = vmatprep.subr.mxu0 0.0
      %2445 = vmatpush1.msra.mxu0 0.0
      %2446 = vmatprep.subr.mxu0 0.0
      %2447 = vmatpush1.msra.mxu0 0.0
      %2448 = vmatprep.subr.mxu0 0.0
      %2449 = vmatpush1.msra.mxu0 0.0
      %2450 = vmatprep.subr.mxu0 0.0
      %2451 = vmatpush1.msra.mxu0 0.0
      %2452 = vmatprep.subr.mxu0 0.0
      %2453 = vmatpush1.msra.mxu0 0.0
      %2454 = vmatprep.subr.mxu0 0.0
      %2455 = vmatpush1.msra.mxu0 0.0
      %2456 = vmatprep.subr.mxu0 0.0
      %2457 = vmatpush1.msra.mxu0 0.0
      %2458 = vmatprep.subr.mxu0 0.0
      %2459 = vmatpush1.msra.mxu0 0.0
      %2460 = vmatprep.subr.mxu0 0.0
      %2461 = vmatpush1.msra.mxu0 0.0
      %2462 = vmatprep.subr.mxu0 0.0
      %2463 = vmatpush1.msra.mxu0 0.0
      %2464 = vmatprep.subr.mxu0 0.0
      %2465 = vmatpush1.msra.mxu0 0.0
      %2466 = vmatprep.mubr.f32.mxu0 0.0
      %2467 = vmatmul.mubr.f32.gmra.mrb[0].mxu0 %v2378
      %v2468 = vpop.f32.mrb[0].mxu0
      %v2469 = vadd.f32 %v2400, %v2468
      %v2470 = vpop.f32.mrb[0].mxu0
      %2471 = vdwg.mxu0
      %v2472 = vmax.f32 %v2469, 0.0
      %v2473 = vld [vmem:[%s9] sm:$0xff]
      %v2474 = vld [vmem:[%s9 + $0x8] sm:$0xff]
      %v2475 = vld [vmem:[%s9 + $0x10] sm:$0xff]
      %v2476 = vld [vmem:[%s9 + $0x18] sm:$0xff]
      %v2477 = vld [vmem:[%s9 + $0x20] sm:$0xff]
      %v2478 = vld [vmem:[%s9 + $0x28] sm:$0xff]
      %v2479 = vld [vmem:[%s9 + $0x30] sm:$0xff]
      %v2480 = vld [vmem:[%s9 + $0x38] sm:$0xff]
      %v2481 = vld [vmem:[%s9 + $0x40] sm:$0xff]
      %v2482 = vld [vmem:[%s9 + $0x48] sm:$0xff]
      %v2483 = vld [vmem:[%s9 + $0x50] sm:$0xff]
      %v2484 = vld [vmem:[%s9 + $0x58] sm:$0xff]
      %v2485 = vld [vmem:[%s9 + $0x60] sm:$0xff]
      %v2486 = vld [vmem:[%s9 + $0x68] sm:$0xff]
      %v2487 = vld [vmem:[%s9 + $0x70] sm:$0xff]
      %v2488 = vld [vmem:[%s9 + $0x78] sm:$0xff]
      %v2489 = vld [vmem:[%s10] sm:$0x1]
      %v2491 = vlaneseq
      %v2492 = vshrl.u32 %v2491, 7
      %v2493 = vsub.s32 0, %v2492
      %v2494 = vrot.slane %v2489, %v2493
      %2496 = vmatprep.subr.mxu0 0.0
      %2497 = vmatpush1.msra.mxu0 %v2473
      %2498 = vmatprep.subr.mxu0 0.0
      %2499 = vmatpush1.msra.mxu0 %v2474
      %2500 = vmatprep.subr.mxu0 0.0
      %2501 = vmatpush1.msra.mxu0 %v2475
      %2502 = vmatprep.subr.mxu0 0.0
      %2503 = vmatpush1.msra.mxu0 %v2476
      %2504 = vmatprep.subr.mxu0 0.0
      %2505 = vmatpush1.msra.mxu0 %v2477
      %2506 = vmatprep.subr.mxu0 0.0
      %2507 = vmatpush1.msra.mxu0 %v2478
      %2508 = vmatprep.subr.mxu0 0.0
      %2509 = vmatpush1.msra.mxu0 %v2479
      %2510 = vmatprep.subr.mxu0 0.0
      %2511 = vmatpush1.msra.mxu0 %v2480
      %2512 = vmatprep.subr.mxu0 0.0
      %2513 = vmatpush1.msra.mxu0 %v2481
      %2514 = vmatprep.subr.mxu0 0.0
      %2515 = vmatpush1.msra.mxu0 %v2482
      %2516 = vmatprep.subr.mxu0 0.0
      %2517 = vmatpush1.msra.mxu0 %v2483
      %2518 = vmatprep.subr.mxu0 0.0
      %2519 = vmatpush1.msra.mxu0 %v2484
      %2520 = vmatprep.subr.mxu0 0.0
      %2521 = vmatpush1.msra.mxu0 %v2485
      %2522 = vmatprep.subr.mxu0 0.0
      %2523 = vmatpush1.msra.mxu0 %v2486
      %2524 = vmatprep.subr.mxu0 0.0
      %2525 = vmatpush1.msra.mxu0 %v2487
      %2526 = vmatprep.subr.mxu0 0.0
      %2527 = vmatpush1.msra.mxu0 %v2488
      %2528 = vmatprep.subr.mxu0 0.0
      %2529 = vmatpush1.msra.mxu0 0.0
      %2530 = vmatprep.subr.mxu0 0.0
      %2531 = vmatpush1.msra.mxu0 0.0
      %2532 = vmatprep.subr.mxu0 0.0
      %2533 = vmatpush1.msra.mxu0 0.0
      %2534 = vmatprep.subr.mxu0 0.0
      %2535 = vmatpush1.msra.mxu0 0.0
      %2536 = vmatprep.subr.mxu0 0.0
      %2537 = vmatpush1.msra.mxu0 0.0
      %2538 = vmatprep.subr.mxu0 0.0
      %2539 = vmatpush1.msra.mxu0 0.0
      %2540 = vmatprep.subr.mxu0 0.0
      %2541 = vmatpush1.msra.mxu0 0.0
      %2542 = vmatprep.subr.mxu0 0.0
      %2543 = vmatpush1.msra.mxu0 0.0
      %2544 = vmatprep.subr.mxu0 0.0
      %2545 = vmatpush1.msra.mxu0 0.0
      %2546 = vmatprep.subr.mxu0 0.0
      %2547 = vmatpush1.msra.mxu0 0.0
      %2548 = vmatprep.subr.mxu0 0.0
      %2549 = vmatpush1.msra.mxu0 0.0
      %2550 = vmatprep.subr.mxu0 0.0
      %2551 = vmatpush1.msra.mxu0 0.0
      %2552 = vmatprep.subr.mxu0 0.0
      %2553 = vmatpush1.msra.mxu0 0.0
      %2554 = vmatprep.subr.mxu0 0.0
      %2555 = vmatpush1.msra.mxu0 0.0
      %2556 = vmatprep.subr.mxu0 0.0
      %2557 = vmatpush1.msra.mxu0 0.0
      %2558 = vmatprep.subr.mxu0 0.0
      %2559 = vmatpush1.msra.mxu0 0.0
      %2560 = vmatprep.mubr.f32.mxu0 0.0
      %2561 = vmatmul.mubr.f32.gmra.mrb[0].mxu0 %v2472
      %v2562 = vpop.f32.mrb[0].mxu0
      %v2563 = vadd.f32 %v2494, %v2562
      %v2564 = vpop.f32.mrb[0].mxu0
      %2565 = vdwg.mxu0
      %2566 = vst [vmem:[%s384] sm:$0xff] %v2563
      %p2567 = scmp.lt.s32.totalorder %s22, 1
      %s2568 = scalar_select %p2567, %s22, 1
      %s2569 = smul.addr %s2568, 8
      %s2570 = scalar_lea.vmem %s11, %s2569
      // Predicated region
      $region65: #{net_forward.1} parent=63 // pred_check
        %p2571 = pneg %p276
      $region66: #{net_forward.1} parent=63 // pred_check_branch
        %2573 = sbr.rel (%p2571) target = $region68
      $region67: #{net_forward.1} parent=63 // pred_region
        _
      $region68: #{net_forward.1} parent=63 // pred_fallthru
        _
    $region64: #{net_forward.1} parent=5 // pred_fallthru
      _
    %p2574 = scmp.le.s32.totalorder 2, %s17
    // Predicated region
    $region69: #{net_forward.1} parent=5 // pred_check
      %p2575 = pneg %p2574
    $region70: #{net_forward.1} parent=5 // pred_check_branch
      %2577 = sbr.rel (%p2575) target = $region72
    $region71: #{net_forward.1} parent=5 // pred_region
      %s2578 = ssub.s32 %s17, 2
      // Predicated region
      $region73: #{net_forward.1} parent=71 // pred_check
        %p2579 = pneg %p282
      $region74: #{net_forward.1} parent=71 // pred_check_branch
        %2581 = sbr.rel (%p2579) target = $region76
      $region75: #{net_forward.1} parent=71 // pred_region
        %p2582 = scmp.lt.s32.totalorder %s23, 1
        %s2583 = scalar_select %p2582, %s23, 1
        %s2584 = smul.addr %s2583, 8
        %s2585 = scalar_lea.vmem %s11, %s2584
      $region76: #{net_forward.1} parent=71 // pred_fallthru
        _
    $region72: #{net_forward.1} parent=5 // pred_fallthru
      _
  $region6: #{net_forward.1} parent=0 // loop_footer
    %s21 = sadd.s32 1, %s17
  $region7: #{net_forward.1} parent=0 // loop_footer_branch
    %16 = sbr.rel target = $region3
  $region8: #{net_forward.1} parent=0 // loop_exit
    _

</llo_original>
